<compile_context>
chip_gen: v5e
topology: v5e:2x2
jax: 0.10.0
libtpu: 0.0.40
codegen_flags: <defaults>
</compile_context>

<pallas_src>
import functools
import math

import jax
import jax.numpy as jnp
from jax.experimental import pallas as pl
from jax.experimental.pallas import tpu as pltpu


# ----------------------------- in-kernel helpers ------------------------------

def _layer_norm_rows(x, gamma, beta, eps):
    # Annotated-Transformer LayerNorm: a_2 * (x - mean) / (std + eps) + b_2
    # std is unbiased (divide by d-1); eps is added to std (not variance).
    d = x.shape[-1]
    mean = jnp.mean(x, axis=-1, keepdims=True)
    diff = x - mean
    var = jnp.sum(diff * diff, axis=-1, keepdims=True) / (d - 1)
    return gamma * diff / (jnp.sqrt(var) + eps) + beta


def _attention_heads(q, k, v, mask, h, dk):
    # q: (Tq, D) f32, k/v: (Tk, D) f32, mask: (Tq, Tk) float {0,1}.
    # Heads are static lane slices of the lane-dense (T, D) slabs (no HBM transposes).
    scale = jnp.float32(1.0 / math.sqrt(dk))
    parts = []
    for hd in range(h):  # h is a static Python int -> unrolled
        lo = hd * dk
        qs = q[:, lo:lo + dk].astype(jnp.bfloat16)
        ks = k[:, lo:lo + dk].astype(jnp.bfloat16)
        vs = v[:, lo:lo + dk].astype(jnp.bfloat16)
        s = jnp.dot(qs, ks.T, preferred_element_type=jnp.float32) * scale
        s = jnp.where(mask == 0, jnp.float32(-1e9), s)
        s = s - jnp.max(s, axis=-1, keepdims=True)
        p = jnp.exp(s)
        denom = jnp.sum(p, axis=-1, keepdims=True)
        ctx = jnp.dot(p.astype(jnp.bfloat16), vs, preferred_element_type=jnp.float32)
        # Deferred softmax normalization on the (Tq, dk) context; reciprocal on the EUP slot.
        parts.append(ctx * pl.reciprocal(denom, approx=True))
    return jnp.concatenate(parts, axis=-1)  # (Tq, D) f32


# ----------------------------- fused sublayer kernels ------------------------------

def _self_attn_sublayer_kernel(x_ref, mask_ref, g_ref, b_ref,
                               wqkv_ref, bqkv_ref, wo_ref, bo_ref,
                               o_ref, *, h, eps):
    x = x_ref[0].astype(jnp.float32)               # (T, D)
    D = x.shape[-1]
    dk = D // h
    xn = _layer_norm_rows(x, g_ref[...], b_ref[...], eps)
    qkv = jnp.dot(xn.astype(jnp.bfloat16), wqkv_ref[...],
                  preferred_element_type=jnp.float32) + bqkv_ref[...]   # (T, 3D)
    q, k, v = qkv[:, :D], qkv[:, D:2 * D], qkv[:, 2 * D:]
    ctx = _attention_heads(q, k, v, mask_ref[0], h, dk)
    out = jnp.dot(ctx.astype(jnp.bfloat16), wo_ref[...],
                  preferred_element_type=jnp.float32) + bo_ref[...] + x  # fused residual
    o_ref[0] = out.astype(o_ref.dtype)


def _src_attn_sublayer_kernel(x_ref, mem_ref, mask_ref, g_ref, b_ref,
                              wq_ref, bq_ref, wkv_ref, bkv_ref, wo_ref, bo_ref,
                              o_ref, *, h, eps):
    x = x_ref[0].astype(jnp.float32)               # (Tq, D)
    D = x.shape[-1]
    dk = D // h
    xn = _layer_norm_rows(x, g_ref[...], b_ref[...], eps)
    q = jnp.dot(xn.astype(jnp.bfloat16), wq_ref[...],
                preferred_element_type=jnp.float32) + bq_ref[...]
    mem = mem_ref[0].astype(jnp.bfloat16)          # (Tk, D) -- memory is NOT layer-normed
    kv = jnp.dot(mem, wkv_ref[...], preferred_element_type=jnp.float32) + bkv_ref[...]  # (Tk, 2D)
    k, v = kv[:, :D], kv[:, D:]
    ctx = _attention_heads(q, k, v, mask_ref[0], h, dk)
    out = jnp.dot(ctx.astype(jnp.bfloat16), wo_ref[...],
                  preferred_element_type=jnp.float32) + bo_ref[...] + x
    o_ref[0] = out.astype(o_ref.dtype)


def _ffn_sublayer_kernel(x_ref, g_ref, b_ref, w1_ref, b1_ref, w2_ref, b2_ref,
                         o_ref, *, eps):
    x = x_ref[...].astype(jnp.float32)             # (tm, D)
    xn = _layer_norm_rows(x, g_ref[...], b_ref[...], eps)
    hmid = jnp.dot(xn.astype(jnp.bfloat16), w1_ref[...],
                   preferred_element_type=jnp.float32) + b1_ref[...]
    hmid = jnp.maximum(hmid, 0.0)                  # ReLU; hidden stays in VMEM/vregs
    out = jnp.dot(hmid.astype(jnp.bfloat16), w2_ref[...],
                  preferred_element_type=jnp.float32) + b2_ref[...] + x
    o_ref[...] = out.astype(o_ref.dtype)


def _layernorm_kernel(x_ref, g_ref, b_ref, o_ref, *, eps):
    x = x_ref[...].astype(jnp.float32)
    o_ref[...] = _layer_norm_rows(x, g_ref[...], b_ref[...], eps).astype(o_ref.dtype)


# ----------------------------- pallas_call wrappers ------------------------------

def _parallel(n):
    return pltpu.CompilerParams(dimension_semantics=("parallel",) * n)


def _pick_row_tile(M, targets=(512, 256, 128, 64, 32, 16, 8)):
    # Largest divisor of M from a 128/8-friendly menu; keeps (8,128) rules satisfied
    # (tile equals full dim when M is small) and bounds VMEM per step on v5e/v7x.
    for t in targets:
        if t <= M and M % t == 0:
            return t
    return M


def self_attn_sublayer(x, mask, ln_g, ln_b, ap, *, h, eps=1e-6):
    B, T, D = x.shape
    return pl.pallas_call(
        functools.partial(_self_attn_sublayer_kernel, h=h, eps=eps),
        out_shape=jax.ShapeDtypeStruct((B, T, D), x.dtype),
        grid=(B,),
        in_specs=[
            pl.BlockSpec((1, T, D), lambda b: (b, 0, 0)),      # x
            pl.BlockSpec((1, T, T), lambda b: (b, 0, 0)),      # tgt mask
            pl.BlockSpec((1, D), lambda b: (0, 0)),            # ln gamma
            pl.BlockSpec((1, D), lambda b: (0, 0)),            # ln beta
            pl.BlockSpec((D, 3 * D), lambda b: (0, 0)),        # wqkv (bf16, fused)
            pl.BlockSpec((1, 3 * D), lambda b: (0, 0)),        # bqkv
            pl.BlockSpec((D, D), lambda b: (0, 0)),            # wo (bf16)
            pl.BlockSpec((1, D), lambda b: (0, 0)),            # bo
        ],
        out_specs=pl.BlockSpec((1, T, D), lambda b: (b, 0, 0)),
        input_output_aliases={0: 0},                           # residual written in place
        compiler_params=_parallel(1),
    )(x, mask, ln_g, ln_b, ap["wqkv"], ap["bqkv"], ap["wo"], ap["bo"])


def src_attn_sublayer(x, memory, mask, ln_g, ln_b, ap, *, h, eps=1e-6):
    B, T, D = x.shape
    Ts = memory.shape[1]
    return pl.pallas_call(
        functools.partial(_src_attn_sublayer_kernel, h=h, eps=eps),
        out_shape=jax.ShapeDtypeStruct((B, T, D), x.dtype),
        grid=(B,),
        in_specs=[
            pl.BlockSpec((1, T, D), lambda b: (b, 0, 0)),      # x
            pl.BlockSpec((1, Ts, D), lambda b: (b, 0, 0)),     # memory
            pl.BlockSpec((1, T, Ts), lambda b: (b, 0, 0)),     # src mask
            pl.BlockSpec((1, D), lambda b: (0, 0)),            # ln gamma
            pl.BlockSpec((1, D), lambda b: (0, 0)),            # ln beta
            pl.BlockSpec((D, D), lambda b: (0, 0)),            # wq (bf16)
            pl.BlockSpec((1, D), lambda b: (0, 0)),            # bq
            pl.BlockSpec((D, 2 * D), lambda b: (0, 0)),        # wkv (bf16, fused)
            pl.BlockSpec((1, 2 * D), lambda b: (0, 0)),        # bkv
            pl.BlockSpec((D, D), lambda b: (0, 0)),            # wo (bf16)
            pl.BlockSpec((1, D), lambda b: (0, 0)),            # bo
        ],
        out_specs=pl.BlockSpec((1, T, D), lambda b: (b, 0, 0)),
        input_output_aliases={0: 0},
        compiler_params=_parallel(1),
    )(x, memory, mask, ln_g, ln_b,
      ap["wq"], ap["bq"], ap["wkv"], ap["bkv"], ap["wo"], ap["bo"])


def ffn_sublayer(x, ln_g, ln_b, w1, b1, w2, b2, *, eps=1e-6):
    B, T, D = x.shape
    M = B * T
    Dff = w1.shape[1]
    tm = _pick_row_tile(M)
    y = pl.pallas_call(
        functools.partial(_ffn_sublayer_kernel, eps=eps),
        out_shape=jax.ShapeDtypeStruct((M, D), x.dtype),
        grid=(M // tm,),
        in_specs=[
            pl.BlockSpec((tm, D), lambda i: (i, 0)),           # rows of x (pipelined)
            pl.BlockSpec((1, D), lambda i: (0, 0)),            # ln gamma
            pl.BlockSpec((1, D), lambda i: (0, 0)),            # ln beta
            pl.BlockSpec((D, Dff), lambda i: (0, 0)),          # w1 (bf16, VMEM-resident)
            pl.BlockSpec((1, Dff), lambda i: (0, 0)),          # b1
            pl.BlockSpec((Dff, D), lambda i: (0, 0)),          # w2 (bf16)
            pl.BlockSpec((1, D), lambda i: (0, 0)),            # b2
        ],
        out_specs=pl.BlockSpec((tm, D), lambda i: (i, 0)),
        input_output_aliases={0: 0},
        compiler_params=_parallel(1),
    )(x.reshape(M, D), ln_g, ln_b, w1, b1, w2, b2)
    return y.reshape(B, T, D)


def final_layer_norm(x, g, b, *, eps=1e-6):
    B, T, D = x.shape
    M = B * T
    tm = _pick_row_tile(M)
    y = pl.pallas_call(
        functools.partial(_layernorm_kernel, eps=eps),
        out_shape=jax.ShapeDtypeStruct((M, D), x.dtype),
        grid=(M // tm,),
        in_specs=[
            pl.BlockSpec((tm, D), lambda i: (i, 0)),
            pl.BlockSpec((1, D), lambda i: (0, 0)),
            pl.BlockSpec((1, D), lambda i: (0, 0)),
        ],
        out_specs=pl.BlockSpec((tm, D), lambda i: (i, 0)),
        compiler_params=_parallel(1),
    )(x.reshape(M, D), g, b)
    return y.reshape(B, T, D)


# ----------------------------- model (glue) ------------------------------

def decoder_layer(lp, x, memory, src_mask, tgt_mask, *, h):
    # sublayer 0: x + self_attn(LN(x))          (dropout = identity)
    x = self_attn_sublayer(x, tgt_mask, lp["ln0_g"], lp["ln0_b"], lp["self_attn"], h=h)
    # sublayer 1: x + src_attn(LN(x), memory, memory)
    x = src_attn_sublayer(x, memory, src_mask, lp["ln1_g"], lp["ln1_b"], lp["src_attn"], h=h)
    # sublayer 2: x + FFN(LN(x))
    x = ffn_sublayer(x, lp["ln2_g"], lp["ln2_b"],
                     lp["ff_w1"], lp["ff_b1"], lp["ff_w2"], lp["ff_b2"])
    return x


def decoder_forward(params, x, memory, src_mask, tgt_mask, *, h, n_layers):
    # `clones` deep-copies the layer, so all N layers share identical initial params.
    for _ in range(n_layers):
        x = decoder_layer(params["layer"], x, memory, src_mask, tgt_mask, h=h)
    return final_layer_norm(x, params["norm_g"], params["norm_b"])


# ----------------------------- parameter init ------------------------------

def init_params(key, D, Dff):
    ks = jax.random.split(key, 4)

    def w(k, shape):
        return jax.random.normal(k, shape, jnp.float32) * 0.05

    def attn_raw(k):
        kq, kk_, kv, ko = jax.random.split(k, 4)
        return {
            "wq": w(kq, (D, D)), "bq": jnp.zeros((D,), jnp.float32),
            "wk": w(kk_, (D, D)), "bk": jnp.zeros((D,), jnp.float32),
            "wv": w(kv, (D, D)), "bv": jnp.zeros((D,), jnp.float32),
            "wo": w(ko, (D, D)), "bo": jnp.zeros((D,), jnp.float32),
        }

    layer = {
        "self_attn": attn_raw(ks[0]),
        "src_attn": attn_raw(ks[1]),
        "ff_w1": w(ks[2], (D, Dff)), "ff_b1": jnp.zeros((Dff,), jnp.float32),
        "ff_w2": w(ks[3], (Dff, D)), "ff_b2": jnp.zeros((D,), jnp.float32),
        "ln0_g": jnp.ones((D,), jnp.float32), "ln0_b": jnp.zeros((D,), jnp.float32),
        "ln1_g": jnp.ones((D,), jnp.float32), "ln1_b": jnp.zeros((D,), jnp.float32),
        "ln2_g": jnp.ones((D,), jnp.float32), "ln2_b": jnp.zeros((D,), jnp.float32),
    }
    return {"layer": layer,
            "norm_g": jnp.ones((D,), jnp.float32),
            "norm_b": jnp.zeros((D,), jnp.float32)}


def prepare_params(raw, D):
    """Pack raw f32 params into the fused / bf16 kernel layout (QKV & KV merged, 2-D biases)."""
    lr = raw["layer"]

    def self_attn(a):
        return {
            "wqkv": jnp.concatenate([a["wq"], a["wk"], a["wv"]], axis=1).astype(jnp.bfloat16),
            "bqkv": jnp.concatenate([a["bq"], a["bk"], a["bv"]]).reshape(1, 3 * D),
            "wo": a["wo"].astype(jnp.bfloat16),
            "bo": a["bo"].reshape(1, D),
        }

    def src_attn(a):
        return {
            "wq": a["wq"].astype(jnp.bfloat16), "bq": a["bq"].reshape(1, D),
            "wkv": jnp.concatenate([a["wk"], a["wv"]], axis=1).astype(jnp.bfloat16),
            "bkv": jnp.concatenate([a["bk"], a["bv"]]).reshape(1, 2 * D),
            "wo": a["wo"].astype(jnp.bfloat16), "bo": a["bo"].reshape(1, D),
        }

    Dff = lr["ff_w1"].shape[1]
    layer = {
        "self_attn": self_attn(lr["self_attn"]),
        "src_attn": src_attn(lr["src_attn"]),
        "ff_w1": lr["ff_w1"].astype(jnp.bfloat16), "ff_b1": lr["ff_b1"].reshape(1, Dff),
        "ff_w2": lr["ff_w2"].astype(jnp.bfloat16), "ff_b2": lr["ff_b2"].reshape(1, D),
        "ln0_g": lr["ln0_g"].reshape(1, D), "ln0_b": lr["ln0_b"].reshape(1, D),
        "ln1_g": lr["ln1_g"].reshape(1, D), "ln1_b": lr["ln1_b"].reshape(1, D),
        "ln2_g": lr["ln2_g"].reshape(1, D), "ln2_b": lr["ln2_b"].reshape(1, D),
    }
    return {"layer": layer,
            "norm_g": raw["norm_g"].reshape(1, D),
            "norm_b": raw["norm_b"].reshape(1, D)}


# ----------------------------- main ------------------------------

if __name__ == "__main__":
    B, T_TGT, T_SRC = 2, 8, 8
    D_MODEL, H, D_FF, N_LAYERS = 32, 4, 64, 2

    key = jax.random.PRNGKey(0)
    kx, km, kp = jax.random.split(key, 3)

    x = jax.random.normal(kx, (B, T_TGT, D_MODEL), jnp.float32)
    memory = jax.random.normal(km, (B, T_SRC, D_MODEL), jnp.float32)

    # tgt_mask: causal (B, T_TGT, T_TGT); src_mask: all-ones padding mask (B, T_TGT, T_SRC)
    tgt_mask = jnp.broadcast_to(jnp.tril(jnp.ones((T_TGT, T_TGT), jnp.float32)),
                                (B, T_TGT, T_TGT))
    src_mask = jnp.ones((B, T_TGT, T_SRC), jnp.float32)

    params = prepare_params(init_params(kp, D_MODEL, D_FF), D_MODEL)

    # TODO(synk): dropout inside SublayerConnection is identity here (eval mode / p=0).
    fwd = jax.jit(functools.partial(decoder_forward, h=H, n_layers=N_LAYERS))
    out = fwd(params, x, memory, src_mask, tgt_mask)
    jax.block_until_ready(out)
    assert out.shape == (B, T_TGT, D_MODEL)
    assert bool(jnp.all(jnp.isfinite(out)))
    print("KERNEL_OK")
</pallas_src>

<mosaic_0001>
module attributes {stable_mosaic.version = 11 : i64} {
  func.func @_ffn_sublayer_kernel(%arg0: i32, %arg1: memref<16x32xf32, #tpu.memory_space<vmem>>, %arg2: memref<1x32xf32, #tpu.memory_space<vmem>>, %arg3: memref<1x32xf32, #tpu.memory_space<vmem>>, %arg4: memref<32x64xbf16, #tpu.memory_space<vmem>>, %arg5: memref<1x64xf32, #tpu.memory_space<vmem>>, %arg6: memref<64x32xbf16, #tpu.memory_space<vmem>>, %arg7: memref<1x32xf32, #tpu.memory_space<vmem>>, %arg8: memref<16x32xf32, #tpu.memory_space<vmem>>) attributes {dimension_semantics = [#tpu.dimension_semantics<parallel>], iteration_bounds = array<i64: 1>, scalar_prefetch = 0 : i64, scratch_operands = 0 : i64, tpu.core_type = #tpu.core_type<tc>, window_params = [{transform_indices = @transform_0, window_bounds = array<i64: 16, 32>}, {pipeline_mode = #tpu.pipeline_mode<synchronous>, transform_indices = @transform_1, window_bounds = array<i64: 1, 32>}, {pipeline_mode = #tpu.pipeline_mode<synchronous>, transform_indices = @transform_2, window_bounds = array<i64: 1, 32>}, {pipeline_mode = #tpu.pipeline_mode<synchronous>, transform_indices = @transform_3, window_bounds = array<i64: 32, 64>}, {pipeline_mode = #tpu.pipeline_mode<synchronous>, transform_indices = @transform_4, window_bounds = array<i64: 1, 64>}, {pipeline_mode = #tpu.pipeline_mode<synchronous>, transform_indices = @transform_5, window_bounds = array<i64: 64, 32>}, {pipeline_mode = #tpu.pipeline_mode<synchronous>, transform_indices = @transform_6, window_bounds = array<i64: 1, 32>}, {transform_indices = @transform_7, window_bounds = array<i64: 16, 32>}]} {
    %c0 = arith.constant 0 : index
    %c0_0 = arith.constant 0 : index
    %0 = vector.load %arg1[%c0, %c0_0] : memref<16x32xf32, #tpu.memory_space<vmem>>, vector<16x32xf32>
    %c0_1 = arith.constant 0 : index
    %c0_2 = arith.constant 0 : index
    %1 = vector.load %arg2[%c0_1, %c0_2] : memref<1x32xf32, #tpu.memory_space<vmem>>, vector<1x32xf32>
    %c0_3 = arith.constant 0 : index
    %c0_4 = arith.constant 0 : index
    %2 = vector.load %arg3[%c0_3, %c0_4] : memref<1x32xf32, #tpu.memory_space<vmem>>, vector<1x32xf32>
    %cst = arith.constant dense<0.000000e+00> : vector<16xf32>
    %3 = vector.multi_reduction <add>, %0, %cst [1] : vector<16x32xf32> to vector<16xf32>
    %4 = vector.shape_cast %3 : vector<16xf32> to vector<16x1xf32>
    %cst_5 = arith.constant 3.200000e+01 : f32
    %5 = vector.broadcast %cst_5 : f32 to vector<16x1xf32>
    %6 = arith.divf %4, %5 : vector<16x1xf32>
    %7 = vector.broadcast %6 : vector<16x1xf32> to vector<16x32xf32>
    %8 = arith.subf %0, %7 : vector<16x32xf32>
    %9 = arith.mulf %8, %8 : vector<16x32xf32>
    %cst_6 = arith.constant dense<0.000000e+00> : vector<16xf32>
    %10 = vector.multi_reduction <add>, %9, %cst_6 [1] : vector<16x32xf32> to vector<16xf32>
    %11 = vector.shape_cast %10 : vector<16xf32> to vector<16x1xf32>
    %cst_7 = arith.constant 3.100000e+01 : f32
    %12 = vector.broadcast %cst_7 : f32 to vector<16x1xf32>
    %13 = arith.divf %11, %12 : vector<16x1xf32>
    %14 = vector.broadcast %1 : vector<1x32xf32> to vector<16x32xf32>
    %15 = arith.mulf %14, %8 : vector<16x32xf32>
    %16 = math.sqrt %13 : vector<16x1xf32>
    %cst_8 = arith.constant 9.99999997E-7 : f32
    %17 = vector.broadcast %cst_8 : f32 to vector<16x1xf32>
    %18 = arith.addf %16, %17 : vector<16x1xf32>
    %19 = vector.broadcast %18 : vector<16x1xf32> to vector<16x32xf32>
    %20 = arith.divf %15, %19 : vector<16x32xf32>
    %21 = vector.broadcast %2 : vector<1x32xf32> to vector<16x32xf32>
    %22 = arith.addf %20, %21 : vector<16x32xf32>
    %23 = arith.truncf %22 : vector<16x32xf32> to vector<16x32xbf16>
    %c0_9 = arith.constant 0 : index
    %c0_10 = arith.constant 0 : index
    %24 = vector.load %arg4[%c0_9, %c0_10] : memref<32x64xbf16, #tpu.memory_space<vmem>>, vector<32x64xbf16>
    %cst_11 = arith.constant dense<0.000000e+00> : vector<16x64xf32>
    %25 = tpu.matmul %23, %24, %cst_11 {dimension_numbers = #tpu.dot_dimension_numbers<[1], [0], [0], [1], [0, 0, 1, 1], [], []>} : vector<16x32xbf16>, vector<32x64xbf16>, vector<16x64xf32> -> vector<16x64xf32>
    %c0_12 = arith.constant 0 : index
    %c0_13 = arith.constant 0 : index
    %26 = vector.load %arg5[%c0_12, %c0_13] : memref<1x64xf32, #tpu.memory_space<vmem>>, vector<1x64xf32>
    %27 = vector.broadcast %26 : vector<1x64xf32> to vector<16x64xf32>
    %28 = arith.addf %25, %27 : vector<16x64xf32>
    %cst_14 = arith.constant 0.000000e+00 : f32
    %29 = vector.broadcast %cst_14 : f32 to vector<16x64xf32>
    %30 = arith.maximumf %28, %29 : vector<16x64xf32>
    %31 = arith.truncf %30 : vector<16x64xf32> to vector<16x64xbf16>
    %c0_15 = arith.constant 0 : index
    %c0_16 = arith.constant 0 : index
    %32 = vector.load %arg6[%c0_15, %c0_16] : memref<64x32xbf16, #tpu.memory_space<vmem>>, vector<64x32xbf16>
    %cst_17 = arith.constant dense<0.000000e+00> : vector<16x32xf32>
    %33 = tpu.matmul %31, %32, %cst_17 {dimension_numbers = #tpu.dot_dimension_numbers<[1], [0], [0], [1], [0, 0, 1, 1], [], []>} : vector<16x64xbf16>, vector<64x32xbf16>, vector<16x32xf32> -> vector<16x32xf32>
    %c0_18 = arith.constant 0 : index
    %c0_19 = arith.constant 0 : index
    %34 = vector.load %arg7[%c0_18, %c0_19] : memref<1x32xf32, #tpu.memory_space<vmem>>, vector<1x32xf32>
    %35 = vector.broadcast %34 : vector<1x32xf32> to vector<16x32xf32>
    %36 = arith.addf %33, %35 : vector<16x32xf32>
    %37 = arith.addf %36, %0 : vector<16x32xf32>
    %c0_20 = arith.constant 0 : index
    %c0_21 = arith.constant 0 : index
    %38 = vector.load %arg8[%c0_20, %c0_21] : memref<16x32xf32, #tpu.memory_space<vmem>>, vector<16x32xf32>
    tpu.vector_store %arg8[%c0_20, %c0_21], %37 {strides = array<i32>} : memref<16x32xf32, #tpu.memory_space<vmem>>, vector<16x32xf32>,
    return
  }
  func.func @transform_0(%arg0: i32) -> (i32, i32) {
    %c0_i32 = arith.constant 0 : i32
    %c0_i32_0 = arith.constant 0 : i32
    return %arg0, %c0_i32 : i32, i32
  }
  func.func @transform_1(%arg0: i32) -> (i32, i32) {
    %c0_i32 = arith.constant 0 : i32
    %c0_i32_0 = arith.constant 0 : i32
    %c0_i32_1 = arith.constant 0 : i32
    return %c0_i32, %c0_i32_0 : i32, i32
  }
  func.func @transform_2(%arg0: i32) -> (i32, i32) {
    %c0_i32 = arith.constant 0 : i32
    %c0_i32_0 = arith.constant 0 : i32
    %c0_i32_1 = arith.constant 0 : i32
    return %c0_i32, %c0_i32_0 : i32, i32
  }
  func.func @transform_3(%arg0: i32) -> (i32, i32) {
    %c0_i32 = arith.constant 0 : i32
    %c0_i32_0 = arith.constant 0 : i32
    %c0_i32_1 = arith.constant 0 : i32
    return %c0_i32, %c0_i32_0 : i32, i32
  }
  func.func @transform_4(%arg0: i32) -> (i32, i32) {
    %c0_i32 = arith.constant 0 : i32
    %c0_i32_0 = arith.constant 0 : i32
    %c0_i32_1 = arith.constant 0 : i32
    return %c0_i32, %c0_i32_0 : i32, i32
  }
  func.func @transform_5(%arg0: i32) -> (i32, i32) {
    %c0_i32 = arith.constant 0 : i32
    %c0_i32_0 = arith.constant 0 : i32
    %c0_i32_1 = arith.constant 0 : i32
    return %c0_i32, %c0_i32_0 : i32, i32
  }
  func.func @transform_6(%arg0: i32) -> (i32, i32) {
    %c0_i32 = arith.constant 0 : i32
    %c0_i32_0 = arith.constant 0 : i32
    %c0_i32_1 = arith.constant 0 : i32
    return %c0_i32, %c0_i32_0 : i32, i32
  }
  func.func @transform_7(%arg0: i32) -> (i32, i32) {
    %c0_i32 = arith.constant 0 : i32
    %c0_i32_0 = arith.constant 0 : i32
    return %arg0, %c0_i32 : i32, i32
  }
}

module attributes {stable_mosaic.version = 11 : i64} {
  func.func @_self_attn_sublayer_kernel(%arg0: i32, %arg1: memref<1x8x32xf32, #tpu.memory_space<vmem>>, %arg2: memref<1x8x8xf32, #tpu.memory_space<vmem>>, %arg3: memref<1x32xf32, #tpu.memory_space<vmem>>, %arg4: memref<1x32xf32, #tpu.memory_space<vmem>>, %arg5: memref<32x96xbf16, #tpu.memory_space<vmem>>, %arg6: memref<1x96xf32, #tpu.memory_space<vmem>>, %arg7: memref<32x32xbf16, #tpu.memory_space<vmem>>, %arg8: memref<1x32xf32, #tpu.memory_space<vmem>>, %arg9: memref<1x8x32xf32, #tpu.memory_space<vmem>>) attributes {dimension_semantics = [#tpu.dimension_semantics<parallel>], iteration_bounds = array<i64: 2>, scalar_prefetch = 0 : i64, scratch_operands = 0 : i64, tpu.core_type = #tpu.core_type<tc>, window_params = [{transform_indices = @transform_0, window_bounds = array<i64: 1, 8, 32>}, {transform_indices = @transform_1, window_bounds = array<i64: 1, 8, 8>}, {pipeline_mode = #tpu.pipeline_mode<synchronous>, transform_indices = @transform_2, window_bounds = array<i64: 1, 32>}, {pipeline_mode = #tpu.pipeline_mode<synchronous>, transform_indices = @transform_3, window_bounds = array<i64: 1, 32>}, {pipeline_mode = #tpu.pipeline_mode<synchronous>, transform_indices = @transform_4, window_bounds = array<i64: 32, 96>}, {pipeline_mode = #tpu.pipeline_mode<synchronous>, transform_indices = @transform_5, window_bounds = array<i64: 1, 96>}, {pipeline_mode = #tpu.pipeline_mode<synchronous>, transform_indices = @transform_6, window_bounds = array<i64: 32, 32>}, {pipeline_mode = #tpu.pipeline_mode<synchronous>, transform_indices = @transform_7, window_bounds = array<i64: 1, 32>}, {transform_indices = @transform_8, window_bounds = array<i64: 1, 8, 32>}]} {
    %c0 = arith.constant 0 : index
    %c0_0 = arith.constant 0 : index
    %c0_1 = arith.constant 0 : index
    %0 = vector.load %arg1[%c0, %c0_0, %c0_1] : memref<1x8x32xf32, #tpu.memory_space<vmem>>, vector<1x8x32xf32>
    %1 = vector.shape_cast %0 : vector<1x8x32xf32> to vector<8x32xf32>
    %c0_2 = arith.constant 0 : index
    %c0_3 = arith.constant 0 : index
    %2 = vector.load %arg3[%c0_2, %c0_3] : memref<1x32xf32, #tpu.memory_space<vmem>>, vector<1x32xf32>
    %c0_4 = arith.constant 0 : index
    %c0_5 = arith.constant 0 : index
    %3 = vector.load %arg4[%c0_4, %c0_5] : memref<1x32xf32, #tpu.memory_space<vmem>>, vector<1x32xf32>
    %cst = arith.constant dense<0.000000e+00> : vector<8xf32>
    %4 = vector.multi_reduction <add>, %1, %cst [1] : vector<8x32xf32> to vector<8xf32>
    %5 = vector.shape_cast %4 : vector<8xf32> to vector<8x1xf32>
    %cst_6 = arith.constant 3.200000e+01 : f32
    %6 = vector.broadcast %cst_6 : f32 to vector<8x1xf32>
    %7 = arith.divf %5, %6 : vector<8x1xf32>
    %8 = vector.broadcast %7 : vector<8x1xf32> to vector<8x32xf32>
    %9 = arith.subf %1, %8 : vector<8x32xf32>
    %10 = arith.mulf %9, %9 : vector<8x32xf32>
    %cst_7 = arith.constant dense<0.000000e+00> : vector<8xf32>
    %11 = vector.multi_reduction <add>, %10, %cst_7 [1] : vector<8x32xf32> to vector<8xf32>
    %12 = vector.shape_cast %11 : vector<8xf32> to vector<8x1xf32>
    %cst_8 = arith.constant 3.100000e+01 : f32
    %13 = vector.broadcast %cst_8 : f32 to vector<8x1xf32>
    %14 = arith.divf %12, %13 : vector<8x1xf32>
    %15 = vector.broadcast %2 : vector<1x32xf32> to vector<8x32xf32>
    %16 = arith.mulf %15, %9 : vector<8x32xf32>
    %17 = math.sqrt %14 : vector<8x1xf32>
    %cst_9 = arith.constant 9.99999997E-7 : f32
    %18 = vector.broadcast %cst_9 : f32 to vector<8x1xf32>
    %19 = arith.addf %17, %18 : vector<8x1xf32>
    %20 = vector.broadcast %19 : vector<8x1xf32> to vector<8x32xf32>
    %21 = arith.divf %16, %20 : vector<8x32xf32>
    %22 = vector.broadcast %3 : vector<1x32xf32> to vector<8x32xf32>
    %23 = arith.addf %21, %22 : vector<8x32xf32>
    %24 = arith.truncf %23 : vector<8x32xf32> to vector<8x32xbf16>
    %c0_10 = arith.constant 0 : index
    %c0_11 = arith.constant 0 : index
    %25 = vector.load %arg5[%c0_10, %c0_11] : memref<32x96xbf16, #tpu.memory_space<vmem>>, vector<32x96xbf16>
    %cst_12 = arith.constant dense<0.000000e+00> : vector<8x96xf32>
    %26 = tpu.matmul %24, %25, %cst_12 {dimension_numbers = #tpu.dot_dimension_numbers<[1], [0], [0], [1], [0, 0, 1, 1], [], []>} : vector<8x32xbf16>, vector<32x96xbf16>, vector<8x96xf32> -> vector<8x96xf32>
    %c0_13 = arith.constant 0 : index
    %c0_14 = arith.constant 0 : index
    %27 = vector.load %arg6[%c0_13, %c0_14] : memref<1x96xf32, #tpu.memory_space<vmem>>, vector<1x96xf32>
    %28 = vector.broadcast %27 : vector<1x96xf32> to vector<8x96xf32>
    %29 = arith.addf %26, %28 : vector<8x96xf32>
    %30 = vector.extract_strided_slice %29 {offsets = [0, 0], sizes = [8, 32], strides = [1, 1]} : vector<8x96xf32> to vector<8x32xf32>
    %31 = vector.extract_strided_slice %29 {offsets = [0, 32], sizes = [8, 32], strides = [1, 1]} : vector<8x96xf32> to vector<8x32xf32>
    %32 = vector.extract_strided_slice %29 {offsets = [0, 64], sizes = [8, 32], strides = [1, 1]} : vector<8x96xf32> to vector<8x32xf32>
    %c0_15 = arith.constant 0 : index
    %c0_16 = arith.constant 0 : index
    %c0_17 = arith.constant 0 : index
    %33 = vector.load %arg2[%c0_15, %c0_16, %c0_17] : memref<1x8x8xf32, #tpu.memory_space<vmem>>, vector<1x8x8xf32>
    %34 = vector.shape_cast %33 : vector<1x8x8xf32> to vector<8x8xf32>
    %35 = vector.extract_strided_slice %30 {offsets = [0, 0], sizes = [8, 8], strides = [1, 1]} : vector<8x32xf32> to vector<8x8xf32>
    %36 = arith.truncf %35 : vector<8x8xf32> to vector<8x8xbf16>
    %37 = vector.extract_strided_slice %31 {offsets = [0, 0], sizes = [8, 8], strides = [1, 1]} : vector<8x32xf32> to vector<8x8xf32>
    %38 = arith.truncf %37 : vector<8x8xf32> to vector<8x8xbf16>
    %39 = vector.extract_strided_slice %32 {offsets = [0, 0], sizes = [8, 8], strides = [1, 1]} : vector<8x32xf32> to vector<8x8xf32>
    %40 = arith.truncf %39 : vector<8x8xf32> to vector<8x8xbf16>
    %41 = tpu.transpose %38, [1, 0] : vector<8x8xbf16> -> vector<8x8xbf16>
    %cst_18 = arith.constant dense<0.000000e+00> : vector<8x8xf32>
    %42 = tpu.matmul %36, %41, %cst_18 {dimension_numbers = #tpu.dot_dimension_numbers<[1], [0], [0], [1], [0, 0, 1, 1], [], []>} : vector<8x8xbf16>, vector<8x8xbf16>, vector<8x8xf32> -> vector<8x8xf32>
    %cst_19 = arith.constant 0.353553385 : f32
    %43 = vector.broadcast %cst_19 : f32 to vector<8x8xf32>
    %44 = arith.mulf %42, %43 : vector<8x8xf32>
    %cst_20 = arith.constant 0.000000e+00 : f32
    %45 = vector.broadcast %cst_20 : f32 to vector<8x8xf32>
    %46 = arith.cmpf oeq, %34, %45 : vector<8x8xf32>
    %cst_21 = arith.constant -1.000000e+09 : f32
    %47 = vector.broadcast %cst_21 : f32 to vector<8x8xf32>
    %48 = arith.select %46, %47, %44 : vector<8x8xi1>, vector<8x8xf32>
    %cst_22 = arith.constant dense<0xFF800000> : vector<8xf32>
    %49 = vector.multi_reduction <maximumf>, %48, %cst_22 [1] : vector<8x8xf32> to vector<8xf32>
    %50 = vector.shape_cast %49 : vector<8xf32> to vector<8x1xf32>
    %51 = vector.broadcast %50 : vector<8x1xf32> to vector<8x8xf32>
    %52 = arith.subf %48, %51 : vector<8x8xf32>
    %53 = math.exp %52 : vector<8x8xf32>
    %cst_23 = arith.constant dense<0.000000e+00> : vector<8xf32>
    %54 = vector.multi_reduction <add>, %53, %cst_23 [1] : vector<8x8xf32> to vector<8xf32>
    %55 = vector.shape_cast %54 : vector<8xf32> to vector<8x1xf32>
    %56 = arith.truncf %53 : vector<8x8xf32> to vector<8x8xbf16>
    %cst_24 = arith.constant dense<0.000000e+00> : vector<8x8xf32>
    %57 = tpu.matmul %56, %40, %cst_24 {dimension_numbers = #tpu.dot_dimension_numbers<[1], [0], [0], [1], [0, 0, 1, 1], [], []>} : vector<8x8xbf16>, vector<8x8xbf16>, vector<8x8xf32> -> vector<8x8xf32>
    %58 = tpu.reciprocal %55 {approx = true} : vector<8x1xf32> -> vector<8x1xf32>
    %59 = vector.broadcast %58 : vector<8x1xf32> to vector<8x8xf32>
    %60 = arith.mulf %57, %59 : vector<8x8xf32>
    %61 = vector.extract_strided_slice %30 {offsets = [0, 8], sizes = [8, 8], strides = [1, 1]} : vector<8x32xf32> to vector<8x8xf32>
    %62 = arith.truncf %61 : vector<8x8xf32> to vector<8x8xbf16>
    %63 = vector.extract_strided_slice %31 {offsets = [0, 8], sizes = [8, 8], strides = [1, 1]} : vector<8x32xf32> to vector<8x8xf32>
    %64 = arith.truncf %63 : vector<8x8xf32> to vector<8x8xbf16>
    %65 = vector.extract_strided_slice %32 {offsets = [0, 8], sizes = [8, 8], strides = [1, 1]} : vector<8x32xf32> to vector<8x8xf32>
    %66 = arith.truncf %65 : vector<8x8xf32> to vector<8x8xbf16>
    %67 = tpu.transpose %64, [1, 0] : vector<8x8xbf16> -> vector<8x8xbf16>
    %cst_25 = arith.constant dense<0.000000e+00> : vector<8x8xf32>
    %68 = tpu.matmul %62, %67, %cst_25 {dimension_numbers = #tpu.dot_dimension_numbers<[1], [0], [0], [1], [0, 0, 1, 1], [], []>} : vector<8x8xbf16>, vector<8x8xbf16>, vector<8x8xf32> -> vector<8x8xf32>
    %cst_26 = arith.constant 0.353553385 : f32
    %69 = vector.broadcast %cst_26 : f32 to vector<8x8xf32>
    %70 = arith.mulf %68, %69 : vector<8x8xf32>
    %cst_27 = arith.constant 0.000000e+00 : f32
    %71 = vector.broadcast %cst_27 : f32 to vector<8x8xf32>
    %72 = arith.cmpf oeq, %34, %71 : vector<8x8xf32>
    %cst_28 = arith.constant -1.000000e+09 : f32
    %73 = vector.broadcast %cst_28 : f32 to vector<8x8xf32>
    %74 = arith.select %72, %73, %70 : vector<8x8xi1>, vector<8x8xf32>
    %cst_29 = arith.constant dense<0xFF800000> : vector<8xf32>
    %75 = vector.multi_reduction <maximumf>, %74, %cst_29 [1] : vector<8x8xf32> to vector<8xf32>
    %76 = vector.shape_cast %75 : vector<8xf32> to vector<8x1xf32>
    %77 = vector.broadcast %76 : vector<8x1xf32> to vector<8x8xf32>
    %78 = arith.subf %74, %77 : vector<8x8xf32>
    %79 = math.exp %78 : vector<8x8xf32>
    %cst_30 = arith.constant dense<0.000000e+00> : vector<8xf32>
    %80 = vector.multi_reduction <add>, %79, %cst_30 [1] : vector<8x8xf32> to vector<8xf32>
    %81 = vector.shape_cast %80 : vector<8xf32> to vector<8x1xf32>
    %82 = arith.truncf %79 : vector<8x8xf32> to vector<8x8xbf16>
    %cst_31 = arith.constant dense<0.000000e+00> : vector<8x8xf32>
    %83 = tpu.matmul %82, %66, %cst_31 {dimension_numbers = #tpu.dot_dimension_numbers<[1], [0], [0], [1], [0, 0, 1, 1], [], []>} : vector<8x8xbf16>, vector<8x8xbf16>, vector<8x8xf32> -> vector<8x8xf32>
    %84 = tpu.reciprocal %81 {approx = true} : vector<8x1xf32> -> vector<8x1xf32>
    %85 = vector.broadcast %84 : vector<8x1xf32> to vector<8x8xf32>
    %86 = arith.mulf %83, %85 : vector<8x8xf32>
    %87 = vector.extract_strided_slice %30 {offsets = [0, 16], sizes = [8, 8], strides = [1, 1]} : vector<8x32xf32> to vector<8x8xf32>
    %88 = arith.truncf %87 : vector<8x8xf32> to vector<8x8xbf16>
    %89 = vector.extract_strided_slice %31 {offsets = [0, 16], sizes = [8, 8], strides = [1, 1]} : vector<8x32xf32> to vector<8x8xf32>
    %90 = arith.truncf %89 : vector<8x8xf32> to vector<8x8xbf16>
    %91 = vector.extract_strided_slice %32 {offsets = [0, 16], sizes = [8, 8], strides = [1, 1]} : vector<8x32xf32> to vector<8x8xf32>
    %92 = arith.truncf %91 : vector<8x8xf32> to vector<8x8xbf16>
    %93 = tpu.transpose %90, [1, 0] : vector<8x8xbf16> -> vector<8x8xbf16>
    %cst_32 = arith.constant dense<0.000000e+00> : vector<8x8xf32>
    %94 = tpu.matmul %88, %93, %cst_32 {dimension_numbers = #tpu.dot_dimension_numbers<[1], [0], [0], [1], [0, 0, 1, 1], [], []>} : vector<8x8xbf16>, vector<8x8xbf16>, vector<8x8xf32> -> vector<8x8xf32>
    %cst_33 = arith.constant 0.353553385 : f32
    %95 = vector.broadcast %cst_33 : f32 to vector<8x8xf32>
    %96 = arith.mulf %94, %95 : vector<8x8xf32>
    %cst_34 = arith.constant 0.000000e+00 : f32
    %97 = vector.broadcast %cst_34 : f32 to vector<8x8xf32>
    %98 = arith.cmpf oeq, %34, %97 : vector<8x8xf32>
    %cst_35 = arith.constant -1.000000e+09 : f32
    %99 = vector.broadcast %cst_35 : f32 to vector<8x8xf32>
    %100 = arith.select %98, %99, %96 : vector<8x8xi1>, vector<8x8xf32>
    %cst_36 = arith.constant dense<0xFF800000> : vector<8xf32>
    %101 = vector.multi_reduction <maximumf>, %100, %cst_36 [1] : vector<8x8xf32> to vector<8xf32>
    %102 = vector.shape_cast %101 : vector<8xf32> to vector<8x1xf32>
    %103 = vector.broadcast %102 : vector<8x1xf32> to vector<8x8xf32>
    %104 = arith.subf %100, %103 : vector<8x8xf32>
    %105 = math.exp %104 : vector<8x8xf32>
    %cst_37 = arith.constant dense<0.000000e+00> : vector<8xf32>
    %106 = vector.multi_reduction <add>, %105, %cst_37 [1] : vector<8x8xf32> to vector<8xf32>
    %107 = vector.shape_cast %106 : vector<8xf32> to vector<8x1xf32>
    %108 = arith.truncf %105 : vector<8x8xf32> to vector<8x8xbf16>
    %cst_38 = arith.constant dense<0.000000e+00> : vector<8x8xf32>
    %109 = tpu.matmul %108, %92, %cst_38 {dimension_numbers = #tpu.dot_dimension_numbers<[1], [0], [0], [1], [0, 0, 1, 1], [], []>} : vector<8x8xbf16>, vector<8x8xbf16>, vector<8x8xf32> -> vector<8x8xf32>
    %110 = tpu.reciprocal %107 {approx = true} : vector<8x1xf32> -> vector<8x1xf32>
    %111 = vector.broadcast %110 : vector<8x1xf32> to vector<8x8xf32>
    %112 = arith.mulf %109, %111 : vector<8x8xf32>
    %113 = vector.extract_strided_slice %30 {offsets = [0, 24], sizes = [8, 8], strides = [1, 1]} : vector<8x32xf32> to vector<8x8xf32>
    %114 = arith.truncf %113 : vector<8x8xf32> to vector<8x8xbf16>
    %115 = vector.extract_strided_slice %31 {offsets = [0, 24], sizes = [8, 8], strides = [1, 1]} : vector<8x32xf32> to vector<8x8xf32>
    %116 = arith.truncf %115 : vector<8x8xf32> to vector<8x8xbf16>
    %117 = vector.extract_strided_slice %32 {offsets = [0, 24], sizes = [8, 8], strides = [1, 1]} : vector<8x32xf32> to vector<8x8xf32>
    %118 = arith.truncf %117 : vector<8x8xf32> to vector<8x8xbf16>
    %119 = tpu.transpose %116, [1, 0] : vector<8x8xbf16> -> vector<8x8xbf16>
    %cst_39 = arith.constant dense<0.000000e+00> : vector<8x8xf32>
    %120 = tpu.matmul %114, %119, %cst_39 {dimension_numbers = #tpu.dot_dimension_numbers<[1], [0], [0], [1], [0, 0, 1, 1], [], []>} : vector<8x8xbf16>, vector<8x8xbf16>, vector<8x8xf32> -> vector<8x8xf32>
    %cst_40 = arith.constant 0.353553385 : f32
    %121 = vector.broadcast %cst_40 : f32 to vector<8x8xf32>
    %122 = arith.mulf %120, %121 : vector<8x8xf32>
    %cst_41 = arith.constant 0.000000e+00 : f32
    %123 = vector.broadcast %cst_41 : f32 to vector<8x8xf32>
    %124 = arith.cmpf oeq, %34, %123 : vector<8x8xf32>
    %cst_42 = arith.constant -1.000000e+09 : f32
    %125 = vector.broadcast %cst_42 : f32 to vector<8x8xf32>
    %126 = arith.select %124, %125, %122 : vector<8x8xi1>, vector<8x8xf32>
    %cst_43 = arith.constant dense<0xFF800000> : vector<8xf32>
    %127 = vector.multi_reduction <maximumf>, %126, %cst_43 [1] : vector<8x8xf32> to vector<8xf32>
    %128 = vector.shape_cast %127 : vector<8xf32> to vector<8x1xf32>
    %129 = vector.broadcast %128 : vector<8x1xf32> to vector<8x8xf32>
    %130 = arith.subf %126, %129 : vector<8x8xf32>
    %131 = math.exp %130 : vector<8x8xf32>
    %cst_44 = arith.constant dense<0.000000e+00> : vector<8xf32>
    %132 = vector.multi_reduction <add>, %131, %cst_44 [1] : vector<8x8xf32> to vector<8xf32>
    %133 = vector.shape_cast %132 : vector<8xf32> to vector<8x1xf32>
    %134 = arith.truncf %131 : vector<8x8xf32> to vector<8x8xbf16>
    %cst_45 = arith.constant dense<0.000000e+00> : vector<8x8xf32>
    %135 = tpu.matmul %134, %118, %cst_45 {dimension_numbers = #tpu.dot_dimension_numbers<[1], [0], [0], [1], [0, 0, 1, 1], [], []>} : vector<8x8xbf16>, vector<8x8xbf16>, vector<8x8xf32> -> vector<8x8xf32>
    %136 = tpu.reciprocal %133 {approx = true} : vector<8x1xf32> -> vector<8x1xf32>
    %137 = vector.broadcast %136 : vector<8x1xf32> to vector<8x8xf32>
    %138 = arith.mulf %135, %137 : vector<8x8xf32>
    %139 = tpu.concatenate %60, %86, %112, %138 in 1 : vector<8x8xf32>, vector<8x8xf32>, vector<8x8xf32>, vector<8x8xf32> -> vector<8x32xf32>
    %140 = arith.truncf %139 : vector<8x32xf32> to vector<8x32xbf16>
    %c0_46 = arith.constant 0 : index
    %c0_47 = arith.constant 0 : index
    %141 = vector.load %arg7[%c0_46, %c0_47] : memref<32x32xbf16, #tpu.memory_space<vmem>>, vector<32x32xbf16>
    %cst_48 = arith.constant dense<0.000000e+00> : vector<8x32xf32>
    %142 = tpu.matmul %140, %141, %cst_48 {dimension_numbers = #tpu.dot_dimension_numbers<[1], [0], [0], [1], [0, 0, 1, 1], [], []>} : vector<8x32xbf16>, vector<32x32xbf16>, vector<8x32xf32> -> vector<8x32xf32>
    %c0_49 = arith.constant 0 : index
    %c0_50 = arith.constant 0 : index
    %143 = vector.load %arg8[%c0_49, %c0_50] : memref<1x32xf32, #tpu.memory_space<vmem>>, vector<1x32xf32>
    %144 = vector.broadcast %143 : vector<1x32xf32> to vector<8x32xf32>
    %145 = arith.addf %142, %144 : vector<8x32xf32>
    %146 = arith.addf %145, %1 : vector<8x32xf32>
    %c0_51 = arith.constant 0 : index
    %c0_52 = arith.constant 0 : index
    %c0_53 = arith.constant 0 : index
    %147 = vector.load %arg9[%c0_51, %c0_52, %c0_53] : memref<1x8x32xf32, #tpu.memory_space<vmem>>, vector<1x8x32xf32>
    %148 = vector.shape_cast %147 : vector<1x8x32xf32> to vector<8x32xf32>
    %149 = vector.shape_cast %146 : vector<8x32xf32> to vector<1x8x32xf32>
    tpu.vector_store %arg9[%c0_51, %c0_52, %c0_53], %149 {strides = array<i32>} : memref<1x8x32xf32, #tpu.memory_space<vmem>>, vector<1x8x32xf32>,
    return
  }
  func.func @transform_0(%arg0: i32) -> (i32, i32, i32) {
    %c0_i32 = arith.constant 0 : i32
    %c0_i32_0 = arith.constant 0 : i32
    %c0_i32_1 = arith.constant 0 : i32
    return %arg0, %c0_i32, %c0_i32_0 : i32, i32, i32
  }
  func.func @transform_1(%arg0: i32) -> (i32, i32, i32) {
    %c0_i32 = arith.constant 0 : i32
    %c0_i32_0 = arith.constant 0 : i32
    %c0_i32_1 = arith.constant 0 : i32
    return %arg0, %c0_i32, %c0_i32_0 : i32, i32, i32
  }
  func.func @transform_2(%arg0: i32) -> (i32, i32) {
    %c0_i32 = arith.constant 0 : i32
    %c0_i32_0 = arith.constant 0 : i32
    %c0_i32_1 = arith.constant 0 : i32
    return %c0_i32, %c0_i32_0 : i32, i32
  }
  func.func @transform_3(%arg0: i32) -> (i32, i32) {
    %c0_i32 = arith.constant 0 : i32
    %c0_i32_0 = arith.constant 0 : i32
    %c0_i32_1 = arith.constant 0 : i32
    return %c0_i32, %c0_i32_0 : i32, i32
  }
  func.func @transform_4(%arg0: i32) -> (i32, i32) {
    %c0_i32 = arith.constant 0 : i32
    %c0_i32_0 = arith.constant 0 : i32
    %c0_i32_1 = arith.constant 0 : i32
    return %c0_i32, %c0_i32_0 : i32, i32
  }
  func.func @transform_5(%arg0: i32) -> (i32, i32) {
    %c0_i32 = arith.constant 0 : i32
    %c0_i32_0 = arith.constant 0 : i32
    %c0_i32_1 = arith.constant 0 : i32
    return %c0_i32, %c0_i32_0 : i32, i32
  }
  func.func @transform_6(%arg0: i32) -> (i32, i32) {
    %c0_i32 = arith.constant 0 : i32
    %c0_i32_0 = arith.constant 0 : i32
    %c0_i32_1 = arith.constant 0 : i32
    return %c0_i32, %c0_i32_0 : i32, i32
  }
  func.func @transform_7(%arg0: i32) -> (i32, i32) {
    %c0_i32 = arith.constant 0 : i32
    %c0_i32_0 = arith.constant 0 : i32
    %c0_i32_1 = arith.constant 0 : i32
    return %c0_i32, %c0_i32_0 : i32, i32
  }
  func.func @transform_8(%arg0: i32) -> (i32, i32, i32) {
    %c0_i32 = arith.constant 0 : i32
    %c0_i32_0 = arith.constant 0 : i32
    %c0_i32_1 = arith.constant 0 : i32
    return %arg0, %c0_i32, %c0_i32_0 : i32, i32, i32
  }
}

module attributes {stable_mosaic.version = 11 : i64} {
  func.func @_src_attn_sublayer_kernel(%arg0: i32, %arg1: memref<1x8x32xf32, #tpu.memory_space<vmem>>, %arg2: memref<1x8x32xf32, #tpu.memory_space<vmem>>, %arg3: memref<1x8x8xf32, #tpu.memory_space<vmem>>, %arg4: memref<1x32xf32, #tpu.memory_space<vmem>>, %arg5: memref<1x32xf32, #tpu.memory_space<vmem>>, %arg6: memref<32x32xbf16, #tpu.memory_space<vmem>>, %arg7: memref<1x32xf32, #tpu.memory_space<vmem>>, %arg8: memref<32x64xbf16, #tpu.memory_space<vmem>>, %arg9: memref<1x64xf32, #tpu.memory_space<vmem>>, %arg10: memref<32x32xbf16, #tpu.memory_space<vmem>>, %arg11: memref<1x32xf32, #tpu.memory_space<vmem>>, %arg12: memref<1x8x32xf32, #tpu.memory_space<vmem>>) attributes {dimension_semantics = [#tpu.dimension_semantics<parallel>], iteration_bounds = array<i64: 2>, scalar_prefetch = 0 : i64, scratch_operands = 0 : i64, tpu.core_type = #tpu.core_type<tc>, window_params = [{transform_indices = @transform_0, window_bounds = array<i64: 1, 8, 32>}, {transform_indices = @transform_1, window_bounds = array<i64: 1, 8, 32>}, {transform_indices = @transform_2, window_bounds = array<i64: 1, 8, 8>}, {pipeline_mode = #tpu.pipeline_mode<synchronous>, transform_indices = @transform_3, window_bounds = array<i64: 1, 32>}, {pipeline_mode = #tpu.pipeline_mode<synchronous>, transform_indices = @transform_4, window_bounds = array<i64: 1, 32>}, {pipeline_mode = #tpu.pipeline_mode<synchronous>, transform_indices = @transform_5, window_bounds = array<i64: 32, 32>}, {pipeline_mode = #tpu.pipeline_mode<synchronous>, transform_indices = @transform_6, window_bounds = array<i64: 1, 32>}, {pipeline_mode = #tpu.pipeline_mode<synchronous>, transform_indices = @transform_7, window_bounds = array<i64: 32, 64>}, {pipeline_mode = #tpu.pipeline_mode<synchronous>, transform_indices = @transform_8, window_bounds = array<i64: 1, 64>}, {pipeline_mode = #tpu.pipeline_mode<synchronous>, transform_indices = @transform_9, window_bounds = array<i64: 32, 32>}, {pipeline_mode = #tpu.pipeline_mode<synchronous>, transform_indices = @transform_10, window_bounds = array<i64: 1, 32>}, {transform_indices = @transform_11, window_bounds = array<i64: 1, 8, 32>}]} {
    %c0 = arith.constant 0 : index
    %c0_0 = arith.constant 0 : index
    %c0_1 = arith.constant 0 : index
    %0 = vector.load %arg1[%c0, %c0_0, %c0_1] : memref<1x8x32xf32, #tpu.memory_space<vmem>>, vector<1x8x32xf32>
    %1 = vector.shape_cast %0 : vector<1x8x32xf32> to vector<8x32xf32>
    %c0_2 = arith.constant 0 : index
    %c0_3 = arith.constant 0 : index
    %2 = vector.load %arg4[%c0_2, %c0_3] : memref<1x32xf32, #tpu.memory_space<vmem>>, vector<1x32xf32>
    %c0_4 = arith.constant 0 : index
    %c0_5 = arith.constant 0 : index
    %3 = vector.load %arg5[%c0_4, %c0_5] : memref<1x32xf32, #tpu.memory_space<vmem>>, vector<1x32xf32>
    %cst = arith.constant dense<0.000000e+00> : vector<8xf32>
    %4 = vector.multi_reduction <add>, %1, %cst [1] : vector<8x32xf32> to vector<8xf32>
    %5 = vector.shape_cast %4 : vector<8xf32> to vector<8x1xf32>
    %cst_6 = arith.constant 3.200000e+01 : f32
    %6 = vector.broadcast %cst_6 : f32 to vector<8x1xf32>
    %7 = arith.divf %5, %6 : vector<8x1xf32>
    %8 = vector.broadcast %7 : vector<8x1xf32> to vector<8x32xf32>
    %9 = arith.subf %1, %8 : vector<8x32xf32>
    %10 = arith.mulf %9, %9 : vector<8x32xf32>
    %cst_7 = arith.constant dense<0.000000e+00> : vector<8xf32>
    %11 = vector.multi_reduction <add>, %10, %cst_7 [1] : vector<8x32xf32> to vector<8xf32>
    %12 = vector.shape_cast %11 : vector<8xf32> to vector<8x1xf32>
    %cst_8 = arith.constant 3.100000e+01 : f32
    %13 = vector.broadcast %cst_8 : f32 to vector<8x1xf32>
    %14 = arith.divf %12, %13 : vector<8x1xf32>
    %15 = vector.broadcast %2 : vector<1x32xf32> to vector<8x32xf32>
    %16 = arith.mulf %15, %9 : vector<8x32xf32>
    %17 = math.sqrt %14 : vector<8x1xf32>
    %cst_9 = arith.constant 9.99999997E-7 : f32
    %18 = vector.broadcast %cst_9 : f32 to vector<8x1xf32>
    %19 = arith.addf %17, %18 : vector<8x1xf32>
    %20 = vector.broadcast %19 : vector<8x1xf32> to vector<8x32xf32>
    %21 = arith.divf %16, %20 : vector<8x32xf32>
    %22 = vector.broadcast %3 : vector<1x32xf32> to vector<8x32xf32>
    %23 = arith.addf %21, %22 : vector<8x32xf32>
    %24 = arith.truncf %23 : vector<8x32xf32> to vector<8x32xbf16>
    %c0_10 = arith.constant 0 : index
    %c0_11 = arith.constant 0 : index
    %25 = vector.load %arg6[%c0_10, %c0_11] : memref<32x32xbf16, #tpu.memory_space<vmem>>, vector<32x32xbf16>
    %cst_12 = arith.constant dense<0.000000e+00> : vector<8x32xf32>
    %26 = tpu.matmul %24, %25, %cst_12 {dimension_numbers = #tpu.dot_dimension_numbers<[1], [0], [0], [1], [0, 0, 1, 1], [], []>} : vector<8x32xbf16>, vector<32x32xbf16>, vector<8x32xf32> -> vector<8x32xf32>
    %c0_13 = arith.constant 0 : index
    %c0_14 = arith.constant 0 : index
    %27 = vector.load %arg7[%c0_13, %c0_14] : memref<1x32xf32, #tpu.memory_space<vmem>>, vector<1x32xf32>
    %28 = vector.broadcast %27 : vector<1x32xf32> to vector<8x32xf32>
    %29 = arith.addf %26, %28 : vector<8x32xf32>
    %c0_15 = arith.constant 0 : index
    %c0_16 = arith.constant 0 : index
    %c0_17 = arith.constant 0 : index
    %30 = vector.load %arg2[%c0_15, %c0_16, %c0_17] : memref<1x8x32xf32, #tpu.memory_space<vmem>>, vector<1x8x32xf32>
    %31 = vector.shape_cast %30 : vector<1x8x32xf32> to vector<8x32xf32>
    %32 = arith.truncf %31 : vector<8x32xf32> to vector<8x32xbf16>
    %c0_18 = arith.constant 0 : index
    %c0_19 = arith.constant 0 : index
    %33 = vector.load %arg8[%c0_18, %c0_19] : memref<32x64xbf16, #tpu.memory_space<vmem>>, vector<32x64xbf16>
    %cst_20 = arith.constant dense<0.000000e+00> : vector<8x64xf32>
    %34 = tpu.matmul %32, %33, %cst_20 {dimension_numbers = #tpu.dot_dimension_numbers<[1], [0], [0], [1], [0, 0, 1, 1], [], []>} : vector<8x32xbf16>, vector<32x64xbf16>, vector<8x64xf32> -> vector<8x64xf32>
    %c0_21 = arith.constant 0 : index
    %c0_22 = arith.constant 0 : index
    %35 = vector.load %arg9[%c0_21, %c0_22] : memref<1x64xf32, #tpu.memory_space<vmem>>, vector<1x64xf32>
    %36 = vector.broadcast %35 : vector<1x64xf32> to vector<8x64xf32>
    %37 = arith.addf %34, %36 : vector<8x64xf32>
    %38 = vector.extract_strided_slice %37 {offsets = [0, 0], sizes = [8, 32], strides = [1, 1]} : vector<8x64xf32> to vector<8x32xf32>
    %39 = vector.extract_strided_slice %37 {offsets = [0, 32], sizes = [8, 32], strides = [1, 1]} : vector<8x64xf32> to vector<8x32xf32>
    %c0_23 = arith.constant 0 : index
    %c0_24 = arith.constant 0 : index
    %c0_25 = arith.constant 0 : index
    %40 = vector.load %arg3[%c0_23, %c0_24, %c0_25] : memref<1x8x8xf32, #tpu.memory_space<vmem>>, vector<1x8x8xf32>
    %41 = vector.shape_cast %40 : vector<1x8x8xf32> to vector<8x8xf32>
    %42 = vector.extract_strided_slice %29 {offsets = [0, 0], sizes = [8, 8], strides = [1, 1]} : vector<8x32xf32> to vector<8x8xf32>
    %43 = arith.truncf %42 : vector<8x8xf32> to vector<8x8xbf16>
    %44 = vector.extract_strided_slice %38 {offsets = [0, 0], sizes = [8, 8], strides = [1, 1]} : vector<8x32xf32> to vector<8x8xf32>
    %45 = arith.truncf %44 : vector<8x8xf32> to vector<8x8xbf16>
    %46 = vector.extract_strided_slice %39 {offsets = [0, 0], sizes = [8, 8], strides = [1, 1]} : vector<8x32xf32> to vector<8x8xf32>
    %47 = arith.truncf %46 : vector<8x8xf32> to vector<8x8xbf16>
    %48 = tpu.transpose %45, [1, 0] : vector<8x8xbf16> -> vector<8x8xbf16>
    %cst_26 = arith.constant dense<0.000000e+00> : vector<8x8xf32>
    %49 = tpu.matmul %43, %48, %cst_26 {dimension_numbers = #tpu.dot_dimension_numbers<[1], [0], [0], [1], [0, 0, 1, 1], [], []>} : vector<8x8xbf16>, vector<8x8xbf16>, vector<8x8xf32> -> vector<8x8xf32>
    %cst_27 = arith.constant 0.353553385 : f32
    %50 = vector.broadcast %cst_27 : f32 to vector<8x8xf32>
    %51 = arith.mulf %49, %50 : vector<8x8xf32>
    %cst_28 = arith.constant 0.000000e+00 : f32
    %52 = vector.broadcast %cst_28 : f32 to vector<8x8xf32>
    %53 = arith.cmpf oeq, %41, %52 : vector<8x8xf32>
    %cst_29 = arith.constant -1.000000e+09 : f32
    %54 = vector.broadcast %cst_29 : f32 to vector<8x8xf32>
    %55 = arith.select %53, %54, %51 : vector<8x8xi1>, vector<8x8xf32>
    %cst_30 = arith.constant dense<0xFF800000> : vector<8xf32>
    %56 = vector.multi_reduction <maximumf>, %55, %cst_30 [1] : vector<8x8xf32> to vector<8xf32>
    %57 = vector.shape_cast %56 : vector<8xf32> to vector<8x1xf32>
    %58 = vector.broadcast %57 : vector<8x1xf32> to vector<8x8xf32>
    %59 = arith.subf %55, %58 : vector<8x8xf32>
    %60 = math.exp %59 : vector<8x8xf32>
    %cst_31 = arith.constant dense<0.000000e+00> : vector<8xf32>
    %61 = vector.multi_reduction <add>, %60, %cst_31 [1] : vector<8x8xf32> to vector<8xf32>
    %62 = vector.shape_cast %61 : vector<8xf32> to vector<8x1xf32>
    %63 = arith.truncf %60 : vector<8x8xf32> to vector<8x8xbf16>
    %cst_32 = arith.constant dense<0.000000e+00> : vector<8x8xf32>
    %64 = tpu.matmul %63, %47, %cst_32 {dimension_numbers = #tpu.dot_dimension_numbers<[1], [0], [0], [1], [0, 0, 1, 1], [], []>} : vector<8x8xbf16>, vector<8x8xbf16>, vector<8x8xf32> -> vector<8x8xf32>
    %65 = tpu.reciprocal %62 {approx = true} : vector<8x1xf32> -> vector<8x1xf32>
    %66 = vector.broadcast %65 : vector<8x1xf32> to vector<8x8xf32>
    %67 = arith.mulf %64, %66 : vector<8x8xf32>
    %68 = vector.extract_strided_slice %29 {offsets = [0, 8], sizes = [8, 8], strides = [1, 1]} : vector<8x32xf32> to vector<8x8xf32>
    %69 = arith.truncf %68 : vector<8x8xf32> to vector<8x8xbf16>
    %70 = vector.extract_strided_slice %38 {offsets = [0, 8], sizes = [8, 8], strides = [1, 1]} : vector<8x32xf32> to vector<8x8xf32>
    %71 = arith.truncf %70 : vector<8x8xf32> to vector<8x8xbf16>
    %72 = vector.extract_strided_slice %39 {offsets = [0, 8], sizes = [8, 8], strides = [1, 1]} : vector<8x32xf32> to vector<8x8xf32>
    %73 = arith.truncf %72 : vector<8x8xf32> to vector<8x8xbf16>
    %74 = tpu.transpose %71, [1, 0] : vector<8x8xbf16> -> vector<8x8xbf16>
    %cst_33 = arith.constant dense<0.000000e+00> : vector<8x8xf32>
    %75 = tpu.matmul %69, %74, %cst_33 {dimension_numbers = #tpu.dot_dimension_numbers<[1], [0], [0], [1], [0, 0, 1, 1], [], []>} : vector<8x8xbf16>, vector<8x8xbf16>, vector<8x8xf32> -> vector<8x8xf32>
    %cst_34 = arith.constant 0.353553385 : f32
    %76 = vector.broadcast %cst_34 : f32 to vector<8x8xf32>
    %77 = arith.mulf %75, %76 : vector<8x8xf32>
    %cst_35 = arith.constant 0.000000e+00 : f32
    %78 = vector.broadcast %cst_35 : f32 to vector<8x8xf32>
    %79 = arith.cmpf oeq, %41, %78 : vector<8x8xf32>
    %cst_36 = arith.constant -1.000000e+09 : f32
    %80 = vector.broadcast %cst_36 : f32 to vector<8x8xf32>
    %81 = arith.select %79, %80, %77 : vector<8x8xi1>, vector<8x8xf32>
    %cst_37 = arith.constant dense<0xFF800000> : vector<8xf32>
    %82 = vector.multi_reduction <maximumf>, %81, %cst_37 [1] : vector<8x8xf32> to vector<8xf32>
    %83 = vector.shape_cast %82 : vector<8xf32> to vector<8x1xf32>
    %84 = vector.broadcast %83 : vector<8x1xf32> to vector<8x8xf32>
    %85 = arith.subf %81, %84 : vector<8x8xf32>
    %86 = math.exp %85 : vector<8x8xf32>
    %cst_38 = arith.constant dense<0.000000e+00> : vector<8xf32>
    %87 = vector.multi_reduction <add>, %86, %cst_38 [1] : vector<8x8xf32> to vector<8xf32>
    %88 = vector.shape_cast %87 : vector<8xf32> to vector<8x1xf32>
    %89 = arith.truncf %86 : vector<8x8xf32> to vector<8x8xbf16>
    %cst_39 = arith.constant dense<0.000000e+00> : vector<8x8xf32>
    %90 = tpu.matmul %89, %73, %cst_39 {dimension_numbers = #tpu.dot_dimension_numbers<[1], [0], [0], [1], [0, 0, 1, 1], [], []>} : vector<8x8xbf16>, vector<8x8xbf16>, vector<8x8xf32> -> vector<8x8xf32>
    %91 = tpu.reciprocal %88 {approx = true} : vector<8x1xf32> -> vector<8x1xf32>
    %92 = vector.broadcast %91 : vector<8x1xf32> to vector<8x8xf32>
    %93 = arith.mulf %90, %92 : vector<8x8xf32>
    %94 = vector.extract_strided_slice %29 {offsets = [0, 16], sizes = [8, 8], strides = [1, 1]} : vector<8x32xf32> to vector<8x8xf32>
    %95 = arith.truncf %94 : vector<8x8xf32> to vector<8x8xbf16>
    %96 = vector.extract_strided_slice %38 {offsets = [0, 16], sizes = [8, 8], strides = [1, 1]} : vector<8x32xf32> to vector<8x8xf32>
    %97 = arith.truncf %96 : vector<8x8xf32> to vector<8x8xbf16>
    %98 = vector.extract_strided_slice %39 {offsets = [0, 16], sizes = [8, 8], strides = [1, 1]} : vector<8x32xf32> to vector<8x8xf32>
    %99 = arith.truncf %98 : vector<8x8xf32> to vector<8x8xbf16>
    %100 = tpu.transpose %97, [1, 0] : vector<8x8xbf16> -> vector<8x8xbf16>
    %cst_40 = arith.constant dense<0.000000e+00> : vector<8x8xf32>
    %101 = tpu.matmul %95, %100, %cst_40 {dimension_numbers = #tpu.dot_dimension_numbers<[1], [0], [0], [1], [0, 0, 1, 1], [], []>} : vector<8x8xbf16>, vector<8x8xbf16>, vector<8x8xf32> -> vector<8x8xf32>
    %cst_41 = arith.constant 0.353553385 : f32
    %102 = vector.broadcast %cst_41 : f32 to vector<8x8xf32>
    %103 = arith.mulf %101, %102 : vector<8x8xf32>
    %cst_42 = arith.constant 0.000000e+00 : f32
    %104 = vector.broadcast %cst_42 : f32 to vector<8x8xf32>
    %105 = arith.cmpf oeq, %41, %104 : vector<8x8xf32>
    %cst_43 = arith.constant -1.000000e+09 : f32
    %106 = vector.broadcast %cst_43 : f32 to vector<8x8xf32>
    %107 = arith.select %105, %106, %103 : vector<8x8xi1>, vector<8x8xf32>
    %cst_44 = arith.constant dense<0xFF800000> : vector<8xf32>
    %108 = vector.multi_reduction <maximumf>, %107, %cst_44 [1] : vector<8x8xf32> to vector<8xf32>
    %109 = vector.shape_cast %108 : vector<8xf32> to vector<8x1xf32>
    %110 = vector.broadcast %109 : vector<8x1xf32> to vector<8x8xf32>
    %111 = arith.subf %107, %110 : vector<8x8xf32>
    %112 = math.exp %111 : vector<8x8xf32>
    %cst_45 = arith.constant dense<0.000000e+00> : vector<8xf32>
    %113 = vector.multi_reduction <add>, %112, %cst_45 [1] : vector<8x8xf32> to vector<8xf32>
    %114 = vector.shape_cast %113 : vector<8xf32> to vector<8x1xf32>
    %115 = arith.truncf %112 : vector<8x8xf32> to vector<8x8xbf16>
    %cst_46 = arith.constant dense<0.000000e+00> : vector<8x8xf32>
    %116 = tpu.matmul %115, %99, %cst_46 {dimension_numbers = #tpu.dot_dimension_numbers<[1], [0], [0], [1], [0, 0, 1, 1], [], []>} : vector<8x8xbf16>, vector<8x8xbf16>, vector<8x8xf32> -> vector<8x8xf32>
    %117 = tpu.reciprocal %114 {approx = true} : vector<8x1xf32> -> vector<8x1xf32>
    %118 = vector.broadcast %117 : vector<8x1xf32> to vector<8x8xf32>
    %119 = arith.mulf %116, %118 : vector<8x8xf32>
    %120 = vector.extract_strided_slice %29 {offsets = [0, 24], sizes = [8, 8], strides = [1, 1]} : vector<8x32xf32> to vector<8x8xf32>
    %121 = arith.truncf %120 : vector<8x8xf32> to vector<8x8xbf16>
    %122 = vector.extract_strided_slice %38 {offsets = [0, 24], sizes = [8, 8], strides = [1, 1]} : vector<8x32xf32> to vector<8x8xf32>
    %123 = arith.truncf %122 : vector<8x8xf32> to vector<8x8xbf16>
    %124 = vector.extract_strided_slice %39 {offsets = [0, 24], sizes = [8, 8], strides = [1, 1]} : vector<8x32xf32> to vector<8x8xf32>
    %125 = arith.truncf %124 : vector<8x8xf32> to vector<8x8xbf16>
    %126 = tpu.transpose %123, [1, 0] : vector<8x8xbf16> -> vector<8x8xbf16>
    %cst_47 = arith.constant dense<0.000000e+00> : vector<8x8xf32>
    %127 = tpu.matmul %121, %126, %cst_47 {dimension_numbers = #tpu.dot_dimension_numbers<[1], [0], [0], [1], [0, 0, 1, 1], [], []>} : vector<8x8xbf16>, vector<8x8xbf16>, vector<8x8xf32> -> vector<8x8xf32>
    %cst_48 = arith.constant 0.353553385 : f32
    %128 = vector.broadcast %cst_48 : f32 to vector<8x8xf32>
    %129 = arith.mulf %127, %128 : vector<8x8xf32>
    %cst_49 = arith.constant 0.000000e+00 : f32
    %130 = vector.broadcast %cst_49 : f32 to vector<8x8xf32>
    %131 = arith.cmpf oeq, %41, %130 : vector<8x8xf32>
    %cst_50 = arith.constant -1.000000e+09 : f32
    %132 = vector.broadcast %cst_50 : f32 to vector<8x8xf32>
    %133 = arith.select %131, %132, %129 : vector<8x8xi1>, vector<8x8xf32>
    %cst_51 = arith.constant dense<0xFF800000> : vector<8xf32>
    %134 = vector.multi_reduction <maximumf>, %133, %cst_51 [1] : vector<8x8xf32> to vector<8xf32>
    %135 = vector.shape_cast %134 : vector<8xf32> to vector<8x1xf32>
    %136 = vector.broadcast %135 : vector<8x1xf32> to vector<8x8xf32>
    %137 = arith.subf %133, %136 : vector<8x8xf32>
    %138 = math.exp %137 : vector<8x8xf32>
    %cst_52 = arith.constant dense<0.000000e+00> : vector<8xf32>
    %139 = vector.multi_reduction <add>, %138, %cst_52 [1] : vector<8x8xf32> to vector<8xf32>
    %140 = vector.shape_cast %139 : vector<8xf32> to vector<8x1xf32>
    %141 = arith.truncf %138 : vector<8x8xf32> to vector<8x8xbf16>
    %cst_53 = arith.constant dense<0.000000e+00> : vector<8x8xf32>
    %142 = tpu.matmul %141, %125, %cst_53 {dimension_numbers = #tpu.dot_dimension_numbers<[1], [0], [0], [1], [0, 0, 1, 1], [], []>} : vector<8x8xbf16>, vector<8x8xbf16>, vector<8x8xf32> -> vector<8x8xf32>
    %143 = tpu.reciprocal %140 {approx = true} : vector<8x1xf32> -> vector<8x1xf32>
    %144 = vector.broadcast %143 : vector<8x1xf32> to vector<8x8xf32>
    %145 = arith.mulf %142, %144 : vector<8x8xf32>
    %146 = tpu.concatenate %67, %93, %119, %145 in 1 : vector<8x8xf32>, vector<8x8xf32>, vector<8x8xf32>, vector<8x8xf32> -> vector<8x32xf32>
    %147 = arith.truncf %146 : vector<8x32xf32> to vector<8x32xbf16>
    %c0_54 = arith.constant 0 : index
    %c0_55 = arith.constant 0 : index
    %148 = vector.load %arg10[%c0_54, %c0_55] : memref<32x32xbf16, #tpu.memory_space<vmem>>, vector<32x32xbf16>
    %cst_56 = arith.constant dense<0.000000e+00> : vector<8x32xf32>
    %149 = tpu.matmul %147, %148, %cst_56 {dimension_numbers = #tpu.dot_dimension_numbers<[1], [0], [0], [1], [0, 0, 1, 1], [], []>} : vector<8x32xbf16>, vector<32x32xbf16>, vector<8x32xf32> -> vector<8x32xf32>
    %c0_57 = arith.constant 0 : index
    %c0_58 = arith.constant 0 : index
    %150 = vector.load %arg11[%c0_57, %c0_58] : memref<1x32xf32, #tpu.memory_space<vmem>>, vector<1x32xf32>
    %151 = vector.broadcast %150 : vector<1x32xf32> to vector<8x32xf32>
    %152 = arith.addf %149, %151 : vector<8x32xf32>
    %153 = arith.addf %152, %1 : vector<8x32xf32>
    %c0_59 = arith.constant 0 : index
    %c0_60 = arith.constant 0 : index
    %c0_61 = arith.constant 0 : index
    %154 = vector.load %arg12[%c0_59, %c0_60, %c0_61] : memref<1x8x32xf32, #tpu.memory_space<vmem>>, vector<1x8x32xf32>
    %155 = vector.shape_cast %154 : vector<1x8x32xf32> to vector<8x32xf32>
    %156 = vector.shape_cast %153 : vector<8x32xf32> to vector<1x8x32xf32>
    tpu.vector_store %arg12[%c0_59, %c0_60, %c0_61], %156 {strides = array<i32>} : memref<1x8x32xf32, #tpu.memory_space<vmem>>, vector<1x8x32xf32>,
    return
  }
  func.func @transform_0(%arg0: i32) -> (i32, i32, i32) {
    %c0_i32 = arith.constant 0 : i32
    %c0_i32_0 = arith.constant 0 : i32
    %c0_i32_1 = arith.constant 0 : i32
    return %arg0, %c0_i32, %c0_i32_0 : i32, i32, i32
  }
  func.func @transform_1(%arg0: i32) -> (i32, i32, i32) {
    %c0_i32 = arith.constant 0 : i32
    %c0_i32_0 = arith.constant 0 : i32
    %c0_i32_1 = arith.constant 0 : i32
    return %arg0, %c0_i32, %c0_i32_0 : i32, i32, i32
  }
  func.func @transform_2(%arg0: i32) -> (i32, i32, i32) {
    %c0_i32 = arith.constant 0 : i32
    %c0_i32_0 = arith.constant 0 : i32
    %c0_i32_1 = arith.constant 0 : i32
    return %arg0, %c0_i32, %c0_i32_0 : i32, i32, i32
  }
  func.func @transform_3(%arg0: i32) -> (i32, i32) {
    %c0_i32 = arith.constant 0 : i32
    %c0_i32_0 = arith.constant 0 : i32
    %c0_i32_1 = arith.constant 0 : i32
    return %c0_i32, %c0_i32_0 : i32, i32
  }
  func.func @transform_4(%arg0: i32) -> (i32, i32) {
    %c0_i32 = arith.constant 0 : i32
    %c0_i32_0 = arith.constant 0 : i32
    %c0_i32_1 = arith.constant 0 : i32
    return %c0_i32, %c0_i32_0 : i32, i32
  }
  func.func @transform_5(%arg0: i32) -> (i32, i32) {
    %c0_i32 = arith.constant 0 : i32
    %c0_i32_0 = arith.constant 0 : i32
    %c0_i32_1 = arith.constant 0 : i32
    return %c0_i32, %c0_i32_0 : i32, i32
  }
  func.func @transform_6(%arg0: i32) -> (i32, i32) {
    %c0_i32 = arith.constant 0 : i32
    %c0_i32_0 = arith.constant 0 : i32
    %c0_i32_1 = arith.constant 0 : i32
    return %c0_i32, %c0_i32_0 : i32, i32
  }
  func.func @transform_7(%arg0: i32) -> (i32, i32) {
    %c0_i32 = arith.constant 0 : i32
    %c0_i32_0 = arith.constant 0 : i32
    %c0_i32_1 = arith.constant 0 : i32
    return %c0_i32, %c0_i32_0 : i32, i32
  }
  func.func @transform_8(%arg0: i32) -> (i32, i32) {
    %c0_i32 = arith.constant 0 : i32
    %c0_i32_0 = arith.constant 0 : i32
    %c0_i32_1 = arith.constant 0 : i32
    return %c0_i32, %c0_i32_0 : i32, i32
  }
  func.func @transform_9(%arg0: i32) -> (i32, i32) {
    %c0_i32 = arith.constant 0 : i32
    %c0_i32_0 = arith.constant 0 : i32
    %c0_i32_1 = arith.constant 0 : i32
    return %c0_i32, %c0_i32_0 : i32, i32
  }
  func.func @transform_10(%arg0: i32) -> (i32, i32) {
    %c0_i32 = arith.constant 0 : i32
    %c0_i32_0 = arith.constant 0 : i32
    %c0_i32_1 = arith.constant 0 : i32
    return %c0_i32, %c0_i32_0 : i32, i32
  }
  func.func @transform_11(%arg0: i32) -> (i32, i32, i32) {
    %c0_i32 = arith.constant 0 : i32
    %c0_i32_0 = arith.constant 0 : i32
    %c0_i32_1 = arith.constant 0 : i32
    return %arg0, %c0_i32, %c0_i32_0 : i32, i32, i32
  }
}

module attributes {stable_mosaic.version = 11 : i64} {
  func.func @_self_attn_sublayer_kernel(%arg0: i32, %arg1: memref<1x8x32xf32, #tpu.memory_space<vmem>>, %arg2: memref<1x8x8xf32, #tpu.memory_space<vmem>>, %arg3: memref<1x32xf32, #tpu.memory_space<vmem>>, %arg4: memref<1x32xf32, #tpu.memory_space<vmem>>, %arg5: memref<32x96xbf16, #tpu.memory_space<vmem>>, %arg6: memref<1x96xf32, #tpu.memory_space<vmem>>, %arg7: memref<32x32xbf16, #tpu.memory_space<vmem>>, %arg8: memref<1x32xf32, #tpu.memory_space<vmem>>, %arg9: memref<1x8x32xf32, #tpu.memory_space<vmem>>) attributes {dimension_semantics = [#tpu.dimension_semantics<parallel>], iteration_bounds = array<i64: 2>, scalar_prefetch = 0 : i64, scratch_operands = 0 : i64, tpu.core_type = #tpu.core_type<tc>, window_params = [{transform_indices = @transform_0, window_bounds = array<i64: 1, 8, 32>}, {transform_indices = @transform_1, window_bounds = array<i64: 1, 8, 8>}, {pipeline_mode = #tpu.pipeline_mode<synchronous>, transform_indices = @transform_2, window_bounds = array<i64: 1, 32>}, {pipeline_mode = #tpu.pipeline_mode<synchronous>, transform_indices = @transform_3, window_bounds = array<i64: 1, 32>}, {pipeline_mode = #tpu.pipeline_mode<synchronous>, transform_indices = @transform_4, window_bounds = array<i64: 32, 96>}, {pipeline_mode = #tpu.pipeline_mode<synchronous>, transform_indices = @transform_5, window_bounds = array<i64: 1, 96>}, {pipeline_mode = #tpu.pipeline_mode<synchronous>, transform_indices = @transform_6, window_bounds = array<i64: 32, 32>}, {pipeline_mode = #tpu.pipeline_mode<synchronous>, transform_indices = @transform_7, window_bounds = array<i64: 1, 32>}, {transform_indices = @transform_8, window_bounds = array<i64: 1, 8, 32>}]} {
    %c0 = arith.constant 0 : index
    %c0_0 = arith.constant 0 : index
    %c0_1 = arith.constant 0 : index
    %0 = vector.load %arg1[%c0, %c0_0, %c0_1] : memref<1x8x32xf32, #tpu.memory_space<vmem>>, vector<1x8x32xf32>
    %1 = vector.shape_cast %0 : vector<1x8x32xf32> to vector<8x32xf32>
    %c0_2 = arith.constant 0 : index
    %c0_3 = arith.constant 0 : index
    %2 = vector.load %arg3[%c0_2, %c0_3] : memref<1x32xf32, #tpu.memory_space<vmem>>, vector<1x32xf32>
    %c0_4 = arith.constant 0 : index
    %c0_5 = arith.constant 0 : index
    %3 = vector.load %arg4[%c0_4, %c0_5] : memref<1x32xf32, #tpu.memory_space<vmem>>, vector<1x32xf32>
    %cst = arith.constant dense<0.000000e+00> : vector<8xf32>
    %4 = vector.multi_reduction <add>, %1, %cst [1] : vector<8x32xf32> to vector<8xf32>
    %5 = vector.shape_cast %4 : vector<8xf32> to vector<8x1xf32>
    %cst_6 = arith.constant 3.200000e+01 : f32
    %6 = vector.broadcast %cst_6 : f32 to vector<8x1xf32>
    %7 = arith.divf %5, %6 : vector<8x1xf32>
    %8 = vector.broadcast %7 : vector<8x1xf32> to vector<8x32xf32>
    %9 = arith.subf %1, %8 : vector<8x32xf32>
    %10 = arith.mulf %9, %9 : vector<8x32xf32>
    %cst_7 = arith.constant dense<0.000000e+00> : vector<8xf32>
    %11 = vector.multi_reduction <add>, %10, %cst_7 [1] : vector<8x32xf32> to vector<8xf32>
    %12 = vector.shape_cast %11 : vector<8xf32> to vector<8x1xf32>
    %cst_8 = arith.constant 3.100000e+01 : f32
    %13 = vector.broadcast %cst_8 : f32 to vector<8x1xf32>
    %14 = arith.divf %12, %13 : vector<8x1xf32>
    %15 = vector.broadcast %2 : vector<1x32xf32> to vector<8x32xf32>
    %16 = arith.mulf %15, %9 : vector<8x32xf32>
    %17 = math.sqrt %14 : vector<8x1xf32>
    %cst_9 = arith.constant 9.99999997E-7 : f32
    %18 = vector.broadcast %cst_9 : f32 to vector<8x1xf32>
    %19 = arith.addf %17, %18 : vector<8x1xf32>
    %20 = vector.broadcast %19 : vector<8x1xf32> to vector<8x32xf32>
    %21 = arith.divf %16, %20 : vector<8x32xf32>
    %22 = vector.broadcast %3 : vector<1x32xf32> to vector<8x32xf32>
    %23 = arith.addf %21, %22 : vector<8x32xf32>
    %24 = arith.truncf %23 : vector<8x32xf32> to vector<8x32xbf16>
    %c0_10 = arith.constant 0 : index
    %c0_11 = arith.constant 0 : index
    %25 = vector.load %arg5[%c0_10, %c0_11] : memref<32x96xbf16, #tpu.memory_space<vmem>>, vector<32x96xbf16>
    %cst_12 = arith.constant dense<0.000000e+00> : vector<8x96xf32>
    %26 = tpu.matmul %24, %25, %cst_12 {dimension_numbers = #tpu.dot_dimension_numbers<[1], [0], [0], [1], [0, 0, 1, 1], [], []>} : vector<8x32xbf16>, vector<32x96xbf16>, vector<8x96xf32> -> vector<8x96xf32>
    %c0_13 = arith.constant 0 : index
    %c0_14 = arith.constant 0 : index
    %27 = vector.load %arg6[%c0_13, %c0_14] : memref<1x96xf32, #tpu.memory_space<vmem>>, vector<1x96xf32>
    %28 = vector.broadcast %27 : vector<1x96xf32> to vector<8x96xf32>
    %29 = arith.addf %26, %28 : vector<8x96xf32>
    %30 = vector.extract_strided_slice %29 {offsets = [0, 0], sizes = [8, 32], strides = [1, 1]} : vector<8x96xf32> to vector<8x32xf32>
    %31 = vector.extract_strided_slice %29 {offsets = [0, 32], sizes = [8, 32], strides = [1, 1]} : vector<8x96xf32> to vector<8x32xf32>
    %32 = vector.extract_strided_slice %29 {offsets = [0, 64], sizes = [8, 32], strides = [1, 1]} : vector<8x96xf32> to vector<8x32xf32>
    %c0_15 = arith.constant 0 : index
    %c0_16 = arith.constant 0 : index
    %c0_17 = arith.constant 0 : index
    %33 = vector.load %arg2[%c0_15, %c0_16, %c0_17] : memref<1x8x8xf32, #tpu.memory_space<vmem>>, vector<1x8x8xf32>
    %34 = vector.shape_cast %33 : vector<1x8x8xf32> to vector<8x8xf32>
    %35 = vector.extract_strided_slice %30 {offsets = [0, 0], sizes = [8, 8], strides = [1, 1]} : vector<8x32xf32> to vector<8x8xf32>
    %36 = arith.truncf %35 : vector<8x8xf32> to vector<8x8xbf16>
    %37 = vector.extract_strided_slice %31 {offsets = [0, 0], sizes = [8, 8], strides = [1, 1]} : vector<8x32xf32> to vector<8x8xf32>
    %38 = arith.truncf %37 : vector<8x8xf32> to vector<8x8xbf16>
    %39 = vector.extract_strided_slice %32 {offsets = [0, 0], sizes = [8, 8], strides = [1, 1]} : vector<8x32xf32> to vector<8x8xf32>
    %40 = arith.truncf %39 : vector<8x8xf32> to vector<8x8xbf16>
    %41 = tpu.transpose %38, [1, 0] : vector<8x8xbf16> -> vector<8x8xbf16>
    %cst_18 = arith.constant dense<0.000000e+00> : vector<8x8xf32>
    %42 = tpu.matmul %36, %41, %cst_18 {dimension_numbers = #tpu.dot_dimension_numbers<[1], [0], [0], [1], [0, 0, 1, 1], [], []>} : vector<8x8xbf16>, vector<8x8xbf16>, vector<8x8xf32> -> vector<8x8xf32>
    %cst_19 = arith.constant 0.353553385 : f32
    %43 = vector.broadcast %cst_19 : f32 to vector<8x8xf32>
    %44 = arith.mulf %42, %43 : vector<8x8xf32>
    %cst_20 = arith.constant 0.000000e+00 : f32
    %45 = vector.broadcast %cst_20 : f32 to vector<8x8xf32>
    %46 = arith.cmpf oeq, %34, %45 : vector<8x8xf32>
    %cst_21 = arith.constant -1.000000e+09 : f32
    %47 = vector.broadcast %cst_21 : f32 to vector<8x8xf32>
    %48 = arith.select %46, %47, %44 : vector<8x8xi1>, vector<8x8xf32>
    %cst_22 = arith.constant dense<0xFF800000> : vector<8xf32>
    %49 = vector.multi_reduction <maximumf>, %48, %cst_22 [1] : vector<8x8xf32> to vector<8xf32>
    %50 = vector.shape_cast %49 : vector<8xf32> to vector<8x1xf32>
    %51 = vector.broadcast %50 : vector<8x1xf32> to vector<8x8xf32>
    %52 = arith.subf %48, %51 : vector<8x8xf32>
    %53 = math.exp %52 : vector<8x8xf32>
    %cst_23 = arith.constant dense<0.000000e+00> : vector<8xf32>
    %54 = vector.multi_reduction <add>, %53, %cst_23 [1] : vector<8x8xf32> to vector<8xf32>
    %55 = vector.shape_cast %54 : vector<8xf32> to vector<8x1xf32>
    %56 = arith.truncf %53 : vector<8x8xf32> to vector<8x8xbf16>
    %cst_24 = arith.constant dense<0.000000e+00> : vector<8x8xf32>
    %57 = tpu.matmul %56, %40, %cst_24 {dimension_numbers = #tpu.dot_dimension_numbers<[1], [0], [0], [1], [0, 0, 1, 1], [], []>} : vector<8x8xbf16>, vector<8x8xbf16>, vector<8x8xf32> -> vector<8x8xf32>
    %58 = tpu.reciprocal %55 {approx = true} : vector<8x1xf32> -> vector<8x1xf32>
    %59 = vector.broadcast %58 : vector<8x1xf32> to vector<8x8xf32>
    %60 = arith.mulf %57, %59 : vector<8x8xf32>
    %61 = vector.extract_strided_slice %30 {offsets = [0, 8], sizes = [8, 8], strides = [1, 1]} : vector<8x32xf32> to vector<8x8xf32>
    %62 = arith.truncf %61 : vector<8x8xf32> to vector<8x8xbf16>
    %63 = vector.extract_strided_slice %31 {offsets = [0, 8], sizes = [8, 8], strides = [1, 1]} : vector<8x32xf32> to vector<8x8xf32>
    %64 = arith.truncf %63 : vector<8x8xf32> to vector<8x8xbf16>
    %65 = vector.extract_strided_slice %32 {offsets = [0, 8], sizes = [8, 8], strides = [1, 1]} : vector<8x32xf32> to vector<8x8xf32>
    %66 = arith.truncf %65 : vector<8x8xf32> to vector<8x8xbf16>
    %67 = tpu.transpose %64, [1, 0] : vector<8x8xbf16> -> vector<8x8xbf16>
    %cst_25 = arith.constant dense<0.000000e+00> : vector<8x8xf32>
    %68 = tpu.matmul %62, %67, %cst_25 {dimension_numbers = #tpu.dot_dimension_numbers<[1], [0], [0], [1], [0, 0, 1, 1], [], []>} : vector<8x8xbf16>, vector<8x8xbf16>, vector<8x8xf32> -> vector<8x8xf32>
    %cst_26 = arith.constant 0.353553385 : f32
    %69 = vector.broadcast %cst_26 : f32 to vector<8x8xf32>
    %70 = arith.mulf %68, %69 : vector<8x8xf32>
    %cst_27 = arith.constant 0.000000e+00 : f32
    %71 = vector.broadcast %cst_27 : f32 to vector<8x8xf32>
    %72 = arith.cmpf oeq, %34, %71 : vector<8x8xf32>
    %cst_28 = arith.constant -1.000000e+09 : f32
    %73 = vector.broadcast %cst_28 : f32 to vector<8x8xf32>
    %74 = arith.select %72, %73, %70 : vector<8x8xi1>, vector<8x8xf32>
    %cst_29 = arith.constant dense<0xFF800000> : vector<8xf32>
    %75 = vector.multi_reduction <maximumf>, %74, %cst_29 [1] : vector<8x8xf32> to vector<8xf32>
    %76 = vector.shape_cast %75 : vector<8xf32> to vector<8x1xf32>
    %77 = vector.broadcast %76 : vector<8x1xf32> to vector<8x8xf32>
    %78 = arith.subf %74, %77 : vector<8x8xf32>
    %79 = math.exp %78 : vector<8x8xf32>
    %cst_30 = arith.constant dense<0.000000e+00> : vector<8xf32>
    %80 = vector.multi_reduction <add>, %79, %cst_30 [1] : vector<8x8xf32> to vector<8xf32>
    %81 = vector.shape_cast %80 : vector<8xf32> to vector<8x1xf32>
    %82 = arith.truncf %79 : vector<8x8xf32> to vector<8x8xbf16>
    %cst_31 = arith.constant dense<0.000000e+00> : vector<8x8xf32>
    %83 = tpu.matmul %82, %66, %cst_31 {dimension_numbers = #tpu.dot_dimension_numbers<[1], [0], [0], [1], [0, 0, 1, 1], [], []>} : vector<8x8xbf16>, vector<8x8xbf16>, vector<8x8xf32> -> vector<8x8xf32>
    %84 = tpu.reciprocal %81 {approx = true} : vector<8x1xf32> -> vector<8x1xf32>
    %85 = vector.broadcast %84 : vector<8x1xf32> to vector<8x8xf32>
    %86 = arith.mulf %83, %85 : vector<8x8xf32>
    %87 = vector.extract_strided_slice %30 {offsets = [0, 16], sizes = [8, 8], strides = [1, 1]} : vector<8x32xf32> to vector<8x8xf32>
    %88 = arith.truncf %87 : vector<8x8xf32> to vector<8x8xbf16>
    %89 = vector.extract_strided_slice %31 {offsets = [0, 16], sizes = [8, 8], strides = [1, 1]} : vector<8x32xf32> to vector<8x8xf32>
    %90 = arith.truncf %89 : vector<8x8xf32> to vector<8x8xbf16>
    %91 = vector.extract_strided_slice %32 {offsets = [0, 16], sizes = [8, 8], strides = [1, 1]} : vector<8x32xf32> to vector<8x8xf32>
    %92 = arith.truncf %91 : vector<8x8xf32> to vector<8x8xbf16>
    %93 = tpu.transpose %90, [1, 0] : vector<8x8xbf16> -> vector<8x8xbf16>
    %cst_32 = arith.constant dense<0.000000e+00> : vector<8x8xf32>
    %94 = tpu.matmul %88, %93, %cst_32 {dimension_numbers = #tpu.dot_dimension_numbers<[1], [0], [0], [1], [0, 0, 1, 1], [], []>} : vector<8x8xbf16>, vector<8x8xbf16>, vector<8x8xf32> -> vector<8x8xf32>
    %cst_33 = arith.constant 0.353553385 : f32
    %95 = vector.broadcast %cst_33 : f32 to vector<8x8xf32>
    %96 = arith.mulf %94, %95 : vector<8x8xf32>
    %cst_34 = arith.constant 0.000000e+00 : f32
    %97 = vector.broadcast %cst_34 : f32 to vector<8x8xf32>
    %98 = arith.cmpf oeq, %34, %97 : vector<8x8xf32>
    %cst_35 = arith.constant -1.000000e+09 : f32
    %99 = vector.broadcast %cst_35 : f32 to vector<8x8xf32>
    %100 = arith.select %98, %99, %96 : vector<8x8xi1>, vector<8x8xf32>
    %cst_36 = arith.constant dense<0xFF800000> : vector<8xf32>
    %101 = vector.multi_reduction <maximumf>, %100, %cst_36 [1] : vector<8x8xf32> to vector<8xf32>
    %102 = vector.shape_cast %101 : vector<8xf32> to vector<8x1xf32>
    %103 = vector.broadcast %102 : vector<8x1xf32> to vector<8x8xf32>
    %104 = arith.subf %100, %103 : vector<8x8xf32>
    %105 = math.exp %104 : vector<8x8xf32>
    %cst_37 = arith.constant dense<0.000000e+00> : vector<8xf32>
    %106 = vector.multi_reduction <add>, %105, %cst_37 [1] : vector<8x8xf32> to vector<8xf32>
    %107 = vector.shape_cast %106 : vector<8xf32> to vector<8x1xf32>
    %108 = arith.truncf %105 : vector<8x8xf32> to vector<8x8xbf16>
    %cst_38 = arith.constant dense<0.000000e+00> : vector<8x8xf32>
    %109 = tpu.matmul %108, %92, %cst_38 {dimension_numbers = #tpu.dot_dimension_numbers<[1], [0], [0], [1], [0, 0, 1, 1], [], []>} : vector<8x8xbf16>, vector<8x8xbf16>, vector<8x8xf32> -> vector<8x8xf32>
    %110 = tpu.reciprocal %107 {approx = true} : vector<8x1xf32> -> vector<8x1xf32>
    %111 = vector.broadcast %110 : vector<8x1xf32> to vector<8x8xf32>
    %112 = arith.mulf %109, %111 : vector<8x8xf32>
    %113 = vector.extract_strided_slice %30 {offsets = [0, 24], sizes = [8, 8], strides = [1, 1]} : vector<8x32xf32> to vector<8x8xf32>
    %114 = arith.truncf %113 : vector<8x8xf32> to vector<8x8xbf16>
    %115 = vector.extract_strided_slice %31 {offsets = [0, 24], sizes = [8, 8], strides = [1, 1]} : vector<8x32xf32> to vector<8x8xf32>
    %116 = arith.truncf %115 : vector<8x8xf32> to vector<8x8xbf16>
    %117 = vector.extract_strided_slice %32 {offsets = [0, 24], sizes = [8, 8], strides = [1, 1]} : vector<8x32xf32> to vector<8x8xf32>
    %118 = arith.truncf %117 : vector<8x8xf32> to vector<8x8xbf16>
    %119 = tpu.transpose %116, [1, 0] : vector<8x8xbf16> -> vector<8x8xbf16>
    %cst_39 = arith.constant dense<0.000000e+00> : vector<8x8xf32>
    %120 = tpu.matmul %114, %119, %cst_39 {dimension_numbers = #tpu.dot_dimension_numbers<[1], [0], [0], [1], [0, 0, 1, 1], [], []>} : vector<8x8xbf16>, vector<8x8xbf16>, vector<8x8xf32> -> vector<8x8xf32>
    %cst_40 = arith.constant 0.353553385 : f32
    %121 = vector.broadcast %cst_40 : f32 to vector<8x8xf32>
    %122 = arith.mulf %120, %121 : vector<8x8xf32>
    %cst_41 = arith.constant 0.000000e+00 : f32
    %123 = vector.broadcast %cst_41 : f32 to vector<8x8xf32>
    %124 = arith.cmpf oeq, %34, %123 : vector<8x8xf32>
    %cst_42 = arith.constant -1.000000e+09 : f32
    %125 = vector.broadcast %cst_42 : f32 to vector<8x8xf32>
    %126 = arith.select %124, %125, %122 : vector<8x8xi1>, vector<8x8xf32>
    %cst_43 = arith.constant dense<0xFF800000> : vector<8xf32>
    %127 = vector.multi_reduction <maximumf>, %126, %cst_43 [1] : vector<8x8xf32> to vector<8xf32>
    %128 = vector.shape_cast %127 : vector<8xf32> to vector<8x1xf32>
    %129 = vector.broadcast %128 : vector<8x1xf32> to vector<8x8xf32>
    %130 = arith.subf %126, %129 : vector<8x8xf32>
    %131 = math.exp %130 : vector<8x8xf32>
    %cst_44 = arith.constant dense<0.000000e+00> : vector<8xf32>
    %132 = vector.multi_reduction <add>, %131, %cst_44 [1] : vector<8x8xf32> to vector<8xf32>
    %133 = vector.shape_cast %132 : vector<8xf32> to vector<8x1xf32>
    %134 = arith.truncf %131 : vector<8x8xf32> to vector<8x8xbf16>
    %cst_45 = arith.constant dense<0.000000e+00> : vector<8x8xf32>
    %135 = tpu.matmul %134, %118, %cst_45 {dimension_numbers = #tpu.dot_dimension_numbers<[1], [0], [0], [1], [0, 0, 1, 1], [], []>} : vector<8x8xbf16>, vector<8x8xbf16>, vector<8x8xf32> -> vector<8x8xf32>
    %136 = tpu.reciprocal %133 {approx = true} : vector<8x1xf32> -> vector<8x1xf32>
    %137 = vector.broadcast %136 : vector<8x1xf32> to vector<8x8xf32>
    %138 = arith.mulf %135, %137 : vector<8x8xf32>
    %139 = tpu.concatenate %60, %86, %112, %138 in 1 : vector<8x8xf32>, vector<8x8xf32>, vector<8x8xf32>, vector<8x8xf32> -> vector<8x32xf32>
    %140 = arith.truncf %139 : vector<8x32xf32> to vector<8x32xbf16>
    %c0_46 = arith.constant 0 : index
    %c0_47 = arith.constant 0 : index
    %141 = vector.load %arg7[%c0_46, %c0_47] : memref<32x32xbf16, #tpu.memory_space<vmem>>, vector<32x32xbf16>
    %cst_48 = arith.constant dense<0.000000e+00> : vector<8x32xf32>
    %142 = tpu.matmul %140, %141, %cst_48 {dimension_numbers = #tpu.dot_dimension_numbers<[1], [0], [0], [1], [0, 0, 1, 1], [], []>} : vector<8x32xbf16>, vector<32x32xbf16>, vector<8x32xf32> -> vector<8x32xf32>
    %c0_49 = arith.constant 0 : index
    %c0_50 = arith.constant 0 : index
    %143 = vector.load %arg8[%c0_49, %c0_50] : memref<1x32xf32, #tpu.memory_space<vmem>>, vector<1x32xf32>
    %144 = vector.broadcast %143 : vector<1x32xf32> to vector<8x32xf32>
    %145 = arith.addf %142, %144 : vector<8x32xf32>
    %146 = arith.addf %145, %1 : vector<8x32xf32>
    %c0_51 = arith.constant 0 : index
    %c0_52 = arith.constant 0 : index
    %c0_53 = arith.constant 0 : index
    %147 = vector.load %arg9[%c0_51, %c0_52, %c0_53] : memref<1x8x32xf32, #tpu.memory_space<vmem>>, vector<1x8x32xf32>
    %148 = vector.shape_cast %147 : vector<1x8x32xf32> to vector<8x32xf32>
    %149 = vector.shape_cast %146 : vector<8x32xf32> to vector<1x8x32xf32>
    tpu.vector_store %arg9[%c0_51, %c0_52, %c0_53], %149 {strides = array<i32>} : memref<1x8x32xf32, #tpu.memory_space<vmem>>, vector<1x8x32xf32>,
    return
  }
  func.func @transform_0(%arg0: i32) -> (i32, i32, i32) {
    %c0_i32 = arith.constant 0 : i32
    %c0_i32_0 = arith.constant 0 : i32
    %c0_i32_1 = arith.constant 0 : i32
    return %arg0, %c0_i32, %c0_i32_0 : i32, i32, i32
  }
  func.func @transform_1(%arg0: i32) -> (i32, i32, i32) {
    %c0_i32 = arith.constant 0 : i32
    %c0_i32_0 = arith.constant 0 : i32
    %c0_i32_1 = arith.constant 0 : i32
    return %arg0, %c0_i32, %c0_i32_0 : i32, i32, i32
  }
  func.func @transform_2(%arg0: i32) -> (i32, i32) {
    %c0_i32 = arith.constant 0 : i32
    %c0_i32_0 = arith.constant 0 : i32
    %c0_i32_1 = arith.constant 0 : i32
    return %c0_i32, %c0_i32_0 : i32, i32
  }
  func.func @transform_3(%arg0: i32) -> (i32, i32) {
    %c0_i32 = arith.constant 0 : i32
    %c0_i32_0 = arith.constant 0 : i32
    %c0_i32_1 = arith.constant 0 : i32
    return %c0_i32, %c0_i32_0 : i32, i32
  }
  func.func @transform_4(%arg0: i32) -> (i32, i32) {
    %c0_i32 = arith.constant 0 : i32
    %c0_i32_0 = arith.constant 0 : i32
    %c0_i32_1 = arith.constant 0 : i32
    return %c0_i32, %c0_i32_0 : i32, i32
  }
  func.func @transform_5(%arg0: i32) -> (i32, i32) {
    %c0_i32 = arith.constant 0 : i32
    %c0_i32_0 = arith.constant 0 : i32
    %c0_i32_1 = arith.constant 0 : i32
    return %c0_i32, %c0_i32_0 : i32, i32
  }
  func.func @transform_6(%arg0: i32) -> (i32, i32) {
    %c0_i32 = arith.constant 0 : i32
    %c0_i32_0 = arith.constant 0 : i32
    %c0_i32_1 = arith.constant 0 : i32
    return %c0_i32, %c0_i32_0 : i32, i32
  }
  func.func @transform_7(%arg0: i32) -> (i32, i32) {
    %c0_i32 = arith.constant 0 : i32
    %c0_i32_0 = arith.constant 0 : i32
    %c0_i32_1 = arith.constant 0 : i32
    return %c0_i32, %c0_i32_0 : i32, i32
  }
  func.func @transform_8(%arg0: i32) -> (i32, i32, i32) {
    %c0_i32 = arith.constant 0 : i32
    %c0_i32_0 = arith.constant 0 : i32
    %c0_i32_1 = arith.constant 0 : i32
    return %arg0, %c0_i32, %c0_i32_0 : i32, i32, i32
  }
}

module attributes {stable_mosaic.version = 11 : i64} {
  func.func @_src_attn_sublayer_kernel(%arg0: i32, %arg1: memref<1x8x32xf32, #tpu.memory_space<vmem>>, %arg2: memref<1x8x32xf32, #tpu.memory_space<vmem>>, %arg3: memref<1x8x8xf32, #tpu.memory_space<vmem>>, %arg4: memref<1x32xf32, #tpu.memory_space<vmem>>, %arg5: memref<1x32xf32, #tpu.memory_space<vmem>>, %arg6: memref<32x32xbf16, #tpu.memory_space<vmem>>, %arg7: memref<1x32xf32, #tpu.memory_space<vmem>>, %arg8: memref<32x64xbf16, #tpu.memory_space<vmem>>, %arg9: memref<1x64xf32, #tpu.memory_space<vmem>>, %arg10: memref<32x32xbf16, #tpu.memory_space<vmem>>, %arg11: memref<1x32xf32, #tpu.memory_space<vmem>>, %arg12: memref<1x8x32xf32, #tpu.memory_space<vmem>>) attributes {dimension_semantics = [#tpu.dimension_semantics<parallel>], iteration_bounds = array<i64: 2>, scalar_prefetch = 0 : i64, scratch_operands = 0 : i64, tpu.core_type = #tpu.core_type<tc>, window_params = [{transform_indices = @transform_0, window_bounds = array<i64: 1, 8, 32>}, {transform_indices = @transform_1, window_bounds = array<i64: 1, 8, 32>}, {transform_indices = @transform_2, window_bounds = array<i64: 1, 8, 8>}, {pipeline_mode = #tpu.pipeline_mode<synchronous>, transform_indices = @transform_3, window_bounds = array<i64: 1, 32>}, {pipeline_mode = #tpu.pipeline_mode<synchronous>, transform_indices = @transform_4, window_bounds = array<i64: 1, 32>}, {pipeline_mode = #tpu.pipeline_mode<synchronous>, transform_indices = @transform_5, window_bounds = array<i64: 32, 32>}, {pipeline_mode = #tpu.pipeline_mode<synchronous>, transform_indices = @transform_6, window_bounds = array<i64: 1, 32>}, {pipeline_mode = #tpu.pipeline_mode<synchronous>, transform_indices = @transform_7, window_bounds = array<i64: 32, 64>}, {pipeline_mode = #tpu.pipeline_mode<synchronous>, transform_indices = @transform_8, window_bounds = array<i64: 1, 64>}, {pipeline_mode = #tpu.pipeline_mode<synchronous>, transform_indices = @transform_9, window_bounds = array<i64: 32, 32>}, {pipeline_mode = #tpu.pipeline_mode<synchronous>, transform_indices = @transform_10, window_bounds = array<i64: 1, 32>}, {transform_indices = @transform_11, window_bounds = array<i64: 1, 8, 32>}]} {
    %c0 = arith.constant 0 : index
    %c0_0 = arith.constant 0 : index
    %c0_1 = arith.constant 0 : index
    %0 = vector.load %arg1[%c0, %c0_0, %c0_1] : memref<1x8x32xf32, #tpu.memory_space<vmem>>, vector<1x8x32xf32>
    %1 = vector.shape_cast %0 : vector<1x8x32xf32> to vector<8x32xf32>
    %c0_2 = arith.constant 0 : index
    %c0_3 = arith.constant 0 : index
    %2 = vector.load %arg4[%c0_2, %c0_3] : memref<1x32xf32, #tpu.memory_space<vmem>>, vector<1x32xf32>
    %c0_4 = arith.constant 0 : index
    %c0_5 = arith.constant 0 : index
    %3 = vector.load %arg5[%c0_4, %c0_5] : memref<1x32xf32, #tpu.memory_space<vmem>>, vector<1x32xf32>
    %cst = arith.constant dense<0.000000e+00> : vector<8xf32>
    %4 = vector.multi_reduction <add>, %1, %cst [1] : vector<8x32xf32> to vector<8xf32>
    %5 = vector.shape_cast %4 : vector<8xf32> to vector<8x1xf32>
    %cst_6 = arith.constant 3.200000e+01 : f32
    %6 = vector.broadcast %cst_6 : f32 to vector<8x1xf32>
    %7 = arith.divf %5, %6 : vector<8x1xf32>
    %8 = vector.broadcast %7 : vector<8x1xf32> to vector<8x32xf32>
    %9 = arith.subf %1, %8 : vector<8x32xf32>
    %10 = arith.mulf %9, %9 : vector<8x32xf32>
    %cst_7 = arith.constant dense<0.000000e+00> : vector<8xf32>
    %11 = vector.multi_reduction <add>, %10, %cst_7 [1] : vector<8x32xf32> to vector<8xf32>
    %12 = vector.shape_cast %11 : vector<8xf32> to vector<8x1xf32>
    %cst_8 = arith.constant 3.100000e+01 : f32
    %13 = vector.broadcast %cst_8 : f32 to vector<8x1xf32>
    %14 = arith.divf %12, %13 : vector<8x1xf32>
    %15 = vector.broadcast %2 : vector<1x32xf32> to vector<8x32xf32>
    %16 = arith.mulf %15, %9 : vector<8x32xf32>
    %17 = math.sqrt %14 : vector<8x1xf32>
    %cst_9 = arith.constant 9.99999997E-7 : f32
    %18 = vector.broadcast %cst_9 : f32 to vector<8x1xf32>
    %19 = arith.addf %17, %18 : vector<8x1xf32>
    %20 = vector.broadcast %19 : vector<8x1xf32> to vector<8x32xf32>
    %21 = arith.divf %16, %20 : vector<8x32xf32>
    %22 = vector.broadcast %3 : vector<1x32xf32> to vector<8x32xf32>
    %23 = arith.addf %21, %22 : vector<8x32xf32>
    %24 = arith.truncf %23 : vector<8x32xf32> to vector<8x32xbf16>
    %c0_10 = arith.constant 0 : index
    %c0_11 = arith.constant 0 : index
    %25 = vector.load %arg6[%c0_10, %c0_11] : memref<32x32xbf16, #tpu.memory_space<vmem>>, vector<32x32xbf16>
    %cst_12 = arith.constant dense<0.000000e+00> : vector<8x32xf32>
    %26 = tpu.matmul %24, %25, %cst_12 {dimension_numbers = #tpu.dot_dimension_numbers<[1], [0], [0], [1], [0, 0, 1, 1], [], []>} : vector<8x32xbf16>, vector<32x32xbf16>, vector<8x32xf32> -> vector<8x32xf32>
    %c0_13 = arith.constant 0 : index
    %c0_14 = arith.constant 0 : index
    %27 = vector.load %arg7[%c0_13, %c0_14] : memref<1x32xf32, #tpu.memory_space<vmem>>, vector<1x32xf32>
    %28 = vector.broadcast %27 : vector<1x32xf32> to vector<8x32xf32>
    %29 = arith.addf %26, %28 : vector<8x32xf32>
    %c0_15 = arith.constant 0 : index
    %c0_16 = arith.constant 0 : index
    %c0_17 = arith.constant 0 : index
    %30 = vector.load %arg2[%c0_15, %c0_16, %c0_17] : memref<1x8x32xf32, #tpu.memory_space<vmem>>, vector<1x8x32xf32>
    %31 = vector.shape_cast %30 : vector<1x8x32xf32> to vector<8x32xf32>
    %32 = arith.truncf %31 : vector<8x32xf32> to vector<8x32xbf16>
    %c0_18 = arith.constant 0 : index
    %c0_19 = arith.constant 0 : index
    %33 = vector.load %arg8[%c0_18, %c0_19] : memref<32x64xbf16, #tpu.memory_space<vmem>>, vector<32x64xbf16>
    %cst_20 = arith.constant dense<0.000000e+00> : vector<8x64xf32>
    %34 = tpu.matmul %32, %33, %cst_20 {dimension_numbers = #tpu.dot_dimension_numbers<[1], [0], [0], [1], [0, 0, 1, 1], [], []>} : vector<8x32xbf16>, vector<32x64xbf16>, vector<8x64xf32> -> vector<8x64xf32>
    %c0_21 = arith.constant 0 : index
    %c0_22 = arith.constant 0 : index
    %35 = vector.load %arg9[%c0_21, %c0_22] : memref<1x64xf32, #tpu.memory_space<vmem>>, vector<1x64xf32>
    %36 = vector.broadcast %35 : vector<1x64xf32> to vector<8x64xf32>
    %37 = arith.addf %34, %36 : vector<8x64xf32>
    %38 = vector.extract_strided_slice %37 {offsets = [0, 0], sizes = [8, 32], strides = [1, 1]} : vector<8x64xf32> to vector<8x32xf32>
    %39 = vector.extract_strided_slice %37 {offsets = [0, 32], sizes = [8, 32], strides = [1, 1]} : vector<8x64xf32> to vector<8x32xf32>
    %c0_23 = arith.constant 0 : index
    %c0_24 = arith.constant 0 : index
    %c0_25 = arith.constant 0 : index
    %40 = vector.load %arg3[%c0_23, %c0_24, %c0_25] : memref<1x8x8xf32, #tpu.memory_space<vmem>>, vector<1x8x8xf32>
    %41 = vector.shape_cast %40 : vector<1x8x8xf32> to vector<8x8xf32>
    %42 = vector.extract_strided_slice %29 {offsets = [0, 0], sizes = [8, 8], strides = [1, 1]} : vector<8x32xf32> to vector<8x8xf32>
    %43 = arith.truncf %42 : vector<8x8xf32> to vector<8x8xbf16>
    %44 = vector.extract_strided_slice %38 {offsets = [0, 0], sizes = [8, 8], strides = [1, 1]} : vector<8x32xf32> to vector<8x8xf32>
    %45 = arith.truncf %44 : vector<8x8xf32> to vector<8x8xbf16>
    %46 = vector.extract_strided_slice %39 {offsets = [0, 0], sizes = [8, 8], strides = [1, 1]} : vector<8x32xf32> to vector<8x8xf32>
    %47 = arith.truncf %46 : vector<8x8xf32> to vector<8x8xbf16>
    %48 = tpu.transpose %45, [1, 0] : vector<8x8xbf16> -> vector<8x8xbf16>
    %cst_26 = arith.constant dense<0.000000e+00> : vector<8x8xf32>
    %49 = tpu.matmul %43, %48, %cst_26 {dimension_numbers = #tpu.dot_dimension_numbers<[1], [0], [0], [1], [0, 0, 1, 1], [], []>} : vector<8x8xbf16>, vector<8x8xbf16>, vector<8x8xf32> -> vector<8x8xf32>
    %cst_27 = arith.constant 0.353553385 : f32
    %50 = vector.broadcast %cst_27 : f32 to vector<8x8xf32>
    %51 = arith.mulf %49, %50 : vector<8x8xf32>
    %cst_28 = arith.constant 0.000000e+00 : f32
    %52 = vector.broadcast %cst_28 : f32 to vector<8x8xf32>
    %53 = arith.cmpf oeq, %41, %52 : vector<8x8xf32>
    %cst_29 = arith.constant -1.000000e+09 : f32
    %54 = vector.broadcast %cst_29 : f32 to vector<8x8xf32>
    %55 = arith.select %53, %54, %51 : vector<8x8xi1>, vector<8x8xf32>
    %cst_30 = arith.constant dense<0xFF800000> : vector<8xf32>
    %56 = vector.multi_reduction <maximumf>, %55, %cst_30 [1] : vector<8x8xf32> to vector<8xf32>
    %57 = vector.shape_cast %56 : vector<8xf32> to vector<8x1xf32>
    %58 = vector.broadcast %57 : vector<8x1xf32> to vector<8x8xf32>
    %59 = arith.subf %55, %58 : vector<8x8xf32>
    %60 = math.exp %59 : vector<8x8xf32>
    %cst_31 = arith.constant dense<0.000000e+00> : vector<8xf32>
    %61 = vector.multi_reduction <add>, %60, %cst_31 [1] : vector<8x8xf32> to vector<8xf32>
    %62 = vector.shape_cast %61 : vector<8xf32> to vector<8x1xf32>
    %63 = arith.truncf %60 : vector<8x8xf32> to vector<8x8xbf16>
    %cst_32 = arith.constant dense<0.000000e+00> : vector<8x8xf32>
    %64 = tpu.matmul %63, %47, %cst_32 {dimension_numbers = #tpu.dot_dimension_numbers<[1], [0], [0], [1], [0, 0, 1, 1], [], []>} : vector<8x8xbf16>, vector<8x8xbf16>, vector<8x8xf32> -> vector<8x8xf32>
    %65 = tpu.reciprocal %62 {approx = true} : vector<8x1xf32> -> vector<8x1xf32>
    %66 = vector.broadcast %65 : vector<8x1xf32> to vector<8x8xf32>
    %67 = arith.mulf %64, %66 : vector<8x8xf32>
    %68 = vector.extract_strided_slice %29 {offsets = [0, 8], sizes = [8, 8], strides = [1, 1]} : vector<8x32xf32> to vector<8x8xf32>
    %69 = arith.truncf %68 : vector<8x8xf32> to vector<8x8xbf16>
    %70 = vector.extract_strided_slice %38 {offsets = [0, 8], sizes = [8, 8], strides = [1, 1]} : vector<8x32xf32> to vector<8x8xf32>
    %71 = arith.truncf %70 : vector<8x8xf32> to vector<8x8xbf16>
    %72 = vector.extract_strided_slice %39 {offsets = [0, 8], sizes = [8, 8], strides = [1, 1]} : vector<8x32xf32> to vector<8x8xf32>
    %73 = arith.truncf %72 : vector<8x8xf32> to vector<8x8xbf16>
    %74 = tpu.transpose %71, [1, 0] : vector<8x8xbf16> -> vector<8x8xbf16>
    %cst_33 = arith.constant dense<0.000000e+00> : vector<8x8xf32>
    %75 = tpu.matmul %69, %74, %cst_33 {dimension_numbers = #tpu.dot_dimension_numbers<[1], [0], [0], [1], [0, 0, 1, 1], [], []>} : vector<8x8xbf16>, vector<8x8xbf16>, vector<8x8xf32> -> vector<8x8xf32>
    %cst_34 = arith.constant 0.353553385 : f32
    %76 = vector.broadcast %cst_34 : f32 to vector<8x8xf32>
    %77 = arith.mulf %75, %76 : vector<8x8xf32>
    %cst_35 = arith.constant 0.000000e+00 : f32
    %78 = vector.broadcast %cst_35 : f32 to vector<8x8xf32>
    %79 = arith.cmpf oeq, %41, %78 : vector<8x8xf32>
    %cst_36 = arith.constant -1.000000e+09 : f32
    %80 = vector.broadcast %cst_36 : f32 to vector<8x8xf32>
    %81 = arith.select %79, %80, %77 : vector<8x8xi1>, vector<8x8xf32>
    %cst_37 = arith.constant dense<0xFF800000> : vector<8xf32>
    %82 = vector.multi_reduction <maximumf>, %81, %cst_37 [1] : vector<8x8xf32> to vector<8xf32>
    %83 = vector.shape_cast %82 : vector<8xf32> to vector<8x1xf32>
    %84 = vector.broadcast %83 : vector<8x1xf32> to vector<8x8xf32>
    %85 = arith.subf %81, %84 : vector<8x8xf32>
    %86 = math.exp %85 : vector<8x8xf32>
    %cst_38 = arith.constant dense<0.000000e+00> : vector<8xf32>
    %87 = vector.multi_reduction <add>, %86, %cst_38 [1] : vector<8x8xf32> to vector<8xf32>
    %88 = vector.shape_cast %87 : vector<8xf32> to vector<8x1xf32>
    %89 = arith.truncf %86 : vector<8x8xf32> to vector<8x8xbf16>
    %cst_39 = arith.constant dense<0.000000e+00> : vector<8x8xf32>
    %90 = tpu.matmul %89, %73, %cst_39 {dimension_numbers = #tpu.dot_dimension_numbers<[1], [0], [0], [1], [0, 0, 1, 1], [], []>} : vector<8x8xbf16>, vector<8x8xbf16>, vector<8x8xf32> -> vector<8x8xf32>
    %91 = tpu.reciprocal %88 {approx = true} : vector<8x1xf32> -> vector<8x1xf32>
    %92 = vector.broadcast %91 : vector<8x1xf32> to vector<8x8xf32>
    %93 = arith.mulf %90, %92 : vector<8x8xf32>
    %94 = vector.extract_strided_slice %29 {offsets = [0, 16], sizes = [8, 8], strides = [1, 1]} : vector<8x32xf32> to vector<8x8xf32>
    %95 = arith.truncf %94 : vector<8x8xf32> to vector<8x8xbf16>
    %96 = vector.extract_strided_slice %38 {offsets = [0, 16], sizes = [8, 8], strides = [1, 1]} : vector<8x32xf32> to vector<8x8xf32>
    %97 = arith.truncf %96 : vector<8x8xf32> to vector<8x8xbf16>
    %98 = vector.extract_strided_slice %39 {offsets = [0, 16], sizes = [8, 8], strides = [1, 1]} : vector<8x32xf32> to vector<8x8xf32>
    %99 = arith.truncf %98 : vector<8x8xf32> to vector<8x8xbf16>
    %100 = tpu.transpose %97, [1, 0] : vector<8x8xbf16> -> vector<8x8xbf16>
    %cst_40 = arith.constant dense<0.000000e+00> : vector<8x8xf32>
    %101 = tpu.matmul %95, %100, %cst_40 {dimension_numbers = #tpu.dot_dimension_numbers<[1], [0], [0], [1], [0, 0, 1, 1], [], []>} : vector<8x8xbf16>, vector<8x8xbf16>, vector<8x8xf32> -> vector<8x8xf32>
    %cst_41 = arith.constant 0.353553385 : f32
    %102 = vector.broadcast %cst_41 : f32 to vector<8x8xf32>
    %103 = arith.mulf %101, %102 : vector<8x8xf32>
    %cst_42 = arith.constant 0.000000e+00 : f32
    %104 = vector.broadcast %cst_42 : f32 to vector<8x8xf32>
    %105 = arith.cmpf oeq, %41, %104 : vector<8x8xf32>
    %cst_43 = arith.constant -1.000000e+09 : f32
    %106 = vector.broadcast %cst_43 : f32 to vector<8x8xf32>
    %107 = arith.select %105, %106, %103 : vector<8x8xi1>, vector<8x8xf32>
    %cst_44 = arith.constant dense<0xFF800000> : vector<8xf32>
    %108 = vector.multi_reduction <maximumf>, %107, %cst_44 [1] : vector<8x8xf32> to vector<8xf32>
    %109 = vector.shape_cast %108 : vector<8xf32> to vector<8x1xf32>
    %110 = vector.broadcast %109 : vector<8x1xf32> to vector<8x8xf32>
    %111 = arith.subf %107, %110 : vector<8x8xf32>
    %112 = math.exp %111 : vector<8x8xf32>
    %cst_45 = arith.constant dense<0.000000e+00> : vector<8xf32>
    %113 = vector.multi_reduction <add>, %112, %cst_45 [1] : vector<8x8xf32> to vector<8xf32>
    %114 = vector.shape_cast %113 : vector<8xf32> to vector<8x1xf32>
    %115 = arith.truncf %112 : vector<8x8xf32> to vector<8x8xbf16>
    %cst_46 = arith.constant dense<0.000000e+00> : vector<8x8xf32>
    %116 = tpu.matmul %115, %99, %cst_46 {dimension_numbers = #tpu.dot_dimension_numbers<[1], [0], [0], [1], [0, 0, 1, 1], [], []>} : vector<8x8xbf16>, vector<8x8xbf16>, vector<8x8xf32> -> vector<8x8xf32>
    %117 = tpu.reciprocal %114 {approx = true} : vector<8x1xf32> -> vector<8x1xf32>
    %118 = vector.broadcast %117 : vector<8x1xf32> to vector<8x8xf32>
    %119 = arith.mulf %116, %118 : vector<8x8xf32>
    %120 = vector.extract_strided_slice %29 {offsets = [0, 24], sizes = [8, 8], strides = [1, 1]} : vector<8x32xf32> to vector<8x8xf32>
    %121 = arith.truncf %120 : vector<8x8xf32> to vector<8x8xbf16>
    %122 = vector.extract_strided_slice %38 {offsets = [0, 24], sizes = [8, 8], strides = [1, 1]} : vector<8x32xf32> to vector<8x8xf32>
    %123 = arith.truncf %122 : vector<8x8xf32> to vector<8x8xbf16>
    %124 = vector.extract_strided_slice %39 {offsets = [0, 24], sizes = [8, 8], strides = [1, 1]} : vector<8x32xf32> to vector<8x8xf32>
    %125 = arith.truncf %124 : vector<8x8xf32> to vector<8x8xbf16>
    %126 = tpu.transpose %123, [1, 0] : vector<8x8xbf16> -> vector<8x8xbf16>
    %cst_47 = arith.constant dense<0.000000e+00> : vector<8x8xf32>
    %127 = tpu.matmul %121, %126, %cst_47 {dimension_numbers = #tpu.dot_dimension_numbers<[1], [0], [0], [1], [0, 0, 1, 1], [], []>} : vector<8x8xbf16>, vector<8x8xbf16>, vector<8x8xf32> -> vector<8x8xf32>
    %cst_48 = arith.constant 0.353553385 : f32
    %128 = vector.broadcast %cst_48 : f32 to vector<8x8xf32>
    %129 = arith.mulf %127, %128 : vector<8x8xf32>
    %cst_49 = arith.constant 0.000000e+00 : f32
    %130 = vector.broadcast %cst_49 : f32 to vector<8x8xf32>
    %131 = arith.cmpf oeq, %41, %130 : vector<8x8xf32>
    %cst_50 = arith.constant -1.000000e+09 : f32
    %132 = vector.broadcast %cst_50 : f32 to vector<8x8xf32>
    %133 = arith.select %131, %132, %129 : vector<8x8xi1>, vector<8x8xf32>
    %cst_51 = arith.constant dense<0xFF800000> : vector<8xf32>
    %134 = vector.multi_reduction <maximumf>, %133, %cst_51 [1] : vector<8x8xf32> to vector<8xf32>
    %135 = vector.shape_cast %134 : vector<8xf32> to vector<8x1xf32>
    %136 = vector.broadcast %135 : vector<8x1xf32> to vector<8x8xf32>
    %137 = arith.subf %133, %136 : vector<8x8xf32>
    %138 = math.exp %137 : vector<8x8xf32>
    %cst_52 = arith.constant dense<0.000000e+00> : vector<8xf32>
    %139 = vector.multi_reduction <add>, %138, %cst_52 [1] : vector<8x8xf32> to vector<8xf32>
    %140 = vector.shape_cast %139 : vector<8xf32> to vector<8x1xf32>
    %141 = arith.truncf %138 : vector<8x8xf32> to vector<8x8xbf16>
    %cst_53 = arith.constant dense<0.000000e+00> : vector<8x8xf32>
    %142 = tpu.matmul %141, %125, %cst_53 {dimension_numbers = #tpu.dot_dimension_numbers<[1], [0], [0], [1], [0, 0, 1, 1], [], []>} : vector<8x8xbf16>, vector<8x8xbf16>, vector<8x8xf32> -> vector<8x8xf32>
    %143 = tpu.reciprocal %140 {approx = true} : vector<8x1xf32> -> vector<8x1xf32>
    %144 = vector.broadcast %143 : vector<8x1xf32> to vector<8x8xf32>
    %145 = arith.mulf %142, %144 : vector<8x8xf32>
    %146 = tpu.concatenate %67, %93, %119, %145 in 1 : vector<8x8xf32>, vector<8x8xf32>, vector<8x8xf32>, vector<8x8xf32> -> vector<8x32xf32>
    %147 = arith.truncf %146 : vector<8x32xf32> to vector<8x32xbf16>
    %c0_54 = arith.constant 0 : index
    %c0_55 = arith.constant 0 : index
    %148 = vector.load %arg10[%c0_54, %c0_55] : memref<32x32xbf16, #tpu.memory_space<vmem>>, vector<32x32xbf16>
    %cst_56 = arith.constant dense<0.000000e+00> : vector<8x32xf32>
    %149 = tpu.matmul %147, %148, %cst_56 {dimension_numbers = #tpu.dot_dimension_numbers<[1], [0], [0], [1], [0, 0, 1, 1], [], []>} : vector<8x32xbf16>, vector<32x32xbf16>, vector<8x32xf32> -> vector<8x32xf32>
    %c0_57 = arith.constant 0 : index
    %c0_58 = arith.constant 0 : index
    %150 = vector.load %arg11[%c0_57, %c0_58] : memref<1x32xf32, #tpu.memory_space<vmem>>, vector<1x32xf32>
    %151 = vector.broadcast %150 : vector<1x32xf32> to vector<8x32xf32>
    %152 = arith.addf %149, %151 : vector<8x32xf32>
    %153 = arith.addf %152, %1 : vector<8x32xf32>
    %c0_59 = arith.constant 0 : index
    %c0_60 = arith.constant 0 : index
    %c0_61 = arith.constant 0 : index
    %154 = vector.load %arg12[%c0_59, %c0_60, %c0_61] : memref<1x8x32xf32, #tpu.memory_space<vmem>>, vector<1x8x32xf32>
    %155 = vector.shape_cast %154 : vector<1x8x32xf32> to vector<8x32xf32>
    %156 = vector.shape_cast %153 : vector<8x32xf32> to vector<1x8x32xf32>
    tpu.vector_store %arg12[%c0_59, %c0_60, %c0_61], %156 {strides = array<i32>} : memref<1x8x32xf32, #tpu.memory_space<vmem>>, vector<1x8x32xf32>,
    return
  }
  func.func @transform_0(%arg0: i32) -> (i32, i32, i32) {
    %c0_i32 = arith.constant 0 : i32
    %c0_i32_0 = arith.constant 0 : i32
    %c0_i32_1 = arith.constant 0 : i32
    return %arg0, %c0_i32, %c0_i32_0 : i32, i32, i32
  }
  func.func @transform_1(%arg0: i32) -> (i32, i32, i32) {
    %c0_i32 = arith.constant 0 : i32
    %c0_i32_0 = arith.constant 0 : i32
    %c0_i32_1 = arith.constant 0 : i32
    return %arg0, %c0_i32, %c0_i32_0 : i32, i32, i32
  }
  func.func @transform_2(%arg0: i32) -> (i32, i32, i32) {
    %c0_i32 = arith.constant 0 : i32
    %c0_i32_0 = arith.constant 0 : i32
    %c0_i32_1 = arith.constant 0 : i32
    return %arg0, %c0_i32, %c0_i32_0 : i32, i32, i32
  }
  func.func @transform_3(%arg0: i32) -> (i32, i32) {
    %c0_i32 = arith.constant 0 : i32
    %c0_i32_0 = arith.constant 0 : i32
    %c0_i32_1 = arith.constant 0 : i32
    return %c0_i32, %c0_i32_0 : i32, i32
  }
  func.func @transform_4(%arg0: i32) -> (i32, i32) {
    %c0_i32 = arith.constant 0 : i32
    %c0_i32_0 = arith.constant 0 : i32
    %c0_i32_1 = arith.constant 0 : i32
    return %c0_i32, %c0_i32_0 : i32, i32
  }
  func.func @transform_5(%arg0: i32) -> (i32, i32) {
    %c0_i32 = arith.constant 0 : i32
    %c0_i32_0 = arith.constant 0 : i32
    %c0_i32_1 = arith.constant 0 : i32
    return %c0_i32, %c0_i32_0 : i32, i32
  }
  func.func @transform_6(%arg0: i32) -> (i32, i32) {
    %c0_i32 = arith.constant 0 : i32
    %c0_i32_0 = arith.constant 0 : i32
    %c0_i32_1 = arith.constant 0 : i32
    return %c0_i32, %c0_i32_0 : i32, i32
  }
  func.func @transform_7(%arg0: i32) -> (i32, i32) {
    %c0_i32 = arith.constant 0 : i32
    %c0_i32_0 = arith.constant 0 : i32
    %c0_i32_1 = arith.constant 0 : i32
    return %c0_i32, %c0_i32_0 : i32, i32
  }
  func.func @transform_8(%arg0: i32) -> (i32, i32) {
    %c0_i32 = arith.constant 0 : i32
    %c0_i32_0 = arith.constant 0 : i32
    %c0_i32_1 = arith.constant 0 : i32
    return %c0_i32, %c0_i32_0 : i32, i32
  }
  func.func @transform_9(%arg0: i32) -> (i32, i32) {
    %c0_i32 = arith.constant 0 : i32
    %c0_i32_0 = arith.constant 0 : i32
    %c0_i32_1 = arith.constant 0 : i32
    return %c0_i32, %c0_i32_0 : i32, i32
  }
  func.func @transform_10(%arg0: i32) -> (i32, i32) {
    %c0_i32 = arith.constant 0 : i32
    %c0_i32_0 = arith.constant 0 : i32
    %c0_i32_1 = arith.constant 0 : i32
    return %c0_i32, %c0_i32_0 : i32, i32
  }
  func.func @transform_11(%arg0: i32) -> (i32, i32, i32) {
    %c0_i32 = arith.constant 0 : i32
    %c0_i32_0 = arith.constant 0 : i32
    %c0_i32_1 = arith.constant 0 : i32
    return %arg0, %c0_i32, %c0_i32_0 : i32, i32, i32
  }
}

module attributes {stable_mosaic.version = 11 : i64} {
  func.func @_ffn_sublayer_kernel(%arg0: i32, %arg1: memref<16x32xf32, #tpu.memory_space<vmem>>, %arg2: memref<1x32xf32, #tpu.memory_space<vmem>>, %arg3: memref<1x32xf32, #tpu.memory_space<vmem>>, %arg4: memref<32x64xbf16, #tpu.memory_space<vmem>>, %arg5: memref<1x64xf32, #tpu.memory_space<vmem>>, %arg6: memref<64x32xbf16, #tpu.memory_space<vmem>>, %arg7: memref<1x32xf32, #tpu.memory_space<vmem>>, %arg8: memref<16x32xf32, #tpu.memory_space<vmem>>) attributes {dimension_semantics = [#tpu.dimension_semantics<parallel>], iteration_bounds = array<i64: 1>, scalar_prefetch = 0 : i64, scratch_operands = 0 : i64, tpu.core_type = #tpu.core_type<tc>, window_params = [{transform_indices = @transform_0, window_bounds = array<i64: 16, 32>}, {pipeline_mode = #tpu.pipeline_mode<synchronous>, transform_indices = @transform_1, window_bounds = array<i64: 1, 32>}, {pipeline_mode = #tpu.pipeline_mode<synchronous>, transform_indices = @transform_2, window_bounds = array<i64: 1, 32>}, {pipeline_mode = #tpu.pipeline_mode<synchronous>, transform_indices = @transform_3, window_bounds = array<i64: 32, 64>}, {pipeline_mode = #tpu.pipeline_mode<synchronous>, transform_indices = @transform_4, window_bounds = array<i64: 1, 64>}, {pipeline_mode = #tpu.pipeline_mode<synchronous>, transform_indices = @transform_5, window_bounds = array<i64: 64, 32>}, {pipeline_mode = #tpu.pipeline_mode<synchronous>, transform_indices = @transform_6, window_bounds = array<i64: 1, 32>}, {transform_indices = @transform_7, window_bounds = array<i64: 16, 32>}]} {
    %c0 = arith.constant 0 : index
    %c0_0 = arith.constant 0 : index
    %0 = vector.load %arg1[%c0, %c0_0] : memref<16x32xf32, #tpu.memory_space<vmem>>, vector<16x32xf32>
    %c0_1 = arith.constant 0 : index
    %c0_2 = arith.constant 0 : index
    %1 = vector.load %arg2[%c0_1, %c0_2] : memref<1x32xf32, #tpu.memory_space<vmem>>, vector<1x32xf32>
    %c0_3 = arith.constant 0 : index
    %c0_4 = arith.constant 0 : index
    %2 = vector.load %arg3[%c0_3, %c0_4] : memref<1x32xf32, #tpu.memory_space<vmem>>, vector<1x32xf32>
    %cst = arith.constant dense<0.000000e+00> : vector<16xf32>
    %3 = vector.multi_reduction <add>, %0, %cst [1] : vector<16x32xf32> to vector<16xf32>
    %4 = vector.shape_cast %3 : vector<16xf32> to vector<16x1xf32>
    %cst_5 = arith.constant 3.200000e+01 : f32
    %5 = vector.broadcast %cst_5 : f32 to vector<16x1xf32>
    %6 = arith.divf %4, %5 : vector<16x1xf32>
    %7 = vector.broadcast %6 : vector<16x1xf32> to vector<16x32xf32>
    %8 = arith.subf %0, %7 : vector<16x32xf32>
    %9 = arith.mulf %8, %8 : vector<16x32xf32>
    %cst_6 = arith.constant dense<0.000000e+00> : vector<16xf32>
    %10 = vector.multi_reduction <add>, %9, %cst_6 [1] : vector<16x32xf32> to vector<16xf32>
    %11 = vector.shape_cast %10 : vector<16xf32> to vector<16x1xf32>
    %cst_7 = arith.constant 3.100000e+01 : f32
    %12 = vector.broadcast %cst_7 : f32 to vector<16x1xf32>
    %13 = arith.divf %11, %12 : vector<16x1xf32>
    %14 = vector.broadcast %1 : vector<1x32xf32> to vector<16x32xf32>
    %15 = arith.mulf %14, %8 : vector<16x32xf32>
    %16 = math.sqrt %13 : vector<16x1xf32>
    %cst_8 = arith.constant 9.99999997E-7 : f32
    %17 = vector.broadcast %cst_8 : f32 to vector<16x1xf32>
    %18 = arith.addf %16, %17 : vector<16x1xf32>
    %19 = vector.broadcast %18 : vector<16x1xf32> to vector<16x32xf32>
    %20 = arith.divf %15, %19 : vector<16x32xf32>
    %21 = vector.broadcast %2 : vector<1x32xf32> to vector<16x32xf32>
    %22 = arith.addf %20, %21 : vector<16x32xf32>
    %23 = arith.truncf %22 : vector<16x32xf32> to vector<16x32xbf16>
    %c0_9 = arith.constant 0 : index
    %c0_10 = arith.constant 0 : index
    %24 = vector.load %arg4[%c0_9, %c0_10] : memref<32x64xbf16, #tpu.memory_space<vmem>>, vector<32x64xbf16>
    %cst_11 = arith.constant dense<0.000000e+00> : vector<16x64xf32>
    %25 = tpu.matmul %23, %24, %cst_11 {dimension_numbers = #tpu.dot_dimension_numbers<[1], [0], [0], [1], [0, 0, 1, 1], [], []>} : vector<16x32xbf16>, vector<32x64xbf16>, vector<16x64xf32> -> vector<16x64xf32>
    %c0_12 = arith.constant 0 : index
    %c0_13 = arith.constant 0 : index
    %26 = vector.load %arg5[%c0_12, %c0_13] : memref<1x64xf32, #tpu.memory_space<vmem>>, vector<1x64xf32>
    %27 = vector.broadcast %26 : vector<1x64xf32> to vector<16x64xf32>
    %28 = arith.addf %25, %27 : vector<16x64xf32>
    %cst_14 = arith.constant 0.000000e+00 : f32
    %29 = vector.broadcast %cst_14 : f32 to vector<16x64xf32>
    %30 = arith.maximumf %28, %29 : vector<16x64xf32>
    %31 = arith.truncf %30 : vector<16x64xf32> to vector<16x64xbf16>
    %c0_15 = arith.constant 0 : index
    %c0_16 = arith.constant 0 : index
    %32 = vector.load %arg6[%c0_15, %c0_16] : memref<64x32xbf16, #tpu.memory_space<vmem>>, vector<64x32xbf16>
    %cst_17 = arith.constant dense<0.000000e+00> : vector<16x32xf32>
    %33 = tpu.matmul %31, %32, %cst_17 {dimension_numbers = #tpu.dot_dimension_numbers<[1], [0], [0], [1], [0, 0, 1, 1], [], []>} : vector<16x64xbf16>, vector<64x32xbf16>, vector<16x32xf32> -> vector<16x32xf32>
    %c0_18 = arith.constant 0 : index
    %c0_19 = arith.constant 0 : index
    %34 = vector.load %arg7[%c0_18, %c0_19] : memref<1x32xf32, #tpu.memory_space<vmem>>, vector<1x32xf32>
    %35 = vector.broadcast %34 : vector<1x32xf32> to vector<16x32xf32>
    %36 = arith.addf %33, %35 : vector<16x32xf32>
    %37 = arith.addf %36, %0 : vector<16x32xf32>
    %c0_20 = arith.constant 0 : index
    %c0_21 = arith.constant 0 : index
    %38 = vector.load %arg8[%c0_20, %c0_21] : memref<16x32xf32, #tpu.memory_space<vmem>>, vector<16x32xf32>
    tpu.vector_store %arg8[%c0_20, %c0_21], %37 {strides = array<i32>} : memref<16x32xf32, #tpu.memory_space<vmem>>, vector<16x32xf32>,
    return
  }
  func.func @transform_0(%arg0: i32) -> (i32, i32) {
    %c0_i32 = arith.constant 0 : i32
    %c0_i32_0 = arith.constant 0 : i32
    return %arg0, %c0_i32 : i32, i32
  }
  func.func @transform_1(%arg0: i32) -> (i32, i32) {
    %c0_i32 = arith.constant 0 : i32
    %c0_i32_0 = arith.constant 0 : i32
    %c0_i32_1 = arith.constant 0 : i32
    return %c0_i32, %c0_i32_0 : i32, i32
  }
  func.func @transform_2(%arg0: i32) -> (i32, i32) {
    %c0_i32 = arith.constant 0 : i32
    %c0_i32_0 = arith.constant 0 : i32
    %c0_i32_1 = arith.constant 0 : i32
    return %c0_i32, %c0_i32_0 : i32, i32
  }
  func.func @transform_3(%arg0: i32) -> (i32, i32) {
    %c0_i32 = arith.constant 0 : i32
    %c0_i32_0 = arith.constant 0 : i32
    %c0_i32_1 = arith.constant 0 : i32
    return %c0_i32, %c0_i32_0 : i32, i32
  }
  func.func @transform_4(%arg0: i32) -> (i32, i32) {
    %c0_i32 = arith.constant 0 : i32
    %c0_i32_0 = arith.constant 0 : i32
    %c0_i32_1 = arith.constant 0 : i32
    return %c0_i32, %c0_i32_0 : i32, i32
  }
  func.func @transform_5(%arg0: i32) -> (i32, i32) {
    %c0_i32 = arith.constant 0 : i32
    %c0_i32_0 = arith.constant 0 : i32
    %c0_i32_1 = arith.constant 0 : i32
    return %c0_i32, %c0_i32_0 : i32, i32
  }
  func.func @transform_6(%arg0: i32) -> (i32, i32) {
    %c0_i32 = arith.constant 0 : i32
    %c0_i32_0 = arith.constant 0 : i32
    %c0_i32_1 = arith.constant 0 : i32
    return %c0_i32, %c0_i32_0 : i32, i32
  }
  func.func @transform_7(%arg0: i32) -> (i32, i32) {
    %c0_i32 = arith.constant 0 : i32
    %c0_i32_0 = arith.constant 0 : i32
    return %arg0, %c0_i32 : i32, i32
  }
}

module attributes {stable_mosaic.version = 11 : i64} {
  func.func @_layernorm_kernel(%arg0: i32, %arg1: memref<16x32xf32, #tpu.memory_space<vmem>>, %arg2: memref<1x32xf32, #tpu.memory_space<vmem>>, %arg3: memref<1x32xf32, #tpu.memory_space<vmem>>, %arg4: memref<16x32xf32, #tpu.memory_space<vmem>>) attributes {dimension_semantics = [#tpu.dimension_semantics<parallel>], iteration_bounds = array<i64: 1>, scalar_prefetch = 0 : i64, scratch_operands = 0 : i64, tpu.core_type = #tpu.core_type<tc>, window_params = [{transform_indices = @transform_0, window_bounds = array<i64: 16, 32>}, {pipeline_mode = #tpu.pipeline_mode<synchronous>, transform_indices = @transform_1, window_bounds = array<i64: 1, 32>}, {pipeline_mode = #tpu.pipeline_mode<synchronous>, transform_indices = @transform_2, window_bounds = array<i64: 1, 32>}, {transform_indices = @transform_3, window_bounds = array<i64: 16, 32>}]} {
    %c0 = arith.constant 0 : index
    %c0_0 = arith.constant 0 : index
    %0 = vector.load %arg1[%c0, %c0_0] : memref<16x32xf32, #tpu.memory_space<vmem>>, vector<16x32xf32>
    %c0_1 = arith.constant 0 : index
    %c0_2 = arith.constant 0 : index
    %1 = vector.load %arg2[%c0_1, %c0_2] : memref<1x32xf32, #tpu.memory_space<vmem>>, vector<1x32xf32>
    %c0_3 = arith.constant 0 : index
    %c0_4 = arith.constant 0 : index
    %2 = vector.load %arg3[%c0_3, %c0_4] : memref<1x32xf32, #tpu.memory_space<vmem>>, vector<1x32xf32>
    %cst = arith.constant dense<0.000000e+00> : vector<16xf32>
    %3 = vector.multi_reduction <add>, %0, %cst [1] : vector<16x32xf32> to vector<16xf32>
    %4 = vector.shape_cast %3 : vector<16xf32> to vector<16x1xf32>
    %cst_5 = arith.constant 3.200000e+01 : f32
    %5 = vector.broadcast %cst_5 : f32 to vector<16x1xf32>
    %6 = arith.divf %4, %5 : vector<16x1xf32>
    %7 = vector.broadcast %6 : vector<16x1xf32> to vector<16x32xf32>
    %8 = arith.subf %0, %7 : vector<16x32xf32>
    %9 = arith.mulf %8, %8 : vector<16x32xf32>
    %cst_6 = arith.constant dense<0.000000e+00> : vector<16xf32>
    %10 = vector.multi_reduction <add>, %9, %cst_6 [1] : vector<16x32xf32> to vector<16xf32>
    %11 = vector.shape_cast %10 : vector<16xf32> to vector<16x1xf32>
    %cst_7 = arith.constant 3.100000e+01 : f32
    %12 = vector.broadcast %cst_7 : f32 to vector<16x1xf32>
    %13 = arith.divf %11, %12 : vector<16x1xf32>
    %14 = vector.broadcast %1 : vector<1x32xf32> to vector<16x32xf32>
    %15 = arith.mulf %14, %8 : vector<16x32xf32>
    %16 = math.sqrt %13 : vector<16x1xf32>
    %cst_8 = arith.constant 9.99999997E-7 : f32
    %17 = vector.broadcast %cst_8 : f32 to vector<16x1xf32>
    %18 = arith.addf %16, %17 : vector<16x1xf32>
    %19 = vector.broadcast %18 : vector<16x1xf32> to vector<16x32xf32>
    %20 = arith.divf %15, %19 : vector<16x32xf32>
    %21 = vector.broadcast %2 : vector<1x32xf32> to vector<16x32xf32>
    %22 = arith.addf %20, %21 : vector<16x32xf32>
    %c0_9 = arith.constant 0 : index
    %c0_10 = arith.constant 0 : index
    %23 = vector.load %arg4[%c0_9, %c0_10] : memref<16x32xf32, #tpu.memory_space<vmem>>, vector<16x32xf32>
    tpu.vector_store %arg4[%c0_9, %c0_10], %22 {strides = array<i32>} : memref<16x32xf32, #tpu.memory_space<vmem>>, vector<16x32xf32>,
    return
  }
  func.func @transform_0(%arg0: i32) -> (i32, i32) {
    %c0_i32 = arith.constant 0 : i32
    %c0_i32_0 = arith.constant 0 : i32
    return %arg0, %c0_i32 : i32, i32
  }
  func.func @transform_1(%arg0: i32) -> (i32, i32) {
    %c0_i32 = arith.constant 0 : i32
    %c0_i32_0 = arith.constant 0 : i32
    %c0_i32_1 = arith.constant 0 : i32
    return %c0_i32, %c0_i32_0 : i32, i32
  }
  func.func @transform_2(%arg0: i32) -> (i32, i32) {
    %c0_i32 = arith.constant 0 : i32
    %c0_i32_0 = arith.constant 0 : i32
    %c0_i32_1 = arith.constant 0 : i32
    return %c0_i32, %c0_i32_0 : i32, i32
  }
  func.func @transform_3(%arg0: i32) -> (i32, i32) {
    %c0_i32 = arith.constant 0 : i32
    %c0_i32_0 = arith.constant 0 : i32
    return %arg0, %c0_i32 : i32, i32
  }
}

</mosaic_0001>

<llo_original>
// kernel: decoder_forward.9
$region0: #{decoder_forward.9}
  #allocation0 [shape = 'u32[]', space=smem, size = 0x4, offset = 0x4, fixed_abs, tag = 'smem constant byte address 0x4 - core index']
  #allocation1 [shape = 'u32[72,128]{1,0:T(1,128)}', space=vmem, size = 0x9000, scoped, tag = 'internal scratch']
  %s0 = inlined_call_operand.vmem [shape: f32[16,32], index: 0, kind: input, shape index: {}, may-alias: {0,7}]
  %s1 = inlined_call_operand.hbm [shape: f32[1,32], index: 1, kind: input, shape index: {}]
  %s2 = inlined_call_operand.hbm [shape: f32[1,32], index: 2, kind: input, shape index: {}]
  %s3 = inlined_call_operand.vmem [shape: bf16[32,64], index: 3, kind: input, shape index: {}]
  %s4 = inlined_call_operand.vmem [shape: f32[1,64], index: 4, kind: input, shape index: {}]
  %s5 = inlined_call_operand.vmem [shape: bf16[64,32], index: 5, kind: input, shape index: {}]
  %s6 = inlined_call_operand.vmem [shape: f32[1,32], index: 6, kind: input, shape index: {}]
  %s7 = inlined_call_operand.vmem [shape: f32[16,32], index: 7, kind: output, shape index: {}, may-alias: {0,7}]
  %s8 = sld [smem:[#allocation0]]
  $region46: #{decoder_forward.9} parent=0
    _
  %s10 = ssub.s32 1, %s8
  %s11 = scalar_select 0, %s10, %s8
  $region1: #{decoder_forward.9} parent=0
    #allocation2 [shape = 'u8[512]{0}', space=vmem, size = 0x400, scoped, tag = 'input window, operand 1, single buffered']
    #allocation3 [shape = 's32[1]{0}', space=sflag, size = 0x4, scoped, tag = 'scoped memory for decoder_forward.9']
    #allocation4 [shape = 'u8[512]{0}', space=vmem, size = 0x400, scoped, tag = 'input window, operand 2, single buffered']
    #allocation5 [shape = 's32[1]{0}', space=sflag, size = 0x4, scoped, tag = 'scoped memory for decoder_forward.9']
    %12 = vsyncpa [#allocation3], 0
    %13 = vsyncpa [#allocation5], 0
    // Predicated region
    $region2: #{decoder_forward.9} parent=1 // pred_check
      _
    $region3: #{decoder_forward.9} parent=1 // pred_check_branch
      %15 = sbr.rel (0) target = $region5
    $region4: #{decoder_forward.9} parent=1 // pred_region
      _
    $region5: #{decoder_forward.9} parent=1 // pred_fallthru
      _
    // Predicated region
    $region6: #{decoder_forward.9} parent=1 // pred_check
      _
    $region7: #{decoder_forward.9} parent=1 // pred_check_branch
      %17 = sbr.rel (0) target = $region9
    $region8: #{decoder_forward.9} parent=1 // pred_region
      %19 = vsyncadd [#allocation3], 0
      %s21 = sshll.u32 %s1, 4
      %s22 = int_to_ptr.hbm [resolvable:$true] %s21
      %s23 = sshll.u32 [#allocation2], 4
      %s24 = int_to_ptr.vmem [resolvable:$true] %s23
      %26 = dma.hbm_to_vmem [thread:$0]  %s22, 16, %s24, [#allocation3]
    $region9: #{decoder_forward.9} parent=1 // pred_fallthru
      _
    // Predicated region
    $region10: #{decoder_forward.9} parent=1 // pred_check
      _
    $region11: #{decoder_forward.9} parent=1 // pred_check_branch
      %28 = sbr.rel (0) target = $region13
    $region12: #{decoder_forward.9} parent=1 // pred_region
      %30 = vsyncadd [#allocation5], 0
      %s32 = sshll.u32 %s2, 4
      %s33 = int_to_ptr.hbm [resolvable:$true] %s32
      %s34 = sshll.u32 [#allocation4], 4
      %s35 = int_to_ptr.vmem [resolvable:$true] %s34
      %37 = dma.hbm_to_vmem [thread:$0]  %s33, 16, %s35, [#allocation5]
    $region13: #{decoder_forward.9} parent=1 // pred_fallthru
      _
    // Predicated region
    $region14: #{decoder_forward.9} parent=1 // pred_check
      _
    $region15: #{decoder_forward.9} parent=1 // pred_check_branch
      %39 = sbr.rel (0) target = $region17
    $region16: #{decoder_forward.9} parent=1 // pred_region
      _
    $region17: #{decoder_forward.9} parent=1 // pred_fallthru
      _
    // Predicated region
    $region18: #{decoder_forward.9} parent=1 // pred_check
      _
    $region19: #{decoder_forward.9} parent=1 // pred_check_branch
      %41 = sbr.rel (0) target = $region21
    $region20: #{decoder_forward.9} parent=1 // pred_region
      _
    $region21: #{decoder_forward.9} parent=1 // pred_fallthru
      _
    // Predicated region
    $region22: #{decoder_forward.9} parent=1 // pred_check
      _
    $region23: #{decoder_forward.9} parent=1 // pred_check_branch
      %43 = sbr.rel (0) target = $region25
    $region24: #{decoder_forward.9} parent=1 // pred_region
      _
    $region25: #{decoder_forward.9} parent=1 // pred_fallthru
      _
    // Predicated region
    $region26: #{decoder_forward.9} parent=1 // pred_check
      _
    $region27: #{decoder_forward.9} parent=1 // pred_check_branch
      %45 = sbr.rel (0) target = $region29
    $region28: #{decoder_forward.9} parent=1 // pred_region
      _
    $region29: #{decoder_forward.9} parent=1 // pred_fallthru
      _
    // Predicated region
    $region30: #{decoder_forward.9} parent=1 // pred_check
      _
    $region31: #{decoder_forward.9} parent=1 // pred_check_branch
      %47 = sbr.rel (0) target = $region33
    $region32: #{decoder_forward.9} parent=1 // pred_region
      %49 = dma.done [#allocation3], 16
    $region33: #{decoder_forward.9} parent=1 // pred_fallthru
      _
    // Predicated region
    $region34: #{decoder_forward.9} parent=1 // pred_check
      _
    $region35: #{decoder_forward.9} parent=1 // pred_check_branch
      %51 = sbr.rel (0) target = $region37
    $region36: #{decoder_forward.9} parent=1 // pred_region
      %53 = dma.done [#allocation5], 16
    $region37: #{decoder_forward.9} parent=1 // pred_fallthru
      _
    %v55 = vld [vmem:[%s0] sm:$0xff]
    %v56 = vld [vmem:[%s0 + $0x8] sm:$0xff]
    %v57 = vld [vmem:[#allocation2] sm:$0x1]
    %v58 = vld [vmem:[#allocation4] sm:$0x1]
    %vm59 = vcmask 261120
    %v60 = vsel %vm59, %v55, 0.0
    %61 = vadd.xlane.f32.xlu0 %v60
    %v62 = vpop.xlane.xlu0 %61
    %v63 = vsel %vm59, %v56, 0.0
    %64 = vadd.xlane.f32.xlu0 %v63
    %v65 = vpop.xlane.xlu0 %64
    %v66 = vrcp.pop 32.0
    %v67 = vmul.f32 32.0, %v66
    %v68 = vsub.f32 1.0, %v67
    %v69 = vmul.f32 %v66, %v68
    %v70 = vadd.f32 %v66, %v69
    %vm71 = vweird.f32 %v66
    %v72 = vsel %vm71, %v66, %v70
    %v73 = vmul.f32 %v62, %v72
    %v74 = vmul.f32 %v65, %v72
    %v75 = vsub.f32 %v55, %v73
    %v76 = vsub.f32 %v56, %v74
    %v77 = vmul.f32 %v75, %v75
    %v78 = vmul.f32 %v76, %v76
    %v79 = vsel %vm59, %v77, 0.0
    %80 = vadd.xlane.f32.xlu0 %v79
    %v81 = vpop.xlane.xlu0 %80
    %v82 = vsel %vm59, %v78, 0.0
    %83 = vadd.xlane.f32.xlu0 %v82
    %v84 = vpop.xlane.xlu0 %83
    %v85 = vrcp.pop 31.0
    %v86 = vmul.f32 31.0, %v85
    %v87 = vsub.f32 1.0, %v86
    %v88 = vmul.f32 %v85, %v87
    %v89 = vadd.f32 %v85, %v88
    %vm90 = vweird.f32 %v85
    %v91 = vsel %vm90, %v85, %v89
    %v92 = vmul.f32 %v81, %v91
    %v93 = vmul.f32 %v84, %v91
    %v95 = vperm.slane %v57, 0
    %v97 = vmul.f32 %v95, %v75
    %v98 = vmul.f32 %v95, %v76
    %v99 = vrsqrt.pop %v92
    %v100 = vmul.f32 %v99, %v92
    %v101 = vmul.f32 %v100, %v99
    %v102 = vmul.f32 0.5, %v101
    %v103 = vsub.f32 1.5, %v102
    %v104 = vmul.f32 %v99, %v103
    %v105 = vmul.f32 %v92, %v104
    %vm106 = vcmp.eq.f32.partialorder %v92, inf
    %v107 = vsel %vm106, %v92, %v105
    %vm108 = vcmp.eq.f32.partialorder %v92, 0.0
    %v109 = vand.u32 %v92, 2147483648
    %v110 = vsel %vm108, %v109, %v107
    %v111 = vrsqrt.pop %v93
    %v112 = vmul.f32 %v111, %v93
    %v113 = vmul.f32 %v112, %v111
    %v114 = vmul.f32 0.5, %v113
    %v115 = vsub.f32 1.5, %v114
    %v116 = vmul.f32 %v111, %v115
    %v117 = vmul.f32 %v93, %v116
    %vm118 = vcmp.eq.f32.partialorder %v93, inf
    %v119 = vsel %vm118, %v93, %v117
    %vm120 = vcmp.eq.f32.partialorder %v93, 0.0
    %v121 = vand.u32 %v93, 2147483648
    %v122 = vsel %vm120, %v121, %v119
    %v123 = vadd.f32 %v110, 1e-06
    %v124 = vadd.f32 %v122, 1e-06
    %v125 = vrcp.pop %v123
    %v126 = vmul.f32 %v123, %v125
    %v127 = vsub.f32 1.0, %v126
    %v128 = vmul.f32 %v125, %v127
    %v129 = vadd.f32 %v125, %v128
    %vm130 = vweird.f32 %v123
    %vm131 = vweird.f32 %v125
    %vm132 = vmor %vm130, %vm131
    %v133 = vsel %vm132, %v125, %v129
    %v134 = vand.u32 2147483647, %v123
    %vm135 = vcmp.eq.f32.partialorder %v134, 8.507059e+37
    %v136 = vand.u32 %v123, 2147483648
    %v137 = vor.u32 1.1754944e-38, %v136
    %v138 = vsel %vm135, %v137, %v133
    %v139 = vmul.f32 %v97, %v138
    %v140 = vrcp.pop %v124
    %v141 = vmul.f32 %v124, %v140
    %v142 = vsub.f32 1.0, %v141
    %v143 = vmul.f32 %v140, %v142
    %v144 = vadd.f32 %v140, %v143
    %vm145 = vweird.f32 %v124
    %vm146 = vweird.f32 %v140
    %vm147 = vmor %vm145, %vm146
    %v148 = vsel %vm147, %v140, %v144
    %v149 = vand.u32 2147483647, %v124
    %vm150 = vcmp.eq.f32.partialorder %v149, 8.507059e+37
    %v151 = vand.u32 %v124, 2147483648
    %v152 = vor.u32 1.1754944e-38, %v151
    %v153 = vsel %vm150, %v152, %v148
    %v154 = vmul.f32 %v98, %v153
    %v156 = vperm.slane %v58, 0
    %v158 = vadd.f32 %v139, %v156
    %v159 = vadd.f32 %v154, %v156
    %v160 = vpack.c.bf16 %v159, %v158
    %v161 = vld [vmem:[%s3] sm:$0xf]
    %v162 = vld [vmem:[%s3 + $0x4] sm:$0xf]
    %v163 = vld [vmem:[%s3 + $0x8] sm:$0xf]
    %v164 = vld [vmem:[%s3 + $0xc] sm:$0xf]
    %v165 = vld [vmem:[%s4] sm:$0x1]
    %v167 = vperm.slane %v165, 0
    %v173 = vunpack.c.l.b16 %v161
    %v174 = vunpack.c.l.b16 %v162
    %v175 = vunpack.c.l.b16 %v163
    %v176 = vunpack.c.l.b16 %v164
    %v177 = vpack.c.b16 %v174, %v173
    %v178 = vpack.c.b16 %v176, %v175
    %v182 = vsel %vm59, %v160, 0
    %184 = vmatpush.bf16.msra.mxu0 0
    %185 = vmatpush.bf16.msra.mxu0 0
    %186 = vmatpush.bf16.msra.mxu0 0
    %187 = vmatpush.bf16.msra.mxu0 0
    %188 = vmatpush.bf16.msra.mxu0 0
    %189 = vmatpush.bf16.msra.mxu0 0
    %190 = vmatpush.bf16.msra.mxu0 %v178
    %191 = vmatpush.bf16.msra.mxu0 %v177
    %192 = vmatmul.bf16.gmra.mxu0 %v182
    %v193 = vpop.f32.mrf.mxu0
    %v194 = vadd.f32 %v167, %v193
    %v195 = vpop.f32.mrf.mxu0
    %v196 = vadd.f32 %v167, %v195
    %197 = vdwg.mxu0
    %v198 = vmax.f32 %v194, 0.0
    %v199 = vmax.f32 %v196, 0.0
    %v200 = vpack.c.bf16 %v199, %v198
    %v201 = vld [vmem:[%s5] sm:$0xf]
    %v202 = vld [vmem:[%s5 + $0x4] sm:$0xf]
    %v203 = vld [vmem:[%s5 + $0x8] sm:$0xf]
    %v204 = vld [vmem:[%s5 + $0xc] sm:$0xf]
    %v205 = vld [vmem:[%s5 + $0x10] sm:$0xf]
    %v206 = vld [vmem:[%s5 + $0x14] sm:$0xf]
    %v207 = vld [vmem:[%s5 + $0x18] sm:$0xf]
    %v208 = vld [vmem:[%s5 + $0x1c] sm:$0xf]
    %v209 = vld [vmem:[%s6] sm:$0x1]
    %v211 = vperm.slane %v209, 0
    %v221 = vunpack.c.l.b16 %v201
    %v222 = vunpack.c.l.b16 %v202
    %v223 = vunpack.c.l.b16 %v203
    %v224 = vunpack.c.l.b16 %v204
    %v225 = vunpack.c.l.b16 %v205
    %v226 = vunpack.c.l.b16 %v206
    %v227 = vunpack.c.l.b16 %v207
    %v228 = vunpack.c.l.b16 %v208
    %v229 = vpack.c.b16 %v222, %v221
    %v230 = vpack.c.b16 %v224, %v223
    %v231 = vpack.c.b16 %v226, %v225
    %v232 = vpack.c.b16 %v228, %v227
    %vm237 = vcmask 523264
    %v239 = vsel %vm237, %v200, 0
    %241 = vmatpush.bf16.msra.mxu0 0
    %242 = vmatpush.bf16.msra.mxu0 0
    %243 = vmatpush.bf16.msra.mxu0 0
    %244 = vmatpush.bf16.msra.mxu0 0
    %245 = vmatpush.bf16.msra.mxu0 %v232
    %246 = vmatpush.bf16.msra.mxu0 %v231
    %247 = vmatpush.bf16.msra.mxu0 %v230
    %248 = vmatpush.bf16.msra.mxu0 %v229
    %249 = vmatmul.bf16.gmra.mxu0 %v239
    %v250 = vpop.f32.mrf.mxu0
    %v251 = vadd.f32 %v211, %v250
    %v252 = vpop.f32.mrf.mxu0
    %v253 = vadd.f32 %v211, %v252
    %254 = vdwg.mxu0
    %v255 = vadd.f32 %v251, %v55
    %v256 = vadd.f32 %v253, %v56
    %257 = vst.msk [vmem:[%s7] sm:$0xff] %vm59, %v255
    %258 = vst.msk [vmem:[%s7 + $0x8] sm:$0xff] %vm59, %v256
    // Predicated region
    $region38: #{decoder_forward.9} parent=1 // pred_check
      _
    $region39: #{decoder_forward.9} parent=1 // pred_check_branch
      %260 = sbr.rel (0) target = $region41
    $region40: #{decoder_forward.9} parent=1 // pred_region
      _
    $region41: #{decoder_forward.9} parent=1 // pred_fallthru
      _
    // Predicated region
    $region42: #{decoder_forward.9} parent=1 // pred_check
      _
    $region43: #{decoder_forward.9} parent=1 // pred_check_branch
      %262 = sbr.rel (0) target = $region45
    $region44: #{decoder_forward.9} parent=1 // pred_region
      _
    $region45: #{decoder_forward.9} parent=1 // pred_fallthru
      _
    %263 = vsyncpa [#allocation3], 1
    %264 = vsyncpa [#allocation5], 1

// kernel: decoder_forward.7
$region0: #{decoder_forward.7}
  #allocation0 [shape = 'u32[]', space=smem, size = 0x4, offset = 0x4, fixed_abs, tag = 'smem constant byte address 0x4 - core index']
  #allocation1 [shape = 'u32[72,128]{1,0:T(1,128)}', space=vmem, size = 0x9000, scoped, tag = 'internal scratch']
  %s0 = inlined_call_operand.vmem [shape: f32[2,8,32], index: 0, kind: input, shape index: {}, may-alias: {0,8}]
  %s1 = inlined_call_operand.hbm [shape: f32[2,8,8], index: 1, kind: input, shape index: {}]
  %s2 = inlined_call_operand.vmem [shape: f32[1,32], index: 2, kind: input, shape index: {}]
  %s3 = inlined_call_operand.vmem [shape: f32[1,32], index: 3, kind: input, shape index: {}]
  %s4 = inlined_call_operand.hbm [shape: bf16[32,96], index: 4, kind: input, shape index: {}]
  %s5 = inlined_call_operand.hbm [shape: f32[1,96], index: 5, kind: input, shape index: {}]
  %s6 = inlined_call_operand.hbm [shape: bf16[32,32], index: 6, kind: input, shape index: {}]
  %s7 = inlined_call_operand.hbm [shape: f32[1,32], index: 7, kind: input, shape index: {}]
  %s8 = inlined_call_operand.vmem [shape: f32[2,8,32], index: 8, kind: output, shape index: {}, may-alias: {0,8}]
  %s9 = sld [smem:[#allocation0]]
  $region85: #{decoder_forward.7} parent=0
    _
  %s11 = ssub.s32 1, %s9
  %s12 = scalar_select 0, %s11, %s9
  $region1: #{decoder_forward.7} parent=0
    #allocation2 [shape = 'u8[8192]{0}', space=vmem, size = 0x2000, scoped, tag = 'input window, operand 1']
    #allocation3 [shape = 's32[2]{0}', space=sflag, size = 0x8, scoped, tag = 'scoped memory for decoder_forward.7']
    #allocation4 [shape = 'u8[8192]{0}', space=vmem, size = 0x2000, scoped, tag = 'input window, operand 4, single buffered']
    #allocation5 [shape = 's32[1]{0}', space=sflag, size = 0x4, scoped, tag = 'scoped memory for decoder_forward.7']
    #allocation6 [shape = 'u8[512]{0}', space=vmem, size = 0x400, scoped, tag = 'input window, operand 5, single buffered']
    #allocation7 [shape = 'u8[8192]{0}', space=vmem, size = 0x2000, scoped, tag = 'input window, operand 6, single buffered']
    #allocation8 [shape = 's32[1]{0}', space=sflag, size = 0x4, scoped, tag = 'scoped memory for decoder_forward.7']
    #allocation9 [shape = 'u8[512]{0}', space=vmem, size = 0x400, scoped, tag = 'input window, operand 7, single buffered']
    %13 = vsyncpa [#allocation3], 0
    %s14 = scalar_lea.sflag [#allocation3], 1
    %15 = vsyncpa %s14, 0
    %16 = vsyncpa [#allocation5], 0
    %17 = vsyncpa [#allocation8], 0
    loop: start=0, step=1, limit=4
    $region2: #{decoder_forward.7} parent=1 // loop_pre_header
      _
    $region3: #{decoder_forward.7} parent=1 // loop_header
      %s19 = sphi 0, %s23
      %p20 = scmp.ge.s32.totalorder %s19, 4
      %s29 = sphi 0, %s31
      %s32 = sphi 0, %s29
      %s33 = sphi 0, %s32
      %s49 = sphi 0, %s33
      %s55 = sphi 0, %s57
      %s58 = sphi 0, %s55
      %s59 = sphi 0, %s58
      %s75 = sphi 0, %s59
      %s79 = sphi 0, %s79
      %s81 = sphi 0, %s79
      %s82 = sphi 0, %s81
      %s96 = sphi 0, %s82
      %s100 = sphi 0, %s100
      %s102 = sphi 0, %s100
      %s103 = sphi 0, %s102
      %s117 = sphi 0, %s103
      %s121 = sphi 0, %s121
      %s123 = sphi 0, %s121
      %s124 = sphi 0, %s123
      %s138 = sphi 0, %s124
      %s142 = sphi 0, %s142
      %s144 = sphi 0, %s142
      %s145 = sphi 0, %s144
      %s159 = sphi 0, %s145
      %s163 = sphi 0, %s163
      %s165 = sphi 0, %s163
      %s166 = sphi 0, %s165
      %s180 = sphi 0, %s166
      %s184 = sphi 0, %s184
      %s186 = sphi 0, %s184
      %s187 = sphi 0, %s186
      %s201 = sphi 0, %s187
      %s207 = sphi 0, %s209
      %s210 = sphi 0, %s207
      %s211 = sphi 0, %s210
      %s227 = sphi 0, %s211
    $region4: #{decoder_forward.7} parent=1 // loop_header_branch
      %22 = sbr.rel (%p20) target = $region8
    $region5: #{decoder_forward.7} parent=1 // loop_body
      %s24 = ssub.s32 %s19, 1
      %s25 = ssub.s32 %s19, 2
      %s26 = sadd.s32 %s19, 1
      %s27 = ssub.s32 %s19, %s26
      %p28 = scmp.eq.s32.totalorder %s27, 0
      %s30 = sadd.s32 %s29, 1
      %s31 = scalar_select %p28, %s29, %s30
      %p34 = pneg %p28
      %p35 = scmp.eq.s32.totalorder %s19, 1
      %p36 = por %p34, %p35
      %p37 = scmp.ne.s32.totalorder %s29, %s32
      %p38 = scmp.eq.s32.totalorder %s19, 0
      %p39 = por %p37, %p38
      %p40 = scmp.ne.s32.totalorder %s29, %s32
      %p41 = scmp.eq.s32.totalorder %s24, 1
      %p42 = por %p40, %p41
      %p43 = scmp.ne.s32.totalorder %s32, %s33
      %p44 = scmp.eq.s32.totalorder %s24, 0
      %p45 = por %p43, %p44
      %p46 = scmp.ne.s32.totalorder %s32, %s33
      %p47 = scmp.eq.s32.totalorder %s25, 1
      %p48 = por %p46, %p47
      %p50 = scmp.ne.s32.totalorder %s33, %s49
      %p51 = scmp.eq.s32.totalorder %s25, 0
      %p52 = por %p50, %p51
      %s53 = ssub.s32 %s19, %s26
      %p54 = scmp.eq.s32.totalorder %s53, 0
      %s56 = sadd.s32 %s55, 1
      %s57 = scalar_select %p54, %s55, %s56
      %p60 = pneg %p54
      %p61 = scmp.eq.s32.totalorder %s19, 1
      %p62 = por %p60, %p61
      %p63 = scmp.ne.s32.totalorder %s55, %s58
      %p64 = scmp.eq.s32.totalorder %s19, 0
      %p65 = por %p63, %p64
      %p66 = scmp.ne.s32.totalorder %s55, %s58
      %p67 = scmp.eq.s32.totalorder %s24, 1
      %p68 = por %p66, %p67
      %p69 = scmp.ne.s32.totalorder %s58, %s59
      %p70 = scmp.eq.s32.totalorder %s24, 0
      %p71 = por %p69, %p70
      %p72 = scmp.ne.s32.totalorder %s58, %s59
      %p73 = scmp.eq.s32.totalorder %s25, 1
      %p74 = por %p72, %p73
      %p76 = scmp.ne.s32.totalorder %s59, %s75
      %p77 = scmp.eq.s32.totalorder %s25, 0
      %p78 = por %p76, %p77
      %s80 = sadd.s32 %s79, 1
      %p83 = scmp.eq.s32.totalorder %s19, 1
      %p84 = scmp.ne.s32.totalorder %s79, %s81
      %p85 = scmp.eq.s32.totalorder %s19, 0
      %p86 = por %p84, %p85
      %p87 = scmp.ne.s32.totalorder %s79, %s81
      %p88 = scmp.eq.s32.totalorder %s24, 1
      %p89 = por %p87, %p88
      %p90 = scmp.ne.s32.totalorder %s81, %s82
      %p91 = scmp.eq.s32.totalorder %s24, 0
      %p92 = por %p90, %p91
      %p93 = scmp.ne.s32.totalorder %s81, %s82
      %p94 = scmp.eq.s32.totalorder %s25, 1
      %p95 = por %p93, %p94
      %p97 = scmp.ne.s32.totalorder %s82, %s96
      %p98 = scmp.eq.s32.totalorder %s25, 0
      %p99 = por %p97, %p98
      %s101 = sadd.s32 %s100, 1
      %p104 = scmp.eq.s32.totalorder %s19, 1
      %p105 = scmp.ne.s32.totalorder %s100, %s102
      %p106 = scmp.eq.s32.totalorder %s19, 0
      %p107 = por %p105, %p106
      %p108 = scmp.ne.s32.totalorder %s100, %s102
      %p109 = scmp.eq.s32.totalorder %s24, 1
      %p110 = por %p108, %p109
      %p111 = scmp.ne.s32.totalorder %s102, %s103
      %p112 = scmp.eq.s32.totalorder %s24, 0
      %p113 = por %p111, %p112
      %p114 = scmp.ne.s32.totalorder %s102, %s103
      %p115 = scmp.eq.s32.totalorder %s25, 1
      %p116 = por %p114, %p115
      %p118 = scmp.ne.s32.totalorder %s103, %s117
      %p119 = scmp.eq.s32.totalorder %s25, 0
      %p120 = por %p118, %p119
      %s122 = sadd.s32 %s121, 1
      %p125 = scmp.eq.s32.totalorder %s19, 1
      %p126 = scmp.ne.s32.totalorder %s121, %s123
      %p127 = scmp.eq.s32.totalorder %s19, 0
      %p128 = por %p126, %p127
      %p129 = scmp.ne.s32.totalorder %s121, %s123
      %p130 = scmp.eq.s32.totalorder %s24, 1
      %p131 = por %p129, %p130
      %p132 = scmp.ne.s32.totalorder %s123, %s124
      %p133 = scmp.eq.s32.totalorder %s24, 0
      %p134 = por %p132, %p133
      %p135 = scmp.ne.s32.totalorder %s123, %s124
      %p136 = scmp.eq.s32.totalorder %s25, 1
      %p137 = por %p135, %p136
      %p139 = scmp.ne.s32.totalorder %s124, %s138
      %p140 = scmp.eq.s32.totalorder %s25, 0
      %p141 = por %p139, %p140
      %s143 = sadd.s32 %s142, 1
      %p146 = scmp.eq.s32.totalorder %s19, 1
      %p147 = scmp.ne.s32.totalorder %s142, %s144
      %p148 = scmp.eq.s32.totalorder %s19, 0
      %p149 = por %p147, %p148
      %p150 = scmp.ne.s32.totalorder %s142, %s144
      %p151 = scmp.eq.s32.totalorder %s24, 1
      %p152 = por %p150, %p151
      %p153 = scmp.ne.s32.totalorder %s144, %s145
      %p154 = scmp.eq.s32.totalorder %s24, 0
      %p155 = por %p153, %p154
      %p156 = scmp.ne.s32.totalorder %s144, %s145
      %p157 = scmp.eq.s32.totalorder %s25, 1
      %p158 = por %p156, %p157
      %p160 = scmp.ne.s32.totalorder %s145, %s159
      %p161 = scmp.eq.s32.totalorder %s25, 0
      %p162 = por %p160, %p161
      %s164 = sadd.s32 %s163, 1
      %p167 = scmp.eq.s32.totalorder %s19, 1
      %p168 = scmp.ne.s32.totalorder %s163, %s165
      %p169 = scmp.eq.s32.totalorder %s19, 0
      %p170 = por %p168, %p169
      %p171 = scmp.ne.s32.totalorder %s163, %s165
      %p172 = scmp.eq.s32.totalorder %s24, 1
      %p173 = por %p171, %p172
      %p174 = scmp.ne.s32.totalorder %s165, %s166
      %p175 = scmp.eq.s32.totalorder %s24, 0
      %p176 = por %p174, %p175
      %p177 = scmp.ne.s32.totalorder %s165, %s166
      %p178 = scmp.eq.s32.totalorder %s25, 1
      %p179 = por %p177, %p178
      %p181 = scmp.ne.s32.totalorder %s166, %s180
      %p182 = scmp.eq.s32.totalorder %s25, 0
      %p183 = por %p181, %p182
      %s185 = sadd.s32 %s184, 1
      %p188 = scmp.eq.s32.totalorder %s19, 1
      %p189 = scmp.ne.s32.totalorder %s184, %s186
      %p190 = scmp.eq.s32.totalorder %s19, 0
      %p191 = por %p189, %p190
      %p192 = scmp.ne.s32.totalorder %s184, %s186
      %p193 = scmp.eq.s32.totalorder %s24, 1
      %p194 = por %p192, %p193
      %p195 = scmp.ne.s32.totalorder %s186, %s187
      %p196 = scmp.eq.s32.totalorder %s24, 0
      %p197 = por %p195, %p196
      %p198 = scmp.ne.s32.totalorder %s186, %s187
      %p199 = scmp.eq.s32.totalorder %s25, 1
      %p200 = por %p198, %p199
      %p202 = scmp.ne.s32.totalorder %s187, %s201
      %p203 = scmp.eq.s32.totalorder %s25, 0
      %p204 = por %p202, %p203
      %s205 = ssub.s32 %s19, %s26
      %p206 = scmp.eq.s32.totalorder %s205, 0
      %s208 = sadd.s32 %s207, 1
      %s209 = scalar_select %p206, %s207, %s208
      %p212 = pneg %p206
      %p213 = scmp.eq.s32.totalorder %s19, 1
      %p214 = por %p212, %p213
      %p215 = scmp.ne.s32.totalorder %s207, %s210
      %p216 = scmp.eq.s32.totalorder %s19, 0
      %p217 = por %p215, %p216
      %p218 = scmp.ne.s32.totalorder %s207, %s210
      %p219 = scmp.eq.s32.totalorder %s24, 1
      %p220 = por %p218, %p219
      %p221 = scmp.ne.s32.totalorder %s210, %s211
      %p222 = scmp.eq.s32.totalorder %s24, 0
      %p223 = por %p221, %p222
      %p224 = scmp.ne.s32.totalorder %s210, %s211
      %p225 = scmp.eq.s32.totalorder %s25, 1
      %p226 = por %p224, %p225
      %p228 = scmp.ne.s32.totalorder %s211, %s227
      %p229 = scmp.eq.s32.totalorder %s25, 0
      %p230 = por %p228, %p229
      %p231 = scmp.le.s32.totalorder 1, %s19
      %p232 = scmp.lt.s32.totalorder %s19, 3
      %p233 = pnand %p231, %p232
      %p234 = pneg %p233
      // Predicated region
      $region9: #{decoder_forward.7} parent=5 // pred_check
        _
      $region10: #{decoder_forward.7} parent=5 // pred_check_branch
        %236 = sbr.rel (%p233) target = $region12
      $region11: #{decoder_forward.7} parent=5 // pred_region
        %s237 = ssub.s32 %s19, 1
        // Predicated region
        $region13: #{decoder_forward.7} parent=11 // pred_check
          %p238 = pneg %p92
        $region14: #{decoder_forward.7} parent=11 // pred_check_branch
          %240 = sbr.rel (%p238) target = $region16
        $region15: #{decoder_forward.7} parent=11 // pred_region
          _
        $region16: #{decoder_forward.7} parent=11 // pred_fallthru
          _
        // Predicated region
        $region17: #{decoder_forward.7} parent=11 // pred_check
          %p241 = pneg %p113
        $region18: #{decoder_forward.7} parent=11 // pred_check_branch
          %243 = sbr.rel (%p241) target = $region20
        $region19: #{decoder_forward.7} parent=11 // pred_region
          _
        $region20: #{decoder_forward.7} parent=11 // pred_fallthru
          _
        // Predicated region
        $region21: #{decoder_forward.7} parent=11 // pred_check
          %p244 = pneg %p134
        $region22: #{decoder_forward.7} parent=11 // pred_check_branch
          %246 = sbr.rel (%p244) target = $region24
        $region23: #{decoder_forward.7} parent=11 // pred_region
          %248 = vsyncadd [#allocation5], 0
          %s249 = sshll.u32 %s4, 4
          %s250 = int_to_ptr.hbm [resolvable:$true] %s249
          %s251 = sshll.u32 [#allocation4], 4
          %s252 = int_to_ptr.vmem [resolvable:$true] %s251
          %257 = dma.hbm_to_vmem [thread:$0]  %s250, 256, %s252, [#allocation5], 64, 64, 4
        $region24: #{decoder_forward.7} parent=11 // pred_fallthru
          _
        // Predicated region
        $region25: #{decoder_forward.7} parent=11 // pred_check
          %p258 = pneg %p155
        $region26: #{decoder_forward.7} parent=11 // pred_check_branch
          %260 = sbr.rel (%p258) target = $region28
        $region27: #{decoder_forward.7} parent=11 // pred_region
          %262 = vsyncadd [#allocation5], 0
          %s264 = sshll.u32 %s5, 4
          %s265 = int_to_ptr.hbm [resolvable:$true] %s264
          %s266 = sshll.u32 [#allocation6], 4
          %s267 = int_to_ptr.vmem [resolvable:$true] %s266
          %269 = dma.hbm_to_vmem [thread:$0]  %s265, 16, %s267, [#allocation5]
        $region28: #{decoder_forward.7} parent=11 // pred_fallthru
          _
        // Predicated region
        $region29: #{decoder_forward.7} parent=11 // pred_check
          %p270 = pneg %p176
        $region30: #{decoder_forward.7} parent=11 // pred_check_branch
          %272 = sbr.rel (%p270) target = $region32
        $region31: #{decoder_forward.7} parent=11 // pred_region
          %274 = vsyncadd [#allocation8], 0
          %s275 = sshll.u32 %s6, 4
          %s276 = int_to_ptr.hbm [resolvable:$true] %s275
          %s277 = sshll.u32 [#allocation7], 4
          %s278 = int_to_ptr.vmem [resolvable:$true] %s277
          %283 = dma.hbm_to_vmem [thread:$0]  %s276, 256, %s278, [#allocation8], 64, 64, 4
        $region32: #{decoder_forward.7} parent=11 // pred_fallthru
          _
        // Predicated region
        $region33: #{decoder_forward.7} parent=11 // pred_check
          %p284 = pneg %p197
        $region34: #{decoder_forward.7} parent=11 // pred_check_branch
          %286 = sbr.rel (%p284) target = $region36
        $region35: #{decoder_forward.7} parent=11 // pred_region
          %288 = vsyncadd [#allocation8], 0
          %s290 = sshll.u32 %s7, 4
          %s291 = int_to_ptr.hbm [resolvable:$true] %s290
          %s292 = sshll.u32 [#allocation9], 4
          %s293 = int_to_ptr.vmem [resolvable:$true] %s292
          %295 = dma.hbm_to_vmem [thread:$0]  %s291, 16, %s293, [#allocation8]
        $region36: #{decoder_forward.7} parent=11 // pred_fallthru
          _
      $region12: #{decoder_forward.7} parent=5 // pred_fallthru
        _
      %p296 = scmp.lt.s32.totalorder %s19, 2
      // Predicated region
      $region37: #{decoder_forward.7} parent=5 // pred_check
        %p297 = pneg %p296
      $region38: #{decoder_forward.7} parent=5 // pred_check_branch
        %299 = sbr.rel (%p297) target = $region40
      $region39: #{decoder_forward.7} parent=5 // pred_region
        // Predicated region
        $region41: #{decoder_forward.7} parent=39 // pred_check
          %p300 = pneg %p39
        $region42: #{decoder_forward.7} parent=39 // pred_check_branch
          %302 = sbr.rel (%p300) target = $region44
        $region43: #{decoder_forward.7} parent=39 // pred_region
          %p303 = scmp.lt.s32.totalorder %s19, 1
          %s304 = scalar_select %p303, %s19, 1
          %s305 = smul.addr %s304, 8
          %s306 = scalar_lea.vmem %s0, %s305
        $region44: #{decoder_forward.7} parent=39 // pred_fallthru
          _
        // Predicated region
        $region45: #{decoder_forward.7} parent=39 // pred_check
          %p307 = pneg %p65
        $region46: #{decoder_forward.7} parent=39 // pred_check_branch
          %309 = sbr.rel (%p307) target = $region48
        $region47: #{decoder_forward.7} parent=39 // pred_region
          %s310 = sand.u32 %s55, 1
          %s311 = scalar_lea.sflag [#allocation3], %s310
          %s312 = sand.u32 %s55, 1
          %s313 = smul.addr %s312, 8
          %s314 = scalar_lea.vmem [#allocation2], %s313
          %316 = vsyncadd %s311, 0
          %s317 = smul.addr %s19, 8
          %s318 = scalar_lea.hbm %s1, %s317
          %s320 = sshll.u32 %s318, 4
          %s321 = int_to_ptr.hbm [resolvable:$true] %s320
          %s322 = sshll.u32 %s314, 4
          %s323 = int_to_ptr.vmem [resolvable:$true] %s322
          %325 = dma.hbm_to_vmem [thread:$0]  %s321, 128, %s323, %s311
        $region48: #{decoder_forward.7} parent=39 // pred_fallthru
          _
      $region40: #{decoder_forward.7} parent=5 // pred_fallthru
        _
      %p326 = scmp.le.s32.totalorder 1, %s19
      %p327 = scmp.lt.s32.totalorder %s19, 3
      %p328 = pnand %p326, %p327
      %p329 = pneg %p328
      // Predicated region
      $region49: #{decoder_forward.7} parent=5 // pred_check
        _
      $region50: #{decoder_forward.7} parent=5 // pred_check_branch
        %331 = sbr.rel (%p328) target = $region52
      $region51: #{decoder_forward.7} parent=5 // pred_region
        %s332 = ssub.s32 %s19, 1
        %s333 = sand.u32 %s58, 1
        %s334 = scalar_lea.sflag [#allocation3], %s333
        %s335 = sand.u32 %s58, 1
        %s336 = smul.addr %s335, 8
        %s337 = scalar_lea.vmem [#allocation2], %s336
        // Predicated region
        $region53: #{decoder_forward.7} parent=51 // pred_check
          %p338 = pneg %p71
        $region54: #{decoder_forward.7} parent=51 // pred_check_branch
          %340 = sbr.rel (%p338) target = $region56
        $region55: #{decoder_forward.7} parent=51 // pred_region
          %342 = dma.done %s334, 128
        $region56: #{decoder_forward.7} parent=51 // pred_fallthru
          _
        // Predicated region
        $region57: #{decoder_forward.7} parent=51 // pred_check
          %p343 = pneg %p134
        $region58: #{decoder_forward.7} parent=51 // pred_check_branch
          %345 = sbr.rel (%p343) target = $region60
        $region59: #{decoder_forward.7} parent=51 // pred_region
          %347 = dma.done [#allocation5], 256
        $region60: #{decoder_forward.7} parent=51 // pred_fallthru
          _
        // Predicated region
        $region61: #{decoder_forward.7} parent=51 // pred_check
          %p348 = pneg %p155
        $region62: #{decoder_forward.7} parent=51 // pred_check_branch
          %350 = sbr.rel (%p348) target = $region64
        $region63: #{decoder_forward.7} parent=51 // pred_region
          %352 = dma.done [#allocation5], 16
        $region64: #{decoder_forward.7} parent=51 // pred_fallthru
          _
        // Predicated region
        $region65: #{decoder_forward.7} parent=51 // pred_check
          %p353 = pneg %p176
        $region66: #{decoder_forward.7} parent=51 // pred_check_branch
          %355 = sbr.rel (%p353) target = $region68
        $region67: #{decoder_forward.7} parent=51 // pred_region
          %357 = dma.done [#allocation8], 256
        $region68: #{decoder_forward.7} parent=51 // pred_fallthru
          _
        // Predicated region
        $region69: #{decoder_forward.7} parent=51 // pred_check
          %p358 = pneg %p197
        $region70: #{decoder_forward.7} parent=51 // pred_check_branch
          %360 = sbr.rel (%p358) target = $region72
        $region71: #{decoder_forward.7} parent=51 // pred_region
          %362 = dma.done [#allocation8], 16
        $region72: #{decoder_forward.7} parent=51 // pred_fallthru
          _
        %p363 = scmp.lt.s32.totalorder %s24, 1
        %s364 = scalar_select %p363, %s24, 1
        %s365 = smul.addr %s364, 8
        %s366 = scalar_lea.vmem %s0, %s365
        %p367 = pneg %p45
        %p368 = pneg %p42
        %s369 = sand.u32 %s58, 1
        %s370 = scalar_lea.sflag [#allocation3], %s369
        %s371 = sand.u32 %s58, 1
        %s372 = smul.addr %s371, 8
        %s373 = scalar_lea.vmem [#allocation2], %s372
        %p374 = pneg %p71
        %p375 = pneg %p68
        %p376 = pneg %p92
        %p377 = pneg %p89
        %p378 = pneg %p113
        %p379 = pneg %p110
        %p380 = pneg %p134
        %p381 = pneg %p131
        %p382 = pneg %p155
        %p383 = pneg %p152
        %p384 = pneg %p176
        %p385 = pneg %p173
        %p386 = pneg %p197
        %p387 = pneg %p194
        %p388 = pneg %p223
        %p389 = pneg %p220
        %p390 = scmp.lt.s32.totalorder %s24, 1
        %s391 = scalar_select %p390, %s24, 1
        %s392 = smul.addr %s391, 8
        %s393 = scalar_lea.vmem %s8, %s392
        %p394 = scmp.lt.s32.totalorder %s24, 1
        %s395 = scalar_select %p394, %s24, 1
        %s396 = smul.addr %s395, 8
        %s397 = scalar_lea.vmem %s0, %s396
        %p398 = scmp.lt.s32.totalorder %s24, 1
        %s399 = scalar_select %p398, %s24, 1
        %s400 = smul.addr %s399, 8
        %s401 = scalar_lea.vmem %s8, %s400
        %v403 = vld [vmem:[%s397] sm:$0xff]
        %v404 = vld [vmem:[%s2] sm:$0x1]
        %v405 = vld [vmem:[%s3] sm:$0x1]
        %vm406 = vcmask 261120
        %v407 = vsel %vm406, %v403, 0.0
        %408 = vadd.xlane.f32.xlu0 %v407
        %v409 = vpop.xlane.xlu0 %408
        %v410 = vrcp.pop 32.0
        %v411 = vmul.f32 32.0, %v410
        %v412 = vsub.f32 1.0, %v411
        %v413 = vmul.f32 %v410, %v412
        %v414 = vadd.f32 %v410, %v413
        %vm415 = vweird.f32 %v410
        %v416 = vsel %vm415, %v410, %v414
        %v417 = vmul.f32 %v409, %v416
        %v418 = vsub.f32 %v403, %v417
        %v419 = vmul.f32 %v418, %v418
        %v420 = vsel %vm406, %v419, 0.0
        %421 = vadd.xlane.f32.xlu0 %v420
        %v422 = vpop.xlane.xlu0 %421
        %v423 = vrcp.pop 31.0
        %v424 = vmul.f32 31.0, %v423
        %v425 = vsub.f32 1.0, %v424
        %v426 = vmul.f32 %v423, %v425
        %v427 = vadd.f32 %v423, %v426
        %vm428 = vweird.f32 %v423
        %v429 = vsel %vm428, %v423, %v427
        %v430 = vmul.f32 %v422, %v429
        %v432 = vperm.slane %v404, 0
        %v434 = vmul.f32 %v432, %v418
        %v435 = vrsqrt.pop %v430
        %v436 = vmul.f32 %v435, %v430
        %v437 = vmul.f32 %v436, %v435
        %v438 = vmul.f32 0.5, %v437
        %v439 = vsub.f32 1.5, %v438
        %v440 = vmul.f32 %v435, %v439
        %v441 = vmul.f32 %v430, %v440
        %vm442 = vcmp.eq.f32.partialorder %v430, inf
        %v443 = vsel %vm442, %v430, %v441
        %vm444 = vcmp.eq.f32.partialorder %v430, 0.0
        %v445 = vand.u32 %v430, 2147483648
        %v446 = vsel %vm444, %v445, %v443
        %v447 = vadd.f32 %v446, 1e-06
        %v448 = vrcp.pop %v447
        %v449 = vmul.f32 %v447, %v448
        %v450 = vsub.f32 1.0, %v449
        %v451 = vmul.f32 %v448, %v450
        %v452 = vadd.f32 %v448, %v451
        %vm453 = vweird.f32 %v447
        %vm454 = vweird.f32 %v448
        %vm455 = vmor %vm453, %vm454
        %v456 = vsel %vm455, %v448, %v452
        %v457 = vand.u32 2147483647, %v447
        %vm458 = vcmp.eq.f32.partialorder %v457, 8.507059e+37
        %v459 = vand.u32 %v447, 2147483648
        %v460 = vor.u32 1.1754944e-38, %v459
        %v461 = vsel %vm458, %v460, %v456
        %v462 = vmul.f32 %v434, %v461
        %v464 = vperm.slane %v405, 0
        %v466 = vadd.f32 %v462, %v464
        %v467 = vpack.c.bf16 %v466, %v466
        %v468 = vld [vmem:[#allocation4] sm:$0xf]
        %v469 = vld [vmem:[#allocation4 + $0x4] sm:$0xf]
        %v470 = vld [vmem:[#allocation4 + $0x8] sm:$0xf]
        %v471 = vld [vmem:[#allocation4 + $0xc] sm:$0xf]
        %v472 = vld [vmem:[#allocation6] sm:$0x1]
        %v474 = vperm.slane %v472, 0
        %v480 = vunpack.c.l.b16 %v468
        %v481 = vunpack.c.l.b16 %v469
        %v482 = vunpack.c.l.b16 %v470
        %v483 = vunpack.c.l.b16 %v471
        %v484 = vpack.c.b16 %v481, %v480
        %v485 = vpack.c.b16 %v483, %v482
        %v489 = vsel %vm406, %v467, 0
        %491 = vmatpush.bf16.msra.mxu0 0
        %492 = vmatpush.bf16.msra.mxu0 0
        %493 = vmatpush.bf16.msra.mxu0 0
        %494 = vmatpush.bf16.msra.mxu0 0
        %495 = vmatpush.bf16.msra.mxu0 0
        %496 = vmatpush.bf16.msra.mxu0 0
        %497 = vmatpush.bf16.msra.mxu0 %v485
        %498 = vmatpush.bf16.msra.mxu0 %v484
        %499 = vmatmul.bf16.gmra.mxu0 %v489
        %v500 = vpop.f32.mrf.mxu0
        %v501 = vadd.f32 %v474, %v500
        %v502 = vpop.f32.mrf.mxu0
        %503 = vdwg.mxu0
        %v504 = vld [vmem:[%s337] sm:$0xff]
        %v505 = vpack.c.bf16 %v501, %v501
        %507 = vrot.lane.b32.xlu0 %v505, 96
        %v508 = vpop.permute.xlu0 %507
        %vm509 = vcmask 64512
        %v511 = vsel %vm509, %v505, 0
        %v514 = vsel %vm509, %v508, 0
        %516 = vmatpush.bf16.xpose.msra.mxu0 0
        %517 = vmatpush.bf16.xpose.msra.mxu0 0
        %518 = vmatpush.bf16.xpose.msra.mxu0 0
        %519 = vmatpush.bf16.xpose.msra.mxu0 0
        %520 = vmatpush.bf16.xpose.msra.mxu0 0
        %521 = vmatpush.bf16.xpose.msra.mxu0 0
        %522 = vmatpush.bf16.xpose.msra.mxu0 0
        %523 = vmatpush.bf16.xpose.msra.mxu0 %v514
        %524 = vmatmul.bf16.gmra.mxu0 %v511
        %v525 = vpop.f32.mrf.mxu0
        %v526 = vadd.f32 0.0, %v525
        %v527 = vpop.f32.mrf.mxu0
        %528 = vdwg.mxu0
        %v529 = vmul.f32 %v526, 0.35355338
        %vm530 = vcmp.eq.f32.partialorder %v504, 0.0
        %v531 = vsel %vm530, -1e+09, %v529
        %v532 = vsel %vm509, %v531, -inf
        %533 = vmax.xlane.f32.xlu0 %v532
        %v534 = vpop.xlane.xlu0 %533
        %v535 = vsub.f32 %v531, %v534
        %v536 = vmul.f32 %v535, 1.442695
        %v537 = vpow.pop %v536
        %v538 = vsel %vm509, %v537, 0.0
        %539 = vadd.xlane.f32.xlu0 %v538
        %v540 = vpop.xlane.xlu0 %539
        %v541 = vpack.c.bf16 %v537, %v537
        %542 = vrot.lane.b32.xlu0 %v505, 64
        %v543 = vpop.permute.xlu0 %542
        %v545 = vsel %vm509, %v541, 0
        %vm547 = vcmask 1043456
        %v549 = vsel %vm547, %v543, 0
        %551 = vmatpush.bf16.msra.mxu0 0
        %552 = vmatpush.bf16.msra.mxu0 0
        %553 = vmatpush.bf16.msra.mxu0 0
        %554 = vmatpush.bf16.msra.mxu0 0
        %555 = vmatpush.bf16.msra.mxu0 0
        %556 = vmatpush.bf16.msra.mxu0 0
        %557 = vmatpush.bf16.msra.mxu0 0
        %558 = vmatpush.bf16.msra.mxu0 %v549
        %559 = vmatmul.bf16.gmra.mxu0 %v545
        %v560 = vpop.f32.mrf.mxu0
        %v561 = vadd.f32 0.0, %v560
        %v562 = vpop.f32.mrf.mxu0
        %563 = vdwg.mxu0
        %v564 = vrcp.pop %v540
        %v565 = vmul.f32 %v561, %v564
        %566 = vrot.lane.b32.xlu0 %v505, 120
        %v567 = vpop.permute.xlu0 %566
        %568 = vrot.lane.b32.xlu0 %v505, 88
        %v569 = vpop.permute.xlu0 %568
        %v571 = vsel %vm509, %v567, 0
        %v574 = vsel %vm509, %v569, 0
        %576 = vmatpush.bf16.xpose.msra.mxu0 0
        %577 = vmatpush.bf16.xpose.msra.mxu0 0
        %578 = vmatpush.bf16.xpose.msra.mxu0 0
        %579 = vmatpush.bf16.xpose.msra.mxu0 0
        %580 = vmatpush.bf16.xpose.msra.mxu0 0
        %581 = vmatpush.bf16.xpose.msra.mxu0 0
        %582 = vmatpush.bf16.xpose.msra.mxu0 0
        %583 = vmatpush.bf16.xpose.msra.mxu0 %v574
        %584 = vmatmul.bf16.gmra.mxu0 %v571
        %v585 = vpop.f32.mrf.mxu0
        %v586 = vadd.f32 0.0, %v585
        %v587 = vpop.f32.mrf.mxu0
        %588 = vdwg.mxu0
        %v589 = vmul.f32 %v586, 0.35355338
        %v590 = vsel %vm530, -1e+09, %v589
        %v591 = vsel %vm509, %v590, -inf
        %592 = vmax.xlane.f32.xlu0 %v591
        %v593 = vpop.xlane.xlu0 %592
        %v594 = vsub.f32 %v590, %v593
        %v595 = vmul.f32 %v594, 1.442695
        %v596 = vpow.pop %v595
        %v597 = vsel %vm509, %v596, 0.0
        %598 = vadd.xlane.f32.xlu0 %v597
        %v599 = vpop.xlane.xlu0 %598
        %v600 = vpack.c.bf16 %v596, %v596
        %601 = vrot.lane.b32.xlu0 %v505, 56
        %v602 = vpop.permute.xlu0 %601
        %v604 = vsel %vm509, %v600, 0
        %v607 = vsel %vm547, %v602, 0
        %609 = vmatpush.bf16.msra.mxu0 0
        %610 = vmatpush.bf16.msra.mxu0 0
        %611 = vmatpush.bf16.msra.mxu0 0
        %612 = vmatpush.bf16.msra.mxu0 0
        %613 = vmatpush.bf16.msra.mxu0 0
        %614 = vmatpush.bf16.msra.mxu0 0
        %615 = vmatpush.bf16.msra.mxu0 0
        %616 = vmatpush.bf16.msra.mxu0 %v607
        %617 = vmatmul.bf16.gmra.mxu0 %v604
        %v618 = vpop.f32.mrf.mxu0
        %v619 = vadd.f32 0.0, %v618
        %v620 = vpop.f32.mrf.mxu0
        %621 = vdwg.mxu0
        %v622 = vrcp.pop %v599
        %v623 = vmul.f32 %v619, %v622
        %624 = vrot.lane.b32.xlu0 %v505, 112
        %v625 = vpop.permute.xlu0 %624
        %626 = vrot.lane.b32.xlu0 %v505, 80
        %v627 = vpop.permute.xlu0 %626
        %v629 = vsel %vm509, %v625, 0
        %v632 = vsel %vm509, %v627, 0
        %634 = vmatpush.bf16.xpose.msra.mxu0 0
        %635 = vmatpush.bf16.xpose.msra.mxu0 0
        %636 = vmatpush.bf16.xpose.msra.mxu0 0
        %637 = vmatpush.bf16.xpose.msra.mxu0 0
        %638 = vmatpush.bf16.xpose.msra.mxu0 0
        %639 = vmatpush.bf16.xpose.msra.mxu0 0
        %640 = vmatpush.bf16.xpose.msra.mxu0 0
        %641 = vmatpush.bf16.xpose.msra.mxu0 %v632
        %642 = vmatmul.bf16.gmra.mxu0 %v629
        %v643 = vpop.f32.mrf.mxu0
        %v644 = vadd.f32 0.0, %v643
        %v645 = vpop.f32.mrf.mxu0
        %646 = vdwg.mxu0
        %v647 = vmul.f32 %v644, 0.35355338
        %v648 = vsel %vm530, -1e+09, %v647
        %v649 = vsel %vm509, %v648, -inf
        %650 = vmax.xlane.f32.xlu0 %v649
        %v651 = vpop.xlane.xlu0 %650
        %v652 = vsub.f32 %v648, %v651
        %v653 = vmul.f32 %v652, 1.442695
        %v654 = vpow.pop %v653
        %v655 = vsel %vm509, %v654, 0.0
        %656 = vadd.xlane.f32.xlu0 %v655
        %v657 = vpop.xlane.xlu0 %656
        %v658 = vpack.c.bf16 %v654, %v654
        %659 = vrot.lane.b32.xlu0 %v505, 48
        %v660 = vpop.permute.xlu0 %659
        %v662 = vsel %vm509, %v658, 0
        %v665 = vsel %vm547, %v660, 0
        %667 = vmatpush.bf16.msra.mxu0 0
        %668 = vmatpush.bf16.msra.mxu0 0
        %669 = vmatpush.bf16.msra.mxu0 0
        %670 = vmatpush.bf16.msra.mxu0 0
        %671 = vmatpush.bf16.msra.mxu0 0
        %672 = vmatpush.bf16.msra.mxu0 0
        %673 = vmatpush.bf16.msra.mxu0 0
        %674 = vmatpush.bf16.msra.mxu0 %v665
        %675 = vmatmul.bf16.gmra.mxu0 %v662
        %v676 = vpop.f32.mrf.mxu0
        %v677 = vadd.f32 0.0, %v676
        %v678 = vpop.f32.mrf.mxu0
        %679 = vdwg.mxu0
        %v680 = vrcp.pop %v657
        %v681 = vmul.f32 %v677, %v680
        %682 = vrot.lane.b32.xlu0 %v505, 104
        %v683 = vpop.permute.xlu0 %682
        %684 = vrot.lane.b32.xlu0 %v505, 72
        %v685 = vpop.permute.xlu0 %684
        %v687 = vsel %vm509, %v683, 0
        %v690 = vsel %vm509, %v685, 0
        %692 = vmatpush.bf16.xpose.msra.mxu0 0
        %693 = vmatpush.bf16.xpose.msra.mxu0 0
        %694 = vmatpush.bf16.xpose.msra.mxu0 0
        %695 = vmatpush.bf16.xpose.msra.mxu0 0
        %696 = vmatpush.bf16.xpose.msra.mxu0 0
        %697 = vmatpush.bf16.xpose.msra.mxu0 0
        %698 = vmatpush.bf16.xpose.msra.mxu0 0
        %699 = vmatpush.bf16.xpose.msra.mxu0 %v690
        %700 = vmatmul.bf16.gmra.mxu0 %v687
        %v701 = vpop.f32.mrf.mxu0
        %v702 = vadd.f32 0.0, %v701
        %v703 = vpop.f32.mrf.mxu0
        %704 = vdwg.mxu0
        %v705 = vmul.f32 %v702, 0.35355338
        %v706 = vsel %vm530, -1e+09, %v705
        %v707 = vsel %vm509, %v706, -inf
        %708 = vmax.xlane.f32.xlu0 %v707
        %v709 = vpop.xlane.xlu0 %708
        %v710 = vsub.f32 %v706, %v709
        %v711 = vmul.f32 %v710, 1.442695
        %v712 = vpow.pop %v711
        %v713 = vsel %vm509, %v712, 0.0
        %714 = vadd.xlane.f32.xlu0 %v713
        %v715 = vpop.xlane.xlu0 %714
        %v716 = vpack.c.bf16 %v712, %v712
        %717 = vrot.lane.b32.xlu0 %v505, 40
        %v718 = vpop.permute.xlu0 %717
        %v720 = vsel %vm509, %v716, 0
        %v723 = vsel %vm547, %v718, 0
        %725 = vmatpush.bf16.msra.mxu0 0
        %726 = vmatpush.bf16.msra.mxu0 0
        %727 = vmatpush.bf16.msra.mxu0 0
        %728 = vmatpush.bf16.msra.mxu0 0
        %729 = vmatpush.bf16.msra.mxu0 0
        %730 = vmatpush.bf16.msra.mxu0 0
        %731 = vmatpush.bf16.msra.mxu0 0
        %732 = vmatpush.bf16.msra.mxu0 %v723
        %733 = vmatmul.bf16.gmra.mxu0 %v720
        %v734 = vpop.f32.mrf.mxu0
        %v735 = vadd.f32 0.0, %v734
        %v736 = vpop.f32.mrf.mxu0
        %737 = vdwg.mxu0
        %v738 = vrcp.pop %v715
        %v739 = vmul.f32 %v735, %v738
        %741 = vrot.lane.b32.xlu0 %v623, 8
        %v742 = vpop.permute.xlu0 %741
        %745 = vrot.lane.b32.xlu0 %v681, 16
        %v746 = vpop.permute.xlu0 %745
        %749 = vrot.lane.b32.xlu0 %v739, 24
        %v750 = vpop.permute.xlu0 %749
        %v752 = vsel %vm509, %v565, %v742
        %vm753 = vcmask 130048
        %v754 = vsel %vm753, %v752, %v746
        %vm755 = vcmask 195584
        %v756 = vsel %vm755, %v754, %v750
        %v757 = vpack.c.bf16 %v756, %v756
        %v758 = vld [vmem:[#allocation7] sm:$0xf]
        %v759 = vld [vmem:[#allocation7 + $0x4] sm:$0xf]
        %v760 = vld [vmem:[#allocation7 + $0x8] sm:$0xf]
        %v761 = vld [vmem:[#allocation7 + $0xc] sm:$0xf]
        %v762 = vld [vmem:[#allocation9] sm:$0x1]
        %v764 = vperm.slane %v762, 0
        %v770 = vunpack.c.l.b16 %v758
        %v771 = vunpack.c.l.b16 %v759
        %v772 = vunpack.c.l.b16 %v760
        %v773 = vunpack.c.l.b16 %v761
        %v774 = vpack.c.b16 %v771, %v770
        %v775 = vpack.c.b16 %v773, %v772
        %v779 = vsel %vm406, %v757, 0
        %781 = vmatpush.bf16.msra.mxu0 0
        %782 = vmatpush.bf16.msra.mxu0 0
        %783 = vmatpush.bf16.msra.mxu0 0
        %784 = vmatpush.bf16.msra.mxu0 0
        %785 = vmatpush.bf16.msra.mxu0 0
        %786 = vmatpush.bf16.msra.mxu0 0
        %787 = vmatpush.bf16.msra.mxu0 %v775
        %788 = vmatpush.bf16.msra.mxu0 %v774
        %789 = vmatmul.bf16.gmra.mxu0 %v779
        %v790 = vpop.f32.mrf.mxu0
        %v791 = vadd.f32 %v764, %v790
        %v792 = vpop.f32.mrf.mxu0
        %793 = vdwg.mxu0
        %v794 = vadd.f32 %v791, %v403
        %795 = vst.msk [vmem:[%s401] sm:$0xff] %vm406, %v794
        %p796 = scmp.lt.s32.totalorder %s24, 1
        %s797 = scalar_select %p796, %s24, 1
        %s798 = smul.addr %s797, 8
        %s799 = scalar_lea.vmem %s8, %s798
        // Predicated region
        $region73: #{decoder_forward.7} parent=51 // pred_check
          %p800 = pneg %p220
        $region74: #{decoder_forward.7} parent=51 // pred_check_branch
          %802 = sbr.rel (%p800) target = $region76
        $region75: #{decoder_forward.7} parent=51 // pred_region
          _
        $region76: #{decoder_forward.7} parent=51 // pred_fallthru
          _
      $region52: #{decoder_forward.7} parent=5 // pred_fallthru
        _
      %p803 = scmp.le.s32.totalorder 2, %s19
      // Predicated region
      $region77: #{decoder_forward.7} parent=5 // pred_check
        %p804 = pneg %p803
      $region78: #{decoder_forward.7} parent=5 // pred_check_branch
        %806 = sbr.rel (%p804) target = $region80
      $region79: #{decoder_forward.7} parent=5 // pred_region
        %s807 = ssub.s32 %s19, 2
        // Predicated region
        $region81: #{decoder_forward.7} parent=79 // pred_check
          %p808 = pneg %p226
        $region82: #{decoder_forward.7} parent=79 // pred_check_branch
          %810 = sbr.rel (%p808) target = $region84
        $region83: #{decoder_forward.7} parent=79 // pred_region
          %p811 = scmp.lt.s32.totalorder %s25, 1
          %s812 = scalar_select %p811, %s25, 1
          %s813 = smul.addr %s812, 8
          %s814 = scalar_lea.vmem %s8, %s813
        $region84: #{decoder_forward.7} parent=79 // pred_fallthru
          _
      $region80: #{decoder_forward.7} parent=5 // pred_fallthru
        _
    $region6: #{decoder_forward.7} parent=1 // loop_footer
      %s23 = sadd.s32 1, %s19
    $region7: #{decoder_forward.7} parent=1 // loop_footer_branch
      %18 = sbr.rel target = $region3
    $region8: #{decoder_forward.7} parent=1 // loop_exit
      _
    %815 = vsyncpa [#allocation3], 1
    %s816 = scalar_lea.sflag [#allocation3], 1
    %817 = vsyncpa %s816, 1
    %818 = vsyncpa [#allocation5], 1
    %819 = vsyncpa [#allocation8], 1

// kernel: decoder_forward.8
$region0: #{decoder_forward.8}
  #allocation0 [shape = 'u32[]', space=smem, size = 0x4, offset = 0x4, fixed_abs, tag = 'smem constant byte address 0x4 - core index']
  #allocation1 [shape = 'u32[72,128]{1,0:T(1,128)}', space=vmem, size = 0x9000, scoped, tag = 'internal scratch']
  %s0 = inlined_call_operand.vmem [shape: f32[2,8,32], index: 0, kind: input, shape index: {}, may-alias: {0,11}]
  %s1 = inlined_call_operand.hbm [shape: f32[2,8,32], index: 1, kind: input, shape index: {}]
  %s2 = inlined_call_operand.hbm [shape: f32[2,8,8], index: 2, kind: input, shape index: {}]
  %s3 = inlined_call_operand.vmem [shape: f32[1,32], index: 3, kind: input, shape index: {}]
  %s4 = inlined_call_operand.vmem [shape: f32[1,32], index: 4, kind: input, shape index: {}]
  %s5 = inlined_call_operand.hbm [shape: bf16[32,32], index: 5, kind: input, shape index: {}]
  %s6 = inlined_call_operand.hbm [shape: f32[1,32], index: 6, kind: input, shape index: {}]
  %s7 = inlined_call_operand.hbm [shape: bf16[32,64], index: 7, kind: input, shape index: {}]
  %s8 = inlined_call_operand.hbm [shape: f32[1,64], index: 8, kind: input, shape index: {}]
  %s9 = inlined_call_operand.hbm [shape: bf16[32,32], index: 9, kind: input, shape index: {}]
  %s10 = inlined_call_operand.hbm [shape: f32[1,32], index: 10, kind: input, shape index: {}]
  %s11 = inlined_call_operand.vmem [shape: f32[2,8,32], index: 11, kind: output, shape index: {}, may-alias: {0,11}]
  %s12 = sld [smem:[#allocation0]]
  $region109: #{decoder_forward.8} parent=0
    _
  %s14 = ssub.s32 1, %s12
  %s15 = scalar_select 0, %s14, %s12
  $region1: #{decoder_forward.8} parent=0
    #allocation2 [shape = 'u8[8192]{0}', space=vmem, size = 0x2000, scoped, tag = 'input window, operand 1']
    #allocation3 [shape = 's32[2]{0}', space=sflag, size = 0x8, scoped, tag = 'scoped memory for decoder_forward.8']
    #allocation4 [shape = 'u8[8192]{0}', space=vmem, size = 0x2000, scoped, tag = 'input window, operand 2']
    #allocation5 [shape = 's32[2]{0}', space=sflag, size = 0x8, scoped, tag = 'scoped memory for decoder_forward.8']
    #allocation6 [shape = 'u8[8192]{0}', space=vmem, size = 0x2000, scoped, tag = 'input window, operand 5, single buffered']
    #allocation7 [shape = 'u8[512]{0}', space=vmem, size = 0x400, scoped, tag = 'input window, operand 6, single buffered']
    #allocation8 [shape = 's32[1]{0}', space=sflag, size = 0x4, scoped, tag = 'scoped memory for decoder_forward.8']
    #allocation9 [shape = 'u8[8192]{0}', space=vmem, size = 0x2000, scoped, tag = 'input window, operand 7, single buffered']
    #allocation10 [shape = 'u8[512]{0}', space=vmem, size = 0x400, scoped, tag = 'input window, operand 8, single buffered']
    #allocation11 [shape = 's32[1]{0}', space=sflag, size = 0x4, scoped, tag = 'scoped memory for decoder_forward.8']
    #allocation12 [shape = 'u8[8192]{0}', space=vmem, size = 0x2000, scoped, tag = 'input window, operand 9, single buffered']
    #allocation13 [shape = 'u8[512]{0}', space=vmem, size = 0x400, scoped, tag = 'input window, operand 10, single buffered']
    #allocation14 [shape = 's32[1]{0}', space=sflag, size = 0x4, scoped, tag = 'scoped memory for decoder_forward.8']
    %16 = vsyncpa [#allocation3], 0
    %s17 = scalar_lea.sflag [#allocation3], 1
    %18 = vsyncpa %s17, 0
    %19 = vsyncpa [#allocation5], 0
    %s20 = scalar_lea.sflag [#allocation5], 1
    %21 = vsyncpa %s20, 0
    %22 = vsyncpa [#allocation8], 0
    %23 = vsyncpa [#allocation11], 0
    %24 = vsyncpa [#allocation14], 0
    loop: start=0, step=1, limit=4
    $region2: #{decoder_forward.8} parent=1 // loop_pre_header
      _
    $region3: #{decoder_forward.8} parent=1 // loop_header
      %s26 = sphi 0, %s30
      %p27 = scmp.ge.s32.totalorder %s26, 4
      %s36 = sphi 0, %s38
      %s39 = sphi 0, %s36
      %s40 = sphi 0, %s39
      %s56 = sphi 0, %s40
      %s62 = sphi 0, %s64
      %s65 = sphi 0, %s62
      %s66 = sphi 0, %s65
      %s82 = sphi 0, %s66
      %s88 = sphi 0, %s90
      %s91 = sphi 0, %s88
      %s92 = sphi 0, %s91
      %s108 = sphi 0, %s92
      %s112 = sphi 0, %s112
      %s114 = sphi 0, %s112
      %s115 = sphi 0, %s114
      %s129 = sphi 0, %s115
      %s133 = sphi 0, %s133
      %s135 = sphi 0, %s133
      %s136 = sphi 0, %s135
      %s150 = sphi 0, %s136
      %s154 = sphi 0, %s154
      %s156 = sphi 0, %s154
      %s157 = sphi 0, %s156
      %s171 = sphi 0, %s157
      %s175 = sphi 0, %s175
      %s177 = sphi 0, %s175
      %s178 = sphi 0, %s177
      %s192 = sphi 0, %s178
      %s196 = sphi 0, %s196
      %s198 = sphi 0, %s196
      %s199 = sphi 0, %s198
      %s213 = sphi 0, %s199
      %s217 = sphi 0, %s217
      %s219 = sphi 0, %s217
      %s220 = sphi 0, %s219
      %s234 = sphi 0, %s220
      %s238 = sphi 0, %s238
      %s240 = sphi 0, %s238
      %s241 = sphi 0, %s240
      %s255 = sphi 0, %s241
      %s259 = sphi 0, %s259
      %s261 = sphi 0, %s259
      %s262 = sphi 0, %s261
      %s276 = sphi 0, %s262
      %s282 = sphi 0, %s284
      %s285 = sphi 0, %s282
      %s286 = sphi 0, %s285
      %s302 = sphi 0, %s286
    $region4: #{decoder_forward.8} parent=1 // loop_header_branch
      %29 = sbr.rel (%p27) target = $region8
    $region5: #{decoder_forward.8} parent=1 // loop_body
      %s31 = ssub.s32 %s26, 1
      %s32 = ssub.s32 %s26, 2
      %s33 = sadd.s32 %s26, 1
      %s34 = ssub.s32 %s26, %s33
      %p35 = scmp.eq.s32.totalorder %s34, 0
      %s37 = sadd.s32 %s36, 1
      %s38 = scalar_select %p35, %s36, %s37
      %p41 = pneg %p35
      %p42 = scmp.eq.s32.totalorder %s26, 1
      %p43 = por %p41, %p42
      %p44 = scmp.ne.s32.totalorder %s36, %s39
      %p45 = scmp.eq.s32.totalorder %s26, 0
      %p46 = por %p44, %p45
      %p47 = scmp.ne.s32.totalorder %s36, %s39
      %p48 = scmp.eq.s32.totalorder %s31, 1
      %p49 = por %p47, %p48
      %p50 = scmp.ne.s32.totalorder %s39, %s40
      %p51 = scmp.eq.s32.totalorder %s31, 0
      %p52 = por %p50, %p51
      %p53 = scmp.ne.s32.totalorder %s39, %s40
      %p54 = scmp.eq.s32.totalorder %s32, 1
      %p55 = por %p53, %p54
      %p57 = scmp.ne.s32.totalorder %s40, %s56
      %p58 = scmp.eq.s32.totalorder %s32, 0
      %p59 = por %p57, %p58
      %s60 = ssub.s32 %s26, %s33
      %p61 = scmp.eq.s32.totalorder %s60, 0
      %s63 = sadd.s32 %s62, 1
      %s64 = scalar_select %p61, %s62, %s63
      %p67 = pneg %p61
      %p68 = scmp.eq.s32.totalorder %s26, 1
      %p69 = por %p67, %p68
      %p70 = scmp.ne.s32.totalorder %s62, %s65
      %p71 = scmp.eq.s32.totalorder %s26, 0
      %p72 = por %p70, %p71
      %p73 = scmp.ne.s32.totalorder %s62, %s65
      %p74 = scmp.eq.s32.totalorder %s31, 1
      %p75 = por %p73, %p74
      %p76 = scmp.ne.s32.totalorder %s65, %s66
      %p77 = scmp.eq.s32.totalorder %s31, 0
      %p78 = por %p76, %p77
      %p79 = scmp.ne.s32.totalorder %s65, %s66
      %p80 = scmp.eq.s32.totalorder %s32, 1
      %p81 = por %p79, %p80
      %p83 = scmp.ne.s32.totalorder %s66, %s82
      %p84 = scmp.eq.s32.totalorder %s32, 0
      %p85 = por %p83, %p84
      %s86 = ssub.s32 %s26, %s33
      %p87 = scmp.eq.s32.totalorder %s86, 0
      %s89 = sadd.s32 %s88, 1
      %s90 = scalar_select %p87, %s88, %s89
      %p93 = pneg %p87
      %p94 = scmp.eq.s32.totalorder %s26, 1
      %p95 = por %p93, %p94
      %p96 = scmp.ne.s32.totalorder %s88, %s91
      %p97 = scmp.eq.s32.totalorder %s26, 0
      %p98 = por %p96, %p97
      %p99 = scmp.ne.s32.totalorder %s88, %s91
      %p100 = scmp.eq.s32.totalorder %s31, 1
      %p101 = por %p99, %p100
      %p102 = scmp.ne.s32.totalorder %s91, %s92
      %p103 = scmp.eq.s32.totalorder %s31, 0
      %p104 = por %p102, %p103
      %p105 = scmp.ne.s32.totalorder %s91, %s92
      %p106 = scmp.eq.s32.totalorder %s32, 1
      %p107 = por %p105, %p106
      %p109 = scmp.ne.s32.totalorder %s92, %s108
      %p110 = scmp.eq.s32.totalorder %s32, 0
      %p111 = por %p109, %p110
      %s113 = sadd.s32 %s112, 1
      %p116 = scmp.eq.s32.totalorder %s26, 1
      %p117 = scmp.ne.s32.totalorder %s112, %s114
      %p118 = scmp.eq.s32.totalorder %s26, 0
      %p119 = por %p117, %p118
      %p120 = scmp.ne.s32.totalorder %s112, %s114
      %p121 = scmp.eq.s32.totalorder %s31, 1
      %p122 = por %p120, %p121
      %p123 = scmp.ne.s32.totalorder %s114, %s115
      %p124 = scmp.eq.s32.totalorder %s31, 0
      %p125 = por %p123, %p124
      %p126 = scmp.ne.s32.totalorder %s114, %s115
      %p127 = scmp.eq.s32.totalorder %s32, 1
      %p128 = por %p126, %p127
      %p130 = scmp.ne.s32.totalorder %s115, %s129
      %p131 = scmp.eq.s32.totalorder %s32, 0
      %p132 = por %p130, %p131
      %s134 = sadd.s32 %s133, 1
      %p137 = scmp.eq.s32.totalorder %s26, 1
      %p138 = scmp.ne.s32.totalorder %s133, %s135
      %p139 = scmp.eq.s32.totalorder %s26, 0
      %p140 = por %p138, %p139
      %p141 = scmp.ne.s32.totalorder %s133, %s135
      %p142 = scmp.eq.s32.totalorder %s31, 1
      %p143 = por %p141, %p142
      %p144 = scmp.ne.s32.totalorder %s135, %s136
      %p145 = scmp.eq.s32.totalorder %s31, 0
      %p146 = por %p144, %p145
      %p147 = scmp.ne.s32.totalorder %s135, %s136
      %p148 = scmp.eq.s32.totalorder %s32, 1
      %p149 = por %p147, %p148
      %p151 = scmp.ne.s32.totalorder %s136, %s150
      %p152 = scmp.eq.s32.totalorder %s32, 0
      %p153 = por %p151, %p152
      %s155 = sadd.s32 %s154, 1
      %p158 = scmp.eq.s32.totalorder %s26, 1
      %p159 = scmp.ne.s32.totalorder %s154, %s156
      %p160 = scmp.eq.s32.totalorder %s26, 0
      %p161 = por %p159, %p160
      %p162 = scmp.ne.s32.totalorder %s154, %s156
      %p163 = scmp.eq.s32.totalorder %s31, 1
      %p164 = por %p162, %p163
      %p165 = scmp.ne.s32.totalorder %s156, %s157
      %p166 = scmp.eq.s32.totalorder %s31, 0
      %p167 = por %p165, %p166
      %p168 = scmp.ne.s32.totalorder %s156, %s157
      %p169 = scmp.eq.s32.totalorder %s32, 1
      %p170 = por %p168, %p169
      %p172 = scmp.ne.s32.totalorder %s157, %s171
      %p173 = scmp.eq.s32.totalorder %s32, 0
      %p174 = por %p172, %p173
      %s176 = sadd.s32 %s175, 1
      %p179 = scmp.eq.s32.totalorder %s26, 1
      %p180 = scmp.ne.s32.totalorder %s175, %s177
      %p181 = scmp.eq.s32.totalorder %s26, 0
      %p182 = por %p180, %p181
      %p183 = scmp.ne.s32.totalorder %s175, %s177
      %p184 = scmp.eq.s32.totalorder %s31, 1
      %p185 = por %p183, %p184
      %p186 = scmp.ne.s32.totalorder %s177, %s178
      %p187 = scmp.eq.s32.totalorder %s31, 0
      %p188 = por %p186, %p187
      %p189 = scmp.ne.s32.totalorder %s177, %s178
      %p190 = scmp.eq.s32.totalorder %s32, 1
      %p191 = por %p189, %p190
      %p193 = scmp.ne.s32.totalorder %s178, %s192
      %p194 = scmp.eq.s32.totalorder %s32, 0
      %p195 = por %p193, %p194
      %s197 = sadd.s32 %s196, 1
      %p200 = scmp.eq.s32.totalorder %s26, 1
      %p201 = scmp.ne.s32.totalorder %s196, %s198
      %p202 = scmp.eq.s32.totalorder %s26, 0
      %p203 = por %p201, %p202
      %p204 = scmp.ne.s32.totalorder %s196, %s198
      %p205 = scmp.eq.s32.totalorder %s31, 1
      %p206 = por %p204, %p205
      %p207 = scmp.ne.s32.totalorder %s198, %s199
      %p208 = scmp.eq.s32.totalorder %s31, 0
      %p209 = por %p207, %p208
      %p210 = scmp.ne.s32.totalorder %s198, %s199
      %p211 = scmp.eq.s32.totalorder %s32, 1
      %p212 = por %p210, %p211
      %p214 = scmp.ne.s32.totalorder %s199, %s213
      %p215 = scmp.eq.s32.totalorder %s32, 0
      %p216 = por %p214, %p215
      %s218 = sadd.s32 %s217, 1
      %p221 = scmp.eq.s32.totalorder %s26, 1
      %p222 = scmp.ne.s32.totalorder %s217, %s219
      %p223 = scmp.eq.s32.totalorder %s26, 0
      %p224 = por %p222, %p223
      %p225 = scmp.ne.s32.totalorder %s217, %s219
      %p226 = scmp.eq.s32.totalorder %s31, 1
      %p227 = por %p225, %p226
      %p228 = scmp.ne.s32.totalorder %s219, %s220
      %p229 = scmp.eq.s32.totalorder %s31, 0
      %p230 = por %p228, %p229
      %p231 = scmp.ne.s32.totalorder %s219, %s220
      %p232 = scmp.eq.s32.totalorder %s32, 1
      %p233 = por %p231, %p232
      %p235 = scmp.ne.s32.totalorder %s220, %s234
      %p236 = scmp.eq.s32.totalorder %s32, 0
      %p237 = por %p235, %p236
      %s239 = sadd.s32 %s238, 1
      %p242 = scmp.eq.s32.totalorder %s26, 1
      %p243 = scmp.ne.s32.totalorder %s238, %s240
      %p244 = scmp.eq.s32.totalorder %s26, 0
      %p245 = por %p243, %p244
      %p246 = scmp.ne.s32.totalorder %s238, %s240
      %p247 = scmp.eq.s32.totalorder %s31, 1
      %p248 = por %p246, %p247
      %p249 = scmp.ne.s32.totalorder %s240, %s241
      %p250 = scmp.eq.s32.totalorder %s31, 0
      %p251 = por %p249, %p250
      %p252 = scmp.ne.s32.totalorder %s240, %s241
      %p253 = scmp.eq.s32.totalorder %s32, 1
      %p254 = por %p252, %p253
      %p256 = scmp.ne.s32.totalorder %s241, %s255
      %p257 = scmp.eq.s32.totalorder %s32, 0
      %p258 = por %p256, %p257
      %s260 = sadd.s32 %s259, 1
      %p263 = scmp.eq.s32.totalorder %s26, 1
      %p264 = scmp.ne.s32.totalorder %s259, %s261
      %p265 = scmp.eq.s32.totalorder %s26, 0
      %p266 = por %p264, %p265
      %p267 = scmp.ne.s32.totalorder %s259, %s261
      %p268 = scmp.eq.s32.totalorder %s31, 1
      %p269 = por %p267, %p268
      %p270 = scmp.ne.s32.totalorder %s261, %s262
      %p271 = scmp.eq.s32.totalorder %s31, 0
      %p272 = por %p270, %p271
      %p273 = scmp.ne.s32.totalorder %s261, %s262
      %p274 = scmp.eq.s32.totalorder %s32, 1
      %p275 = por %p273, %p274
      %p277 = scmp.ne.s32.totalorder %s262, %s276
      %p278 = scmp.eq.s32.totalorder %s32, 0
      %p279 = por %p277, %p278
      %s280 = ssub.s32 %s26, %s33
      %p281 = scmp.eq.s32.totalorder %s280, 0
      %s283 = sadd.s32 %s282, 1
      %s284 = scalar_select %p281, %s282, %s283
      %p287 = pneg %p281
      %p288 = scmp.eq.s32.totalorder %s26, 1
      %p289 = por %p287, %p288
      %p290 = scmp.ne.s32.totalorder %s282, %s285
      %p291 = scmp.eq.s32.totalorder %s26, 0
      %p292 = por %p290, %p291
      %p293 = scmp.ne.s32.totalorder %s282, %s285
      %p294 = scmp.eq.s32.totalorder %s31, 1
      %p295 = por %p293, %p294
      %p296 = scmp.ne.s32.totalorder %s285, %s286
      %p297 = scmp.eq.s32.totalorder %s31, 0
      %p298 = por %p296, %p297
      %p299 = scmp.ne.s32.totalorder %s285, %s286
      %p300 = scmp.eq.s32.totalorder %s32, 1
      %p301 = por %p299, %p300
      %p303 = scmp.ne.s32.totalorder %s286, %s302
      %p304 = scmp.eq.s32.totalorder %s32, 0
      %p305 = por %p303, %p304
      %p306 = scmp.le.s32.totalorder 1, %s26
      %p307 = scmp.lt.s32.totalorder %s26, 3
      %p308 = pnand %p306, %p307
      %p309 = pneg %p308
      // Predicated region
      $region9: #{decoder_forward.8} parent=5 // pred_check
        _
      $region10: #{decoder_forward.8} parent=5 // pred_check_branch
        %311 = sbr.rel (%p308) target = $region12
      $region11: #{decoder_forward.8} parent=5 // pred_region
        %s312 = ssub.s32 %s26, 1
        // Predicated region
        $region13: #{decoder_forward.8} parent=11 // pred_check
          %p313 = pneg %p125
        $region14: #{decoder_forward.8} parent=11 // pred_check_branch
          %315 = sbr.rel (%p313) target = $region16
        $region15: #{decoder_forward.8} parent=11 // pred_region
          _
        $region16: #{decoder_forward.8} parent=11 // pred_fallthru
          _
        // Predicated region
        $region17: #{decoder_forward.8} parent=11 // pred_check
          %p316 = pneg %p146
        $region18: #{decoder_forward.8} parent=11 // pred_check_branch
          %318 = sbr.rel (%p316) target = $region20
        $region19: #{decoder_forward.8} parent=11 // pred_region
          _
        $region20: #{decoder_forward.8} parent=11 // pred_fallthru
          _
        // Predicated region
        $region21: #{decoder_forward.8} parent=11 // pred_check
          %p319 = pneg %p167
        $region22: #{decoder_forward.8} parent=11 // pred_check_branch
          %321 = sbr.rel (%p319) target = $region24
        $region23: #{decoder_forward.8} parent=11 // pred_region
          %323 = vsyncadd [#allocation5], 0
          %s324 = sshll.u32 %s5, 4
          %s325 = int_to_ptr.hbm [resolvable:$true] %s324
          %s326 = sshll.u32 [#allocation6], 4
          %s327 = int_to_ptr.vmem [resolvable:$true] %s326
          %332 = dma.hbm_to_vmem [thread:$0]  %s325, 256, %s327, [#allocation5], 64, 64, 4
        $region24: #{decoder_forward.8} parent=11 // pred_fallthru
          _
        // Predicated region
        $region25: #{decoder_forward.8} parent=11 // pred_check
          %p333 = pneg %p188
        $region26: #{decoder_forward.8} parent=11 // pred_check_branch
          %335 = sbr.rel (%p333) target = $region28
        $region27: #{decoder_forward.8} parent=11 // pred_region
          %337 = vsyncadd [#allocation8], 0
          %s339 = sshll.u32 %s6, 4
          %s340 = int_to_ptr.hbm [resolvable:$true] %s339
          %s341 = sshll.u32 [#allocation7], 4
          %s342 = int_to_ptr.vmem [resolvable:$true] %s341
          %344 = dma.hbm_to_vmem [thread:$0]  %s340, 16, %s342, [#allocation8]
        $region28: #{decoder_forward.8} parent=11 // pred_fallthru
          _
        // Predicated region
        $region29: #{decoder_forward.8} parent=11 // pred_check
          %p345 = pneg %p209
        $region30: #{decoder_forward.8} parent=11 // pred_check_branch
          %347 = sbr.rel (%p345) target = $region32
        $region31: #{decoder_forward.8} parent=11 // pred_region
          %349 = vsyncadd [#allocation8], 0
          %s350 = sshll.u32 %s7, 4
          %s351 = int_to_ptr.hbm [resolvable:$true] %s350
          %s352 = sshll.u32 [#allocation9], 4
          %s353 = int_to_ptr.vmem [resolvable:$true] %s352
          %358 = dma.hbm_to_vmem [thread:$0]  %s351, 256, %s353, [#allocation8], 64, 64, 4
        $region32: #{decoder_forward.8} parent=11 // pred_fallthru
          _
        // Predicated region
        $region33: #{decoder_forward.8} parent=11 // pred_check
          %p359 = pneg %p230
        $region34: #{decoder_forward.8} parent=11 // pred_check_branch
          %361 = sbr.rel (%p359) target = $region36
        $region35: #{decoder_forward.8} parent=11 // pred_region
          %363 = vsyncadd [#allocation11], 0
          %s365 = sshll.u32 %s8, 4
          %s366 = int_to_ptr.hbm [resolvable:$true] %s365
          %s367 = sshll.u32 [#allocation10], 4
          %s368 = int_to_ptr.vmem [resolvable:$true] %s367
          %370 = dma.hbm_to_vmem [thread:$0]  %s366, 16, %s368, [#allocation11]
        $region36: #{decoder_forward.8} parent=11 // pred_fallthru
          _
        // Predicated region
        $region37: #{decoder_forward.8} parent=11 // pred_check
          %p371 = pneg %p251
        $region38: #{decoder_forward.8} parent=11 // pred_check_branch
          %373 = sbr.rel (%p371) target = $region40
        $region39: #{decoder_forward.8} parent=11 // pred_region
          %375 = vsyncadd [#allocation11], 0
          %s376 = sshll.u32 %s9, 4
          %s377 = int_to_ptr.hbm [resolvable:$true] %s376
          %s378 = sshll.u32 [#allocation12], 4
          %s379 = int_to_ptr.vmem [resolvable:$true] %s378
          %384 = dma.hbm_to_vmem [thread:$0]  %s377, 256, %s379, [#allocation11], 64, 64, 4
        $region40: #{decoder_forward.8} parent=11 // pred_fallthru
          _
        // Predicated region
        $region41: #{decoder_forward.8} parent=11 // pred_check
          %p385 = pneg %p272
        $region42: #{decoder_forward.8} parent=11 // pred_check_branch
          %387 = sbr.rel (%p385) target = $region44
        $region43: #{decoder_forward.8} parent=11 // pred_region
          %389 = vsyncadd [#allocation14], 0
          %s391 = sshll.u32 %s10, 4
          %s392 = int_to_ptr.hbm [resolvable:$true] %s391
          %s393 = sshll.u32 [#allocation13], 4
          %s394 = int_to_ptr.vmem [resolvable:$true] %s393
          %396 = dma.hbm_to_vmem [thread:$0]  %s392, 16, %s394, [#allocation14]
        $region44: #{decoder_forward.8} parent=11 // pred_fallthru
          _
      $region12: #{decoder_forward.8} parent=5 // pred_fallthru
        _
      %p397 = scmp.lt.s32.totalorder %s26, 2
      // Predicated region
      $region45: #{decoder_forward.8} parent=5 // pred_check
        %p398 = pneg %p397
      $region46: #{decoder_forward.8} parent=5 // pred_check_branch
        %400 = sbr.rel (%p398) target = $region48
      $region47: #{decoder_forward.8} parent=5 // pred_region
        // Predicated region
        $region49: #{decoder_forward.8} parent=47 // pred_check
          %p401 = pneg %p46
        $region50: #{decoder_forward.8} parent=47 // pred_check_branch
          %403 = sbr.rel (%p401) target = $region52
        $region51: #{decoder_forward.8} parent=47 // pred_region
          %p404 = scmp.lt.s32.totalorder %s26, 1
          %s405 = scalar_select %p404, %s26, 1
          %s406 = smul.addr %s405, 8
          %s407 = scalar_lea.vmem %s0, %s406
        $region52: #{decoder_forward.8} parent=47 // pred_fallthru
          _
        // Predicated region
        $region53: #{decoder_forward.8} parent=47 // pred_check
          %p408 = pneg %p72
        $region54: #{decoder_forward.8} parent=47 // pred_check_branch
          %410 = sbr.rel (%p408) target = $region56
        $region55: #{decoder_forward.8} parent=47 // pred_region
          %s411 = sand.u32 %s62, 1
          %s412 = scalar_lea.sflag [#allocation3], %s411
          %s413 = sand.u32 %s62, 1
          %s414 = smul.addr %s413, 8
          %s415 = scalar_lea.vmem [#allocation2], %s414
          %417 = vsyncadd %s412, 0
          %s418 = smul.addr %s26, 8
          %s419 = scalar_lea.hbm %s1, %s418
          %s421 = sshll.u32 %s419, 4
          %s422 = int_to_ptr.hbm [resolvable:$true] %s421
          %s423 = sshll.u32 %s415, 4
          %s424 = int_to_ptr.vmem [resolvable:$true] %s423
          %426 = dma.hbm_to_vmem [thread:$0]  %s422, 128, %s424, %s412
        $region56: #{decoder_forward.8} parent=47 // pred_fallthru
          _
        // Predicated region
        $region57: #{decoder_forward.8} parent=47 // pred_check
          %p427 = pneg %p98
        $region58: #{decoder_forward.8} parent=47 // pred_check_branch
          %429 = sbr.rel (%p427) target = $region60
        $region59: #{decoder_forward.8} parent=47 // pred_region
          %s430 = sand.u32 %s26, 1
          %s431 = scalar_lea.sflag [#allocation5], %s430
          %s432 = sand.u32 %s88, 1
          %s433 = smul.addr %s432, 8
          %s434 = scalar_lea.vmem [#allocation4], %s433
          %436 = vsyncadd %s431, 0
          %s437 = smul.addr %s26, 8
          %s438 = scalar_lea.hbm %s2, %s437
          %s440 = sshll.u32 %s438, 4
          %s441 = int_to_ptr.hbm [resolvable:$true] %s440
          %s442 = sshll.u32 %s434, 4
          %s443 = int_to_ptr.vmem [resolvable:$true] %s442
          %445 = dma.hbm_to_vmem [thread:$0]  %s441, 128, %s443, %s431
        $region60: #{decoder_forward.8} parent=47 // pred_fallthru
          _
      $region48: #{decoder_forward.8} parent=5 // pred_fallthru
        _
      %p446 = scmp.le.s32.totalorder 1, %s26
      %p447 = scmp.lt.s32.totalorder %s26, 3
      %p448 = pnand %p446, %p447
      %p449 = pneg %p448
      // Predicated region
      $region61: #{decoder_forward.8} parent=5 // pred_check
        _
      $region62: #{decoder_forward.8} parent=5 // pred_check_branch
        %451 = sbr.rel (%p448) target = $region64
      $region63: #{decoder_forward.8} parent=5 // pred_region
        %s452 = ssub.s32 %s26, 1
        %s453 = sand.u32 %s65, 1
        %s454 = scalar_lea.sflag [#allocation3], %s453
        %s455 = sand.u32 %s65, 1
        %s456 = smul.addr %s455, 8
        %s457 = scalar_lea.vmem [#allocation2], %s456
        // Predicated region
        $region65: #{decoder_forward.8} parent=63 // pred_check
          %p458 = pneg %p78
        $region66: #{decoder_forward.8} parent=63 // pred_check_branch
          %460 = sbr.rel (%p458) target = $region68
        $region67: #{decoder_forward.8} parent=63 // pred_region
          %462 = dma.done %s454, 128
        $region68: #{decoder_forward.8} parent=63 // pred_fallthru
          _
        %s463 = sand.u32 %s31, 1
        %s464 = scalar_lea.sflag [#allocation5], %s463
        %s465 = sand.u32 %s91, 1
        %s466 = smul.addr %s465, 8
        %s467 = scalar_lea.vmem [#allocation4], %s466
        // Predicated region
        $region69: #{decoder_forward.8} parent=63 // pred_check
          %p468 = pneg %p104
        $region70: #{decoder_forward.8} parent=63 // pred_check_branch
          %470 = sbr.rel (%p468) target = $region72
        $region71: #{decoder_forward.8} parent=63 // pred_region
          %472 = dma.done %s464, 128
        $region72: #{decoder_forward.8} parent=63 // pred_fallthru
          _
        // Predicated region
        $region73: #{decoder_forward.8} parent=63 // pred_check
          %p473 = pneg %p167
        $region74: #{decoder_forward.8} parent=63 // pred_check_branch
          %475 = sbr.rel (%p473) target = $region76
        $region75: #{decoder_forward.8} parent=63 // pred_region
          %477 = dma.done [#allocation5], 256
        $region76: #{decoder_forward.8} parent=63 // pred_fallthru
          _
        // Predicated region
        $region77: #{decoder_forward.8} parent=63 // pred_check
          %p478 = pneg %p188
        $region78: #{decoder_forward.8} parent=63 // pred_check_branch
          %480 = sbr.rel (%p478) target = $region80
        $region79: #{decoder_forward.8} parent=63 // pred_region
          %482 = dma.done [#allocation8], 16
        $region80: #{decoder_forward.8} parent=63 // pred_fallthru
          _
        // Predicated region
        $region81: #{decoder_forward.8} parent=63 // pred_check
          %p483 = pneg %p209
        $region82: #{decoder_forward.8} parent=63 // pred_check_branch
          %485 = sbr.rel (%p483) target = $region84
        $region83: #{decoder_forward.8} parent=63 // pred_region
          %487 = dma.done [#allocation8], 256
        $region84: #{decoder_forward.8} parent=63 // pred_fallthru
          _
        // Predicated region
        $region85: #{decoder_forward.8} parent=63 // pred_check
          %p488 = pneg %p230
        $region86: #{decoder_forward.8} parent=63 // pred_check_branch
          %490 = sbr.rel (%p488) target = $region88
        $region87: #{decoder_forward.8} parent=63 // pred_region
          %492 = dma.done [#allocation11], 16
        $region88: #{decoder_forward.8} parent=63 // pred_fallthru
          _
        // Predicated region
        $region89: #{decoder_forward.8} parent=63 // pred_check
          %p493 = pneg %p251
        $region90: #{decoder_forward.8} parent=63 // pred_check_branch
          %495 = sbr.rel (%p493) target = $region92
        $region91: #{decoder_forward.8} parent=63 // pred_region
          %497 = dma.done [#allocation11], 256
        $region92: #{decoder_forward.8} parent=63 // pred_fallthru
          _
        // Predicated region
        $region93: #{decoder_forward.8} parent=63 // pred_check
          %p498 = pneg %p272
        $region94: #{decoder_forward.8} parent=63 // pred_check_branch
          %500 = sbr.rel (%p498) target = $region96
        $region95: #{decoder_forward.8} parent=63 // pred_region
          %502 = dma.done [#allocation14], 16
        $region96: #{decoder_forward.8} parent=63 // pred_fallthru
          _
        %p503 = scmp.lt.s32.totalorder %s31, 1
        %s504 = scalar_select %p503, %s31, 1
        %s505 = smul.addr %s504, 8
        %s506 = scalar_lea.vmem %s0, %s505
        %p507 = pneg %p52
        %p508 = pneg %p49
        %s509 = sand.u32 %s65, 1
        %s510 = scalar_lea.sflag [#allocation3], %s509
        %s511 = sand.u32 %s65, 1
        %s512 = smul.addr %s511, 8
        %s513 = scalar_lea.vmem [#allocation2], %s512
        %p514 = pneg %p78
        %p515 = pneg %p75
        %s516 = sand.u32 %s31, 1
        %s517 = scalar_lea.sflag [#allocation5], %s516
        %s518 = sand.u32 %s91, 1
        %s519 = smul.addr %s518, 8
        %s520 = scalar_lea.vmem [#allocation4], %s519
        %p521 = pneg %p104
        %p522 = pneg %p101
        %p523 = pneg %p125
        %p524 = pneg %p122
        %p525 = pneg %p146
        %p526 = pneg %p143
        %p527 = pneg %p167
        %p528 = pneg %p164
        %p529 = pneg %p188
        %p530 = pneg %p185
        %p531 = pneg %p209
        %p532 = pneg %p206
        %p533 = pneg %p230
        %p534 = pneg %p227
        %p535 = pneg %p251
        %p536 = pneg %p248
        %p537 = pneg %p272
        %p538 = pneg %p269
        %p539 = pneg %p298
        %p540 = pneg %p295
        %p541 = scmp.lt.s32.totalorder %s31, 1
        %s542 = scalar_select %p541, %s31, 1
        %s543 = smul.addr %s542, 8
        %s544 = scalar_lea.vmem %s11, %s543
        %p545 = scmp.lt.s32.totalorder %s31, 1
        %s546 = scalar_select %p545, %s31, 1
        %s547 = smul.addr %s546, 8
        %s548 = scalar_lea.vmem %s0, %s547
        %p549 = scmp.lt.s32.totalorder %s31, 1
        %s550 = scalar_select %p549, %s31, 1
        %s551 = smul.addr %s550, 8
        %s552 = scalar_lea.vmem %s11, %s551
        %v554 = vld [vmem:[%s548] sm:$0xff]
        %v555 = vld [vmem:[%s3] sm:$0x1]
        %v556 = vld [vmem:[%s4] sm:$0x1]
        %vm557 = vcmask 261120
        %v558 = vsel %vm557, %v554, 0.0
        %559 = vadd.xlane.f32.xlu0 %v558
        %v560 = vpop.xlane.xlu0 %559
        %v561 = vrcp.pop 32.0
        %v562 = vmul.f32 32.0, %v561
        %v563 = vsub.f32 1.0, %v562
        %v564 = vmul.f32 %v561, %v563
        %v565 = vadd.f32 %v561, %v564
        %vm566 = vweird.f32 %v561
        %v567 = vsel %vm566, %v561, %v565
        %v568 = vmul.f32 %v560, %v567
        %v569 = vsub.f32 %v554, %v568
        %v570 = vmul.f32 %v569, %v569
        %v571 = vsel %vm557, %v570, 0.0
        %572 = vadd.xlane.f32.xlu0 %v571
        %v573 = vpop.xlane.xlu0 %572
        %v574 = vrcp.pop 31.0
        %v575 = vmul.f32 31.0, %v574
        %v576 = vsub.f32 1.0, %v575
        %v577 = vmul.f32 %v574, %v576
        %v578 = vadd.f32 %v574, %v577
        %vm579 = vweird.f32 %v574
        %v580 = vsel %vm579, %v574, %v578
        %v581 = vmul.f32 %v573, %v580
        %v583 = vperm.slane %v555, 0
        %v585 = vmul.f32 %v583, %v569
        %v586 = vrsqrt.pop %v581
        %v587 = vmul.f32 %v586, %v581
        %v588 = vmul.f32 %v587, %v586
        %v589 = vmul.f32 0.5, %v588
        %v590 = vsub.f32 1.5, %v589
        %v591 = vmul.f32 %v586, %v590
        %v592 = vmul.f32 %v581, %v591
        %vm593 = vcmp.eq.f32.partialorder %v581, inf
        %v594 = vsel %vm593, %v581, %v592
        %vm595 = vcmp.eq.f32.partialorder %v581, 0.0
        %v596 = vand.u32 %v581, 2147483648
        %v597 = vsel %vm595, %v596, %v594
        %v598 = vadd.f32 %v597, 1e-06
        %v599 = vrcp.pop %v598
        %v600 = vmul.f32 %v598, %v599
        %v601 = vsub.f32 1.0, %v600
        %v602 = vmul.f32 %v599, %v601
        %v603 = vadd.f32 %v599, %v602
        %vm604 = vweird.f32 %v598
        %vm605 = vweird.f32 %v599
        %vm606 = vmor %vm604, %vm605
        %v607 = vsel %vm606, %v599, %v603
        %v608 = vand.u32 2147483647, %v598
        %vm609 = vcmp.eq.f32.partialorder %v608, 8.507059e+37
        %v610 = vand.u32 %v598, 2147483648
        %v611 = vor.u32 1.1754944e-38, %v610
        %v612 = vsel %vm609, %v611, %v607
        %v613 = vmul.f32 %v585, %v612
        %v615 = vperm.slane %v556, 0
        %v617 = vadd.f32 %v613, %v615
        %v618 = vpack.c.bf16 %v617, %v617
        %v619 = vld [vmem:[#allocation6] sm:$0xf]
        %v620 = vld [vmem:[#allocation6 + $0x4] sm:$0xf]
        %v621 = vld [vmem:[#allocation6 + $0x8] sm:$0xf]
        %v622 = vld [vmem:[#allocation6 + $0xc] sm:$0xf]
        %v623 = vld [vmem:[#allocation7] sm:$0x1]
        %v625 = vperm.slane %v623, 0
        %v631 = vunpack.c.l.b16 %v619
        %v632 = vunpack.c.l.b16 %v620
        %v633 = vunpack.c.l.b16 %v621
        %v634 = vunpack.c.l.b16 %v622
        %v635 = vpack.c.b16 %v632, %v631
        %v636 = vpack.c.b16 %v634, %v633
        %v640 = vsel %vm557, %v618, 0
        %642 = vmatpush.bf16.msra.mxu0 0
        %643 = vmatpush.bf16.msra.mxu0 0
        %644 = vmatpush.bf16.msra.mxu0 0
        %645 = vmatpush.bf16.msra.mxu0 0
        %646 = vmatpush.bf16.msra.mxu0 0
        %647 = vmatpush.bf16.msra.mxu0 0
        %648 = vmatpush.bf16.msra.mxu0 %v636
        %649 = vmatpush.bf16.msra.mxu0 %v635
        %650 = vmatmul.bf16.gmra.mxu0 %v640
        %v651 = vpop.f32.mrf.mxu0
        %v652 = vadd.f32 %v625, %v651
        %v653 = vpop.f32.mrf.mxu0
        %654 = vdwg.mxu0
        %v655 = vld [vmem:[%s457] sm:$0xff]
        %v656 = vpack.c.bf16 %v655, %v655
        %v657 = vld [vmem:[#allocation9] sm:$0xf]
        %v658 = vld [vmem:[#allocation9 + $0x4] sm:$0xf]
        %v659 = vld [vmem:[#allocation9 + $0x8] sm:$0xf]
        %v660 = vld [vmem:[#allocation9 + $0xc] sm:$0xf]
        %v661 = vld [vmem:[#allocation10] sm:$0x1]
        %v663 = vperm.slane %v661, 0
        %v669 = vunpack.c.l.b16 %v657
        %v670 = vunpack.c.l.b16 %v658
        %v671 = vunpack.c.l.b16 %v659
        %v672 = vunpack.c.l.b16 %v660
        %v673 = vpack.c.b16 %v670, %v669
        %v674 = vpack.c.b16 %v672, %v671
        %v678 = vsel %vm557, %v656, 0
        %680 = vmatpush.bf16.msra.mxu0 0
        %681 = vmatpush.bf16.msra.mxu0 0
        %682 = vmatpush.bf16.msra.mxu0 0
        %683 = vmatpush.bf16.msra.mxu0 0
        %684 = vmatpush.bf16.msra.mxu0 0
        %685 = vmatpush.bf16.msra.mxu0 0
        %686 = vmatpush.bf16.msra.mxu0 %v674
        %687 = vmatpush.bf16.msra.mxu0 %v673
        %688 = vmatmul.bf16.gmra.mxu0 %v678
        %v689 = vpop.f32.mrf.mxu0
        %v690 = vadd.f32 %v663, %v689
        %v691 = vpop.f32.mrf.mxu0
        %692 = vdwg.mxu0
        %v693 = vld [vmem:[%s467] sm:$0xff]
        %v694 = vpack.c.bf16 %v652, %v652
        %v695 = vpack.c.bf16 %v690, %v690
        %vm696 = vcmask 64512
        %v698 = vsel %vm696, %v694, 0
        %v701 = vsel %vm696, %v695, 0
        %703 = vmatpush.bf16.xpose.msra.mxu0 0
        %704 = vmatpush.bf16.xpose.msra.mxu0 0
        %705 = vmatpush.bf16.xpose.msra.mxu0 0
        %706 = vmatpush.bf16.xpose.msra.mxu0 0
        %707 = vmatpush.bf16.xpose.msra.mxu0 0
        %708 = vmatpush.bf16.xpose.msra.mxu0 0
        %709 = vmatpush.bf16.xpose.msra.mxu0 0
        %710 = vmatpush.bf16.xpose.msra.mxu0 %v701
        %711 = vmatmul.bf16.gmra.mxu0 %v698
        %v712 = vpop.f32.mrf.mxu0
        %v713 = vadd.f32 0.0, %v712
        %v714 = vpop.f32.mrf.mxu0
        %715 = vdwg.mxu0
        %v716 = vmul.f32 %v713, 0.35355338
        %vm717 = vcmp.eq.f32.partialorder %v693, 0.0
        %v718 = vsel %vm717, -1e+09, %v716
        %v719 = vsel %vm696, %v718, -inf
        %720 = vmax.xlane.f32.xlu0 %v719
        %v721 = vpop.xlane.xlu0 %720
        %v722 = vsub.f32 %v718, %v721
        %v723 = vmul.f32 %v722, 1.442695
        %v724 = vpow.pop %v723
        %v725 = vsel %vm696, %v724, 0.0
        %726 = vadd.xlane.f32.xlu0 %v725
        %v727 = vpop.xlane.xlu0 %726
        %v728 = vpack.c.bf16 %v724, %v724
        %730 = vrot.lane.b32.xlu0 %v695, 96
        %v731 = vpop.permute.xlu0 %730
        %v733 = vsel %vm696, %v728, 0
        %vm735 = vcmask 1043456
        %v737 = vsel %vm735, %v731, 0
        %739 = vmatpush.bf16.msra.mxu0 0
        %740 = vmatpush.bf16.msra.mxu0 0
        %741 = vmatpush.bf16.msra.mxu0 0
        %742 = vmatpush.bf16.msra.mxu0 0
        %743 = vmatpush.bf16.msra.mxu0 0
        %744 = vmatpush.bf16.msra.mxu0 0
        %745 = vmatpush.bf16.msra.mxu0 0
        %746 = vmatpush.bf16.msra.mxu0 %v737
        %747 = vmatmul.bf16.gmra.mxu0 %v733
        %v748 = vpop.f32.mrf.mxu0
        %v749 = vadd.f32 0.0, %v748
        %v750 = vpop.f32.mrf.mxu0
        %751 = vdwg.mxu0
        %v752 = vrcp.pop %v727
        %v753 = vmul.f32 %v749, %v752
        %755 = vrot.lane.b32.xlu0 %v694, 120
        %v756 = vpop.permute.xlu0 %755
        %757 = vrot.lane.b32.xlu0 %v695, 120
        %v758 = vpop.permute.xlu0 %757
        %v760 = vsel %vm696, %v756, 0
        %v763 = vsel %vm696, %v758, 0
        %765 = vmatpush.bf16.xpose.msra.mxu0 0
        %766 = vmatpush.bf16.xpose.msra.mxu0 0
        %767 = vmatpush.bf16.xpose.msra.mxu0 0
        %768 = vmatpush.bf16.xpose.msra.mxu0 0
        %769 = vmatpush.bf16.xpose.msra.mxu0 0
        %770 = vmatpush.bf16.xpose.msra.mxu0 0
        %771 = vmatpush.bf16.xpose.msra.mxu0 0
        %772 = vmatpush.bf16.xpose.msra.mxu0 %v763
        %773 = vmatmul.bf16.gmra.mxu0 %v760
        %v774 = vpop.f32.mrf.mxu0
        %v775 = vadd.f32 0.0, %v774
        %v776 = vpop.f32.mrf.mxu0
        %777 = vdwg.mxu0
        %v778 = vmul.f32 %v775, 0.35355338
        %v779 = vsel %vm717, -1e+09, %v778
        %v780 = vsel %vm696, %v779, -inf
        %781 = vmax.xlane.f32.xlu0 %v780
        %v782 = vpop.xlane.xlu0 %781
        %v783 = vsub.f32 %v779, %v782
        %v784 = vmul.f32 %v783, 1.442695
        %v785 = vpow.pop %v784
        %v786 = vsel %vm696, %v785, 0.0
        %787 = vadd.xlane.f32.xlu0 %v786
        %v788 = vpop.xlane.xlu0 %787
        %v789 = vpack.c.bf16 %v785, %v785
        %790 = vrot.lane.b32.xlu0 %v695, 88
        %v791 = vpop.permute.xlu0 %790
        %v793 = vsel %vm696, %v789, 0
        %v796 = vsel %vm735, %v791, 0
        %798 = vmatpush.bf16.msra.mxu0 0
        %799 = vmatpush.bf16.msra.mxu0 0
        %800 = vmatpush.bf16.msra.mxu0 0
        %801 = vmatpush.bf16.msra.mxu0 0
        %802 = vmatpush.bf16.msra.mxu0 0
        %803 = vmatpush.bf16.msra.mxu0 0
        %804 = vmatpush.bf16.msra.mxu0 0
        %805 = vmatpush.bf16.msra.mxu0 %v796
        %806 = vmatmul.bf16.gmra.mxu0 %v793
        %v807 = vpop.f32.mrf.mxu0
        %v808 = vadd.f32 0.0, %v807
        %v809 = vpop.f32.mrf.mxu0
        %810 = vdwg.mxu0
        %v811 = vrcp.pop %v788
        %v812 = vmul.f32 %v808, %v811
        %813 = vrot.lane.b32.xlu0 %v694, 112
        %v814 = vpop.permute.xlu0 %813
        %815 = vrot.lane.b32.xlu0 %v695, 112
        %v816 = vpop.permute.xlu0 %815
        %v818 = vsel %vm696, %v814, 0
        %v821 = vsel %vm696, %v816, 0
        %823 = vmatpush.bf16.xpose.msra.mxu0 0
        %824 = vmatpush.bf16.xpose.msra.mxu0 0
        %825 = vmatpush.bf16.xpose.msra.mxu0 0
        %826 = vmatpush.bf16.xpose.msra.mxu0 0
        %827 = vmatpush.bf16.xpose.msra.mxu0 0
        %828 = vmatpush.bf16.xpose.msra.mxu0 0
        %829 = vmatpush.bf16.xpose.msra.mxu0 0
        %830 = vmatpush.bf16.xpose.msra.mxu0 %v821
        %831 = vmatmul.bf16.gmra.mxu0 %v818
        %v832 = vpop.f32.mrf.mxu0
        %v833 = vadd.f32 0.0, %v832
        %v834 = vpop.f32.mrf.mxu0
        %835 = vdwg.mxu0
        %v836 = vmul.f32 %v833, 0.35355338
        %v837 = vsel %vm717, -1e+09, %v836
        %v838 = vsel %vm696, %v837, -inf
        %839 = vmax.xlane.f32.xlu0 %v838
        %v840 = vpop.xlane.xlu0 %839
        %v841 = vsub.f32 %v837, %v840
        %v842 = vmul.f32 %v841, 1.442695
        %v843 = vpow.pop %v842
        %v844 = vsel %vm696, %v843, 0.0
        %845 = vadd.xlane.f32.xlu0 %v844
        %v846 = vpop.xlane.xlu0 %845
        %v847 = vpack.c.bf16 %v843, %v843
        %848 = vrot.lane.b32.xlu0 %v695, 80
        %v849 = vpop.permute.xlu0 %848
        %v851 = vsel %vm696, %v847, 0
        %v854 = vsel %vm735, %v849, 0
        %856 = vmatpush.bf16.msra.mxu0 0
        %857 = vmatpush.bf16.msra.mxu0 0
        %858 = vmatpush.bf16.msra.mxu0 0
        %859 = vmatpush.bf16.msra.mxu0 0
        %860 = vmatpush.bf16.msra.mxu0 0
        %861 = vmatpush.bf16.msra.mxu0 0
        %862 = vmatpush.bf16.msra.mxu0 0
        %863 = vmatpush.bf16.msra.mxu0 %v854
        %864 = vmatmul.bf16.gmra.mxu0 %v851
        %v865 = vpop.f32.mrf.mxu0
        %v866 = vadd.f32 0.0, %v865
        %v867 = vpop.f32.mrf.mxu0
        %868 = vdwg.mxu0
        %v869 = vrcp.pop %v846
        %v870 = vmul.f32 %v866, %v869
        %871 = vrot.lane.b32.xlu0 %v694, 104
        %v872 = vpop.permute.xlu0 %871
        %873 = vrot.lane.b32.xlu0 %v695, 104
        %v874 = vpop.permute.xlu0 %873
        %v876 = vsel %vm696, %v872, 0
        %v879 = vsel %vm696, %v874, 0
        %881 = vmatpush.bf16.xpose.msra.mxu0 0
        %882 = vmatpush.bf16.xpose.msra.mxu0 0
        %883 = vmatpush.bf16.xpose.msra.mxu0 0
        %884 = vmatpush.bf16.xpose.msra.mxu0 0
        %885 = vmatpush.bf16.xpose.msra.mxu0 0
        %886 = vmatpush.bf16.xpose.msra.mxu0 0
        %887 = vmatpush.bf16.xpose.msra.mxu0 0
        %888 = vmatpush.bf16.xpose.msra.mxu0 %v879
        %889 = vmatmul.bf16.gmra.mxu0 %v876
        %v890 = vpop.f32.mrf.mxu0
        %v891 = vadd.f32 0.0, %v890
        %v892 = vpop.f32.mrf.mxu0
        %893 = vdwg.mxu0
        %v894 = vmul.f32 %v891, 0.35355338
        %v895 = vsel %vm717, -1e+09, %v894
        %v896 = vsel %vm696, %v895, -inf
        %897 = vmax.xlane.f32.xlu0 %v896
        %v898 = vpop.xlane.xlu0 %897
        %v899 = vsub.f32 %v895, %v898
        %v900 = vmul.f32 %v899, 1.442695
        %v901 = vpow.pop %v900
        %v902 = vsel %vm696, %v901, 0.0
        %903 = vadd.xlane.f32.xlu0 %v902
        %v904 = vpop.xlane.xlu0 %903
        %v905 = vpack.c.bf16 %v901, %v901
        %906 = vrot.lane.b32.xlu0 %v695, 72
        %v907 = vpop.permute.xlu0 %906
        %v909 = vsel %vm696, %v905, 0
        %v912 = vsel %vm735, %v907, 0
        %914 = vmatpush.bf16.msra.mxu0 0
        %915 = vmatpush.bf16.msra.mxu0 0
        %916 = vmatpush.bf16.msra.mxu0 0
        %917 = vmatpush.bf16.msra.mxu0 0
        %918 = vmatpush.bf16.msra.mxu0 0
        %919 = vmatpush.bf16.msra.mxu0 0
        %920 = vmatpush.bf16.msra.mxu0 0
        %921 = vmatpush.bf16.msra.mxu0 %v912
        %922 = vmatmul.bf16.gmra.mxu0 %v909
        %v923 = vpop.f32.mrf.mxu0
        %v924 = vadd.f32 0.0, %v923
        %v925 = vpop.f32.mrf.mxu0
        %926 = vdwg.mxu0
        %v927 = vrcp.pop %v904
        %v928 = vmul.f32 %v924, %v927
        %930 = vrot.lane.b32.xlu0 %v812, 8
        %v931 = vpop.permute.xlu0 %930
        %934 = vrot.lane.b32.xlu0 %v870, 16
        %v935 = vpop.permute.xlu0 %934
        %938 = vrot.lane.b32.xlu0 %v928, 24
        %v939 = vpop.permute.xlu0 %938
        %v941 = vsel %vm696, %v753, %v931
        %vm942 = vcmask 130048
        %v943 = vsel %vm942, %v941, %v935
        %vm944 = vcmask 195584
        %v945 = vsel %vm944, %v943, %v939
        %v946 = vpack.c.bf16 %v945, %v945
        %v947 = vld [vmem:[#allocation12] sm:$0xf]
        %v948 = vld [vmem:[#allocation12 + $0x4] sm:$0xf]
        %v949 = vld [vmem:[#allocation12 + $0x8] sm:$0xf]
        %v950 = vld [vmem:[#allocation12 + $0xc] sm:$0xf]
        %v951 = vld [vmem:[#allocation13] sm:$0x1]
        %v953 = vperm.slane %v951, 0
        %v959 = vunpack.c.l.b16 %v947
        %v960 = vunpack.c.l.b16 %v948
        %v961 = vunpack.c.l.b16 %v949
        %v962 = vunpack.c.l.b16 %v950
        %v963 = vpack.c.b16 %v960, %v959
        %v964 = vpack.c.b16 %v962, %v961
        %v968 = vsel %vm557, %v946, 0
        %970 = vmatpush.bf16.msra.mxu0 0
        %971 = vmatpush.bf16.msra.mxu0 0
        %972 = vmatpush.bf16.msra.mxu0 0
        %973 = vmatpush.bf16.msra.mxu0 0
        %974 = vmatpush.bf16.msra.mxu0 0
        %975 = vmatpush.bf16.msra.mxu0 0
        %976 = vmatpush.bf16.msra.mxu0 %v964
        %977 = vmatpush.bf16.msra.mxu0 %v963
        %978 = vmatmul.bf16.gmra.mxu0 %v968
        %v979 = vpop.f32.mrf.mxu0
        %v980 = vadd.f32 %v953, %v979
        %v981 = vpop.f32.mrf.mxu0
        %982 = vdwg.mxu0
        %v983 = vadd.f32 %v980, %v554
        %984 = vst.msk [vmem:[%s552] sm:$0xff] %vm557, %v983
        %p985 = scmp.lt.s32.totalorder %s31, 1
        %s986 = scalar_select %p985, %s31, 1
        %s987 = smul.addr %s986, 8
        %s988 = scalar_lea.vmem %s11, %s987
        // Predicated region
        $region97: #{decoder_forward.8} parent=63 // pred_check
          %p989 = pneg %p295
        $region98: #{decoder_forward.8} parent=63 // pred_check_branch
          %991 = sbr.rel (%p989) target = $region100
        $region99: #{decoder_forward.8} parent=63 // pred_region
          _
        $region100: #{decoder_forward.8} parent=63 // pred_fallthru
          _
      $region64: #{decoder_forward.8} parent=5 // pred_fallthru
        _
      %p992 = scmp.le.s32.totalorder 2, %s26
      // Predicated region
      $region101: #{decoder_forward.8} parent=5 // pred_check
        %p993 = pneg %p992
      $region102: #{decoder_forward.8} parent=5 // pred_check_branch
        %995 = sbr.rel (%p993) target = $region104
      $region103: #{decoder_forward.8} parent=5 // pred_region
        %s996 = ssub.s32 %s26, 2
        // Predicated region
        $region105: #{decoder_forward.8} parent=103 // pred_check
          %p997 = pneg %p301
        $region106: #{decoder_forward.8} parent=103 // pred_check_branch
          %999 = sbr.rel (%p997) target = $region108
        $region107: #{decoder_forward.8} parent=103 // pred_region
          %p1000 = scmp.lt.s32.totalorder %s32, 1
          %s1001 = scalar_select %p1000, %s32, 1
          %s1002 = smul.addr %s1001, 8
          %s1003 = scalar_lea.vmem %s11, %s1002
        $region108: #{decoder_forward.8} parent=103 // pred_fallthru
          _
      $region104: #{decoder_forward.8} parent=5 // pred_fallthru
        _
    $region6: #{decoder_forward.8} parent=1 // loop_footer
      %s30 = sadd.s32 1, %s26
    $region7: #{decoder_forward.8} parent=1 // loop_footer_branch
      %25 = sbr.rel target = $region3
    $region8: #{decoder_forward.8} parent=1 // loop_exit
      _
    %1004 = vsyncpa [#allocation3], 1
    %s1005 = scalar_lea.sflag [#allocation3], 1
    %1006 = vsyncpa %s1005, 1
    %1007 = vsyncpa [#allocation5], 1
    %s1008 = scalar_lea.sflag [#allocation5], 1
    %1009 = vsyncpa %s1008, 1
    %1010 = vsyncpa [#allocation8], 1
    %1011 = vsyncpa [#allocation11], 1
    %1012 = vsyncpa [#allocation14], 1

// kernel: decoder_forward.10
$region0: #{decoder_forward.10}
  #allocation0 [shape = 'u32[]', space=smem, size = 0x4, offset = 0x4, fixed_abs, tag = 'smem constant byte address 0x4 - core index']
  #allocation1 [shape = 'u32[72,128]{1,0:T(1,128)}', space=vmem, size = 0x9000, scoped, tag = 'internal scratch']
  %s0 = inlined_call_operand.vmem [shape: f32[2,8,32], index: 0, kind: input, shape index: {}, may-alias: {0,8}]
  %s1 = inlined_call_operand.vmem [shape: f32[2,8,8], index: 1, kind: input, shape index: {}]
  %s2 = inlined_call_operand.vmem [shape: f32[1,32], index: 2, kind: input, shape index: {}]
  %s3 = inlined_call_operand.vmem [shape: f32[1,32], index: 3, kind: input, shape index: {}]
  %s4 = inlined_call_operand.vmem [shape: bf16[32,96], index: 4, kind: input, shape index: {}]
  %s5 = inlined_call_operand.vmem [shape: f32[1,96], index: 5, kind: input, shape index: {}]
  %s6 = inlined_call_operand.vmem [shape: bf16[32,32], index: 6, kind: input, shape index: {}]
  %s7 = inlined_call_operand.vmem [shape: f32[1,32], index: 7, kind: input, shape index: {}]
  %s8 = inlined_call_operand.vmem [shape: f32[2,8,32], index: 8, kind: output, shape index: {}, may-alias: {0,8}]
  %s9 = sld [smem:[#allocation0]]
  $region65: #{decoder_forward.10} parent=0
    _
  %s11 = ssub.s32 1, %s9
  %s12 = scalar_select 0, %s11, %s9
  loop: start=0, step=1, limit=4
  $region2: #{decoder_forward.10} parent=0 // loop_pre_header
    _
  $region3: #{decoder_forward.10} parent=0 // loop_header
    %s14 = sphi 0, %s18
    %p15 = scmp.ge.s32.totalorder %s14, 4
    %s24 = sphi 0, %s26
    %s27 = sphi 0, %s24
    %s28 = sphi 0, %s27
    %s44 = sphi 0, %s28
    %s50 = sphi 0, %s52
    %s53 = sphi 0, %s50
    %s54 = sphi 0, %s53
    %s70 = sphi 0, %s54
    %s74 = sphi 0, %s74
    %s76 = sphi 0, %s74
    %s77 = sphi 0, %s76
    %s91 = sphi 0, %s77
    %s95 = sphi 0, %s95
    %s97 = sphi 0, %s95
    %s98 = sphi 0, %s97
    %s112 = sphi 0, %s98
    %s116 = sphi 0, %s116
    %s118 = sphi 0, %s116
    %s119 = sphi 0, %s118
    %s133 = sphi 0, %s119
    %s137 = sphi 0, %s137
    %s139 = sphi 0, %s137
    %s140 = sphi 0, %s139
    %s154 = sphi 0, %s140
    %s158 = sphi 0, %s158
    %s160 = sphi 0, %s158
    %s161 = sphi 0, %s160
    %s175 = sphi 0, %s161
    %s179 = sphi 0, %s179
    %s181 = sphi 0, %s179
    %s182 = sphi 0, %s181
    %s196 = sphi 0, %s182
    %s202 = sphi 0, %s204
    %s205 = sphi 0, %s202
    %s206 = sphi 0, %s205
    %s222 = sphi 0, %s206
  $region4: #{decoder_forward.10} parent=0 // loop_header_branch
    %17 = sbr.rel (%p15) target = $region8
  $region5: #{decoder_forward.10} parent=0 // loop_body
    %s19 = ssub.s32 %s14, 1
    %s20 = ssub.s32 %s14, 2
    %s21 = sadd.s32 %s14, 1
    %s22 = ssub.s32 %s14, %s21
    %p23 = scmp.eq.s32.totalorder %s22, 0
    %s25 = sadd.s32 %s24, 1
    %s26 = scalar_select %p23, %s24, %s25
    %p29 = pneg %p23
    %p30 = scmp.eq.s32.totalorder %s14, 1
    %p31 = por %p29, %p30
    %p32 = scmp.ne.s32.totalorder %s24, %s27
    %p33 = scmp.eq.s32.totalorder %s14, 0
    %p34 = por %p32, %p33
    %p35 = scmp.ne.s32.totalorder %s24, %s27
    %p36 = scmp.eq.s32.totalorder %s19, 1
    %p37 = por %p35, %p36
    %p38 = scmp.ne.s32.totalorder %s27, %s28
    %p39 = scmp.eq.s32.totalorder %s19, 0
    %p40 = por %p38, %p39
    %p41 = scmp.ne.s32.totalorder %s27, %s28
    %p42 = scmp.eq.s32.totalorder %s20, 1
    %p43 = por %p41, %p42
    %p45 = scmp.ne.s32.totalorder %s28, %s44
    %p46 = scmp.eq.s32.totalorder %s20, 0
    %p47 = por %p45, %p46
    %s48 = ssub.s32 %s14, %s21
    %p49 = scmp.eq.s32.totalorder %s48, 0
    %s51 = sadd.s32 %s50, 1
    %s52 = scalar_select %p49, %s50, %s51
    %p55 = pneg %p49
    %p56 = scmp.eq.s32.totalorder %s14, 1
    %p57 = por %p55, %p56
    %p58 = scmp.ne.s32.totalorder %s50, %s53
    %p59 = scmp.eq.s32.totalorder %s14, 0
    %p60 = por %p58, %p59
    %p61 = scmp.ne.s32.totalorder %s50, %s53
    %p62 = scmp.eq.s32.totalorder %s19, 1
    %p63 = por %p61, %p62
    %p64 = scmp.ne.s32.totalorder %s53, %s54
    %p65 = scmp.eq.s32.totalorder %s19, 0
    %p66 = por %p64, %p65
    %p67 = scmp.ne.s32.totalorder %s53, %s54
    %p68 = scmp.eq.s32.totalorder %s20, 1
    %p69 = por %p67, %p68
    %p71 = scmp.ne.s32.totalorder %s54, %s70
    %p72 = scmp.eq.s32.totalorder %s20, 0
    %p73 = por %p71, %p72
    %s75 = sadd.s32 %s74, 1
    %p78 = scmp.eq.s32.totalorder %s14, 1
    %p79 = scmp.ne.s32.totalorder %s74, %s76
    %p80 = scmp.eq.s32.totalorder %s14, 0
    %p81 = por %p79, %p80
    %p82 = scmp.ne.s32.totalorder %s74, %s76
    %p83 = scmp.eq.s32.totalorder %s19, 1
    %p84 = por %p82, %p83
    %p85 = scmp.ne.s32.totalorder %s76, %s77
    %p86 = scmp.eq.s32.totalorder %s19, 0
    %p87 = por %p85, %p86
    %p88 = scmp.ne.s32.totalorder %s76, %s77
    %p89 = scmp.eq.s32.totalorder %s20, 1
    %p90 = por %p88, %p89
    %p92 = scmp.ne.s32.totalorder %s77, %s91
    %p93 = scmp.eq.s32.totalorder %s20, 0
    %p94 = por %p92, %p93
    %s96 = sadd.s32 %s95, 1
    %p99 = scmp.eq.s32.totalorder %s14, 1
    %p100 = scmp.ne.s32.totalorder %s95, %s97
    %p101 = scmp.eq.s32.totalorder %s14, 0
    %p102 = por %p100, %p101
    %p103 = scmp.ne.s32.totalorder %s95, %s97
    %p104 = scmp.eq.s32.totalorder %s19, 1
    %p105 = por %p103, %p104
    %p106 = scmp.ne.s32.totalorder %s97, %s98
    %p107 = scmp.eq.s32.totalorder %s19, 0
    %p108 = por %p106, %p107
    %p109 = scmp.ne.s32.totalorder %s97, %s98
    %p110 = scmp.eq.s32.totalorder %s20, 1
    %p111 = por %p109, %p110
    %p113 = scmp.ne.s32.totalorder %s98, %s112
    %p114 = scmp.eq.s32.totalorder %s20, 0
    %p115 = por %p113, %p114
    %s117 = sadd.s32 %s116, 1
    %p120 = scmp.eq.s32.totalorder %s14, 1
    %p121 = scmp.ne.s32.totalorder %s116, %s118
    %p122 = scmp.eq.s32.totalorder %s14, 0
    %p123 = por %p121, %p122
    %p124 = scmp.ne.s32.totalorder %s116, %s118
    %p125 = scmp.eq.s32.totalorder %s19, 1
    %p126 = por %p124, %p125
    %p127 = scmp.ne.s32.totalorder %s118, %s119
    %p128 = scmp.eq.s32.totalorder %s19, 0
    %p129 = por %p127, %p128
    %p130 = scmp.ne.s32.totalorder %s118, %s119
    %p131 = scmp.eq.s32.totalorder %s20, 1
    %p132 = por %p130, %p131
    %p134 = scmp.ne.s32.totalorder %s119, %s133
    %p135 = scmp.eq.s32.totalorder %s20, 0
    %p136 = por %p134, %p135
    %s138 = sadd.s32 %s137, 1
    %p141 = scmp.eq.s32.totalorder %s14, 1
    %p142 = scmp.ne.s32.totalorder %s137, %s139
    %p143 = scmp.eq.s32.totalorder %s14, 0
    %p144 = por %p142, %p143
    %p145 = scmp.ne.s32.totalorder %s137, %s139
    %p146 = scmp.eq.s32.totalorder %s19, 1
    %p147 = por %p145, %p146
    %p148 = scmp.ne.s32.totalorder %s139, %s140
    %p149 = scmp.eq.s32.totalorder %s19, 0
    %p150 = por %p148, %p149
    %p151 = scmp.ne.s32.totalorder %s139, %s140
    %p152 = scmp.eq.s32.totalorder %s20, 1
    %p153 = por %p151, %p152
    %p155 = scmp.ne.s32.totalorder %s140, %s154
    %p156 = scmp.eq.s32.totalorder %s20, 0
    %p157 = por %p155, %p156
    %s159 = sadd.s32 %s158, 1
    %p162 = scmp.eq.s32.totalorder %s14, 1
    %p163 = scmp.ne.s32.totalorder %s158, %s160
    %p164 = scmp.eq.s32.totalorder %s14, 0
    %p165 = por %p163, %p164
    %p166 = scmp.ne.s32.totalorder %s158, %s160
    %p167 = scmp.eq.s32.totalorder %s19, 1
    %p168 = por %p166, %p167
    %p169 = scmp.ne.s32.totalorder %s160, %s161
    %p170 = scmp.eq.s32.totalorder %s19, 0
    %p171 = por %p169, %p170
    %p172 = scmp.ne.s32.totalorder %s160, %s161
    %p173 = scmp.eq.s32.totalorder %s20, 1
    %p174 = por %p172, %p173
    %p176 = scmp.ne.s32.totalorder %s161, %s175
    %p177 = scmp.eq.s32.totalorder %s20, 0
    %p178 = por %p176, %p177
    %s180 = sadd.s32 %s179, 1
    %p183 = scmp.eq.s32.totalorder %s14, 1
    %p184 = scmp.ne.s32.totalorder %s179, %s181
    %p185 = scmp.eq.s32.totalorder %s14, 0
    %p186 = por %p184, %p185
    %p187 = scmp.ne.s32.totalorder %s179, %s181
    %p188 = scmp.eq.s32.totalorder %s19, 1
    %p189 = por %p187, %p188
    %p190 = scmp.ne.s32.totalorder %s181, %s182
    %p191 = scmp.eq.s32.totalorder %s19, 0
    %p192 = por %p190, %p191
    %p193 = scmp.ne.s32.totalorder %s181, %s182
    %p194 = scmp.eq.s32.totalorder %s20, 1
    %p195 = por %p193, %p194
    %p197 = scmp.ne.s32.totalorder %s182, %s196
    %p198 = scmp.eq.s32.totalorder %s20, 0
    %p199 = por %p197, %p198
    %s200 = ssub.s32 %s14, %s21
    %p201 = scmp.eq.s32.totalorder %s200, 0
    %s203 = sadd.s32 %s202, 1
    %s204 = scalar_select %p201, %s202, %s203
    %p207 = pneg %p201
    %p208 = scmp.eq.s32.totalorder %s14, 1
    %p209 = por %p207, %p208
    %p210 = scmp.ne.s32.totalorder %s202, %s205
    %p211 = scmp.eq.s32.totalorder %s14, 0
    %p212 = por %p210, %p211
    %p213 = scmp.ne.s32.totalorder %s202, %s205
    %p214 = scmp.eq.s32.totalorder %s19, 1
    %p215 = por %p213, %p214
    %p216 = scmp.ne.s32.totalorder %s205, %s206
    %p217 = scmp.eq.s32.totalorder %s19, 0
    %p218 = por %p216, %p217
    %p219 = scmp.ne.s32.totalorder %s205, %s206
    %p220 = scmp.eq.s32.totalorder %s20, 1
    %p221 = por %p219, %p220
    %p223 = scmp.ne.s32.totalorder %s206, %s222
    %p224 = scmp.eq.s32.totalorder %s20, 0
    %p225 = por %p223, %p224
    %p226 = scmp.le.s32.totalorder 1, %s14
    %p227 = scmp.lt.s32.totalorder %s14, 3
    %p228 = pnand %p226, %p227
    %p229 = pneg %p228
    // Predicated region
    $region9: #{decoder_forward.10} parent=5 // pred_check
      _
    $region10: #{decoder_forward.10} parent=5 // pred_check_branch
      %231 = sbr.rel (%p228) target = $region12
    $region11: #{decoder_forward.10} parent=5 // pred_region
      %s232 = ssub.s32 %s14, 1
      // Predicated region
      $region13: #{decoder_forward.10} parent=11 // pred_check
        %p233 = pneg %p87
      $region14: #{decoder_forward.10} parent=11 // pred_check_branch
        %235 = sbr.rel (%p233) target = $region16
      $region15: #{decoder_forward.10} parent=11 // pred_region
        _
      $region16: #{decoder_forward.10} parent=11 // pred_fallthru
        _
      // Predicated region
      $region17: #{decoder_forward.10} parent=11 // pred_check
        %p236 = pneg %p108
      $region18: #{decoder_forward.10} parent=11 // pred_check_branch
        %238 = sbr.rel (%p236) target = $region20
      $region19: #{decoder_forward.10} parent=11 // pred_region
        _
      $region20: #{decoder_forward.10} parent=11 // pred_fallthru
        _
      // Predicated region
      $region21: #{decoder_forward.10} parent=11 // pred_check
        %p239 = pneg %p129
      $region22: #{decoder_forward.10} parent=11 // pred_check_branch
        %241 = sbr.rel (%p239) target = $region24
      $region23: #{decoder_forward.10} parent=11 // pred_region
        _
      $region24: #{decoder_forward.10} parent=11 // pred_fallthru
        _
      // Predicated region
      $region25: #{decoder_forward.10} parent=11 // pred_check
        %p242 = pneg %p150
      $region26: #{decoder_forward.10} parent=11 // pred_check_branch
        %244 = sbr.rel (%p242) target = $region28
      $region27: #{decoder_forward.10} parent=11 // pred_region
        _
      $region28: #{decoder_forward.10} parent=11 // pred_fallthru
        _
      // Predicated region
      $region29: #{decoder_forward.10} parent=11 // pred_check
        %p245 = pneg %p171
      $region30: #{decoder_forward.10} parent=11 // pred_check_branch
        %247 = sbr.rel (%p245) target = $region32
      $region31: #{decoder_forward.10} parent=11 // pred_region
        _
      $region32: #{decoder_forward.10} parent=11 // pred_fallthru
        _
      // Predicated region
      $region33: #{decoder_forward.10} parent=11 // pred_check
        %p248 = pneg %p192
      $region34: #{decoder_forward.10} parent=11 // pred_check_branch
        %250 = sbr.rel (%p248) target = $region36
      $region35: #{decoder_forward.10} parent=11 // pred_region
        _
      $region36: #{decoder_forward.10} parent=11 // pred_fallthru
        _
    $region12: #{decoder_forward.10} parent=5 // pred_fallthru
      _
    %p251 = scmp.lt.s32.totalorder %s14, 2
    // Predicated region
    $region37: #{decoder_forward.10} parent=5 // pred_check
      %p252 = pneg %p251
    $region38: #{decoder_forward.10} parent=5 // pred_check_branch
      %254 = sbr.rel (%p252) target = $region40
    $region39: #{decoder_forward.10} parent=5 // pred_region
      // Predicated region
      $region41: #{decoder_forward.10} parent=39 // pred_check
        %p255 = pneg %p34
      $region42: #{decoder_forward.10} parent=39 // pred_check_branch
        %257 = sbr.rel (%p255) target = $region44
      $region43: #{decoder_forward.10} parent=39 // pred_region
        %p258 = scmp.lt.s32.totalorder %s14, 1
        %s259 = scalar_select %p258, %s14, 1
        %s260 = smul.addr %s259, 8
        %s261 = scalar_lea.vmem %s0, %s260
      $region44: #{decoder_forward.10} parent=39 // pred_fallthru
        _
      // Predicated region
      $region45: #{decoder_forward.10} parent=39 // pred_check
        %p262 = pneg %p60
      $region46: #{decoder_forward.10} parent=39 // pred_check_branch
        %264 = sbr.rel (%p262) target = $region48
      $region47: #{decoder_forward.10} parent=39 // pred_region
        %p265 = scmp.lt.s32.totalorder %s14, 1
        %s266 = scalar_select %p265, %s14, 1
        %s267 = smul.addr %s266, 8
        %s268 = scalar_lea.vmem %s1, %s267
      $region48: #{decoder_forward.10} parent=39 // pred_fallthru
        _
    $region40: #{decoder_forward.10} parent=5 // pred_fallthru
      _
    %p269 = scmp.le.s32.totalorder 1, %s14
    %p270 = scmp.lt.s32.totalorder %s14, 3
    %p271 = pnand %p269, %p270
    %p272 = pneg %p271
    // Predicated region
    $region49: #{decoder_forward.10} parent=5 // pred_check
      _
    $region50: #{decoder_forward.10} parent=5 // pred_check_branch
      %274 = sbr.rel (%p271) target = $region52
    $region51: #{decoder_forward.10} parent=5 // pred_region
      %s275 = ssub.s32 %s14, 1
      %p276 = scmp.lt.s32.totalorder %s19, 1
      %s277 = scalar_select %p276, %s19, 1
      %s278 = smul.addr %s277, 8
      %s279 = scalar_lea.vmem %s0, %s278
      %p280 = pneg %p40
      %p281 = pneg %p37
      %p282 = scmp.lt.s32.totalorder %s19, 1
      %s283 = scalar_select %p282, %s19, 1
      %s284 = smul.addr %s283, 8
      %s285 = scalar_lea.vmem %s1, %s284
      %p286 = pneg %p66
      %p287 = pneg %p63
      %p288 = pneg %p87
      %p289 = pneg %p84
      %p290 = pneg %p108
      %p291 = pneg %p105
      %p292 = pneg %p129
      %p293 = pneg %p126
      %p294 = pneg %p150
      %p295 = pneg %p147
      %p296 = pneg %p171
      %p297 = pneg %p168
      %p298 = pneg %p192
      %p299 = pneg %p189
      %p300 = pneg %p218
      %p301 = pneg %p215
      %p302 = scmp.lt.s32.totalorder %s19, 1
      %s303 = scalar_select %p302, %s19, 1
      %s304 = smul.addr %s303, 8
      %s305 = scalar_lea.vmem %s8, %s304
      %p306 = scmp.lt.s32.totalorder %s19, 1
      %s307 = scalar_select %p306, %s19, 1
      %s308 = smul.addr %s307, 8
      %s309 = scalar_lea.vmem %s0, %s308
      %p310 = scmp.lt.s32.totalorder %s19, 1
      %s311 = scalar_select %p310, %s19, 1
      %s312 = smul.addr %s311, 8
      %s313 = scalar_lea.vmem %s1, %s312
      %p314 = scmp.lt.s32.totalorder %s19, 1
      %s315 = scalar_select %p314, %s19, 1
      %s316 = smul.addr %s315, 8
      %s317 = scalar_lea.vmem %s8, %s316
      %v319 = vld [vmem:[%s309] sm:$0xff]
      %v320 = vld [vmem:[%s2] sm:$0x1]
      %v321 = vld [vmem:[%s3] sm:$0x1]
      %vm322 = vcmask 261120
      %v323 = vsel %vm322, %v319, 0.0
      %324 = vadd.xlane.f32.xlu0 %v323
      %v325 = vpop.xlane.xlu0 %324
      %v326 = vrcp.pop 32.0
      %v327 = vmul.f32 32.0, %v326
      %v328 = vsub.f32 1.0, %v327
      %v329 = vmul.f32 %v326, %v328
      %v330 = vadd.f32 %v326, %v329
      %vm331 = vweird.f32 %v326
      %v332 = vsel %vm331, %v326, %v330
      %v333 = vmul.f32 %v325, %v332
      %v334 = vsub.f32 %v319, %v333
      %v335 = vmul.f32 %v334, %v334
      %v336 = vsel %vm322, %v335, 0.0
      %337 = vadd.xlane.f32.xlu0 %v336
      %v338 = vpop.xlane.xlu0 %337
      %v339 = vrcp.pop 31.0
      %v340 = vmul.f32 31.0, %v339
      %v341 = vsub.f32 1.0, %v340
      %v342 = vmul.f32 %v339, %v341
      %v343 = vadd.f32 %v339, %v342
      %vm344 = vweird.f32 %v339
      %v345 = vsel %vm344, %v339, %v343
      %v346 = vmul.f32 %v338, %v345
      %v348 = vperm.slane %v320, 0
      %v350 = vmul.f32 %v348, %v334
      %v351 = vrsqrt.pop %v346
      %v352 = vmul.f32 %v351, %v346
      %v353 = vmul.f32 %v352, %v351
      %v354 = vmul.f32 0.5, %v353
      %v355 = vsub.f32 1.5, %v354
      %v356 = vmul.f32 %v351, %v355
      %v357 = vmul.f32 %v346, %v356
      %vm358 = vcmp.eq.f32.partialorder %v346, inf
      %v359 = vsel %vm358, %v346, %v357
      %vm360 = vcmp.eq.f32.partialorder %v346, 0.0
      %v361 = vand.u32 %v346, 2147483648
      %v362 = vsel %vm360, %v361, %v359
      %v363 = vadd.f32 %v362, 1e-06
      %v364 = vrcp.pop %v363
      %v365 = vmul.f32 %v363, %v364
      %v366 = vsub.f32 1.0, %v365
      %v367 = vmul.f32 %v364, %v366
      %v368 = vadd.f32 %v364, %v367
      %vm369 = vweird.f32 %v363
      %vm370 = vweird.f32 %v364
      %vm371 = vmor %vm369, %vm370
      %v372 = vsel %vm371, %v364, %v368
      %v373 = vand.u32 2147483647, %v363
      %vm374 = vcmp.eq.f32.partialorder %v373, 8.507059e+37
      %v375 = vand.u32 %v363, 2147483648
      %v376 = vor.u32 1.1754944e-38, %v375
      %v377 = vsel %vm374, %v376, %v372
      %v378 = vmul.f32 %v350, %v377
      %v380 = vperm.slane %v321, 0
      %v382 = vadd.f32 %v378, %v380
      %v383 = vpack.c.bf16 %v382, %v382
      %v384 = vld [vmem:[%s4] sm:$0xf]
      %v385 = vld [vmem:[%s4 + $0x4] sm:$0xf]
      %v386 = vld [vmem:[%s4 + $0x8] sm:$0xf]
      %v387 = vld [vmem:[%s4 + $0xc] sm:$0xf]
      %v388 = vld [vmem:[%s5] sm:$0x1]
      %v390 = vperm.slane %v388, 0
      %v396 = vunpack.c.l.b16 %v384
      %v397 = vunpack.c.l.b16 %v385
      %v398 = vunpack.c.l.b16 %v386
      %v399 = vunpack.c.l.b16 %v387
      %v400 = vpack.c.b16 %v397, %v396
      %v401 = vpack.c.b16 %v399, %v398
      %v405 = vsel %vm322, %v383, 0
      %407 = vmatpush.bf16.msra.mxu0 0
      %408 = vmatpush.bf16.msra.mxu0 0
      %409 = vmatpush.bf16.msra.mxu0 0
      %410 = vmatpush.bf16.msra.mxu0 0
      %411 = vmatpush.bf16.msra.mxu0 0
      %412 = vmatpush.bf16.msra.mxu0 0
      %413 = vmatpush.bf16.msra.mxu0 %v401
      %414 = vmatpush.bf16.msra.mxu0 %v400
      %415 = vmatmul.bf16.gmra.mxu0 %v405
      %v416 = vpop.f32.mrf.mxu0
      %v417 = vadd.f32 %v390, %v416
      %v418 = vpop.f32.mrf.mxu0
      %419 = vdwg.mxu0
      %v420 = vld [vmem:[%s313] sm:$0xff]
      %v421 = vpack.c.bf16 %v417, %v417
      %423 = vrot.lane.b32.xlu0 %v421, 96
      %v424 = vpop.permute.xlu0 %423
      %vm425 = vcmask 64512
      %v427 = vsel %vm425, %v421, 0
      %v430 = vsel %vm425, %v424, 0
      %432 = vmatpush.bf16.xpose.msra.mxu0 0
      %433 = vmatpush.bf16.xpose.msra.mxu0 0
      %434 = vmatpush.bf16.xpose.msra.mxu0 0
      %435 = vmatpush.bf16.xpose.msra.mxu0 0
      %436 = vmatpush.bf16.xpose.msra.mxu0 0
      %437 = vmatpush.bf16.xpose.msra.mxu0 0
      %438 = vmatpush.bf16.xpose.msra.mxu0 0
      %439 = vmatpush.bf16.xpose.msra.mxu0 %v430
      %440 = vmatmul.bf16.gmra.mxu0 %v427
      %v441 = vpop.f32.mrf.mxu0
      %v442 = vadd.f32 0.0, %v441
      %v443 = vpop.f32.mrf.mxu0
      %444 = vdwg.mxu0
      %v445 = vmul.f32 %v442, 0.35355338
      %vm446 = vcmp.eq.f32.partialorder %v420, 0.0
      %v447 = vsel %vm446, -1e+09, %v445
      %v448 = vsel %vm425, %v447, -inf
      %449 = vmax.xlane.f32.xlu0 %v448
      %v450 = vpop.xlane.xlu0 %449
      %v451 = vsub.f32 %v447, %v450
      %v452 = vmul.f32 %v451, 1.442695
      %v453 = vpow.pop %v452
      %v454 = vsel %vm425, %v453, 0.0
      %455 = vadd.xlane.f32.xlu0 %v454
      %v456 = vpop.xlane.xlu0 %455
      %v457 = vpack.c.bf16 %v453, %v453
      %458 = vrot.lane.b32.xlu0 %v421, 64
      %v459 = vpop.permute.xlu0 %458
      %v461 = vsel %vm425, %v457, 0
      %vm463 = vcmask 1043456
      %v465 = vsel %vm463, %v459, 0
      %467 = vmatpush.bf16.msra.mxu0 0
      %468 = vmatpush.bf16.msra.mxu0 0
      %469 = vmatpush.bf16.msra.mxu0 0
      %470 = vmatpush.bf16.msra.mxu0 0
      %471 = vmatpush.bf16.msra.mxu0 0
      %472 = vmatpush.bf16.msra.mxu0 0
      %473 = vmatpush.bf16.msra.mxu0 0
      %474 = vmatpush.bf16.msra.mxu0 %v465
      %475 = vmatmul.bf16.gmra.mxu0 %v461
      %v476 = vpop.f32.mrf.mxu0
      %v477 = vadd.f32 0.0, %v476
      %v478 = vpop.f32.mrf.mxu0
      %479 = vdwg.mxu0
      %v480 = vrcp.pop %v456
      %v481 = vmul.f32 %v477, %v480
      %482 = vrot.lane.b32.xlu0 %v421, 120
      %v483 = vpop.permute.xlu0 %482
      %484 = vrot.lane.b32.xlu0 %v421, 88
      %v485 = vpop.permute.xlu0 %484
      %v487 = vsel %vm425, %v483, 0
      %v490 = vsel %vm425, %v485, 0
      %492 = vmatpush.bf16.xpose.msra.mxu0 0
      %493 = vmatpush.bf16.xpose.msra.mxu0 0
      %494 = vmatpush.bf16.xpose.msra.mxu0 0
      %495 = vmatpush.bf16.xpose.msra.mxu0 0
      %496 = vmatpush.bf16.xpose.msra.mxu0 0
      %497 = vmatpush.bf16.xpose.msra.mxu0 0
      %498 = vmatpush.bf16.xpose.msra.mxu0 0
      %499 = vmatpush.bf16.xpose.msra.mxu0 %v490
      %500 = vmatmul.bf16.gmra.mxu0 %v487
      %v501 = vpop.f32.mrf.mxu0
      %v502 = vadd.f32 0.0, %v501
      %v503 = vpop.f32.mrf.mxu0
      %504 = vdwg.mxu0
      %v505 = vmul.f32 %v502, 0.35355338
      %v506 = vsel %vm446, -1e+09, %v505
      %v507 = vsel %vm425, %v506, -inf
      %508 = vmax.xlane.f32.xlu0 %v507
      %v509 = vpop.xlane.xlu0 %508
      %v510 = vsub.f32 %v506, %v509
      %v511 = vmul.f32 %v510, 1.442695
      %v512 = vpow.pop %v511
      %v513 = vsel %vm425, %v512, 0.0
      %514 = vadd.xlane.f32.xlu0 %v513
      %v515 = vpop.xlane.xlu0 %514
      %v516 = vpack.c.bf16 %v512, %v512
      %517 = vrot.lane.b32.xlu0 %v421, 56
      %v518 = vpop.permute.xlu0 %517
      %v520 = vsel %vm425, %v516, 0
      %v523 = vsel %vm463, %v518, 0
      %525 = vmatpush.bf16.msra.mxu0 0
      %526 = vmatpush.bf16.msra.mxu0 0
      %527 = vmatpush.bf16.msra.mxu0 0
      %528 = vmatpush.bf16.msra.mxu0 0
      %529 = vmatpush.bf16.msra.mxu0 0
      %530 = vmatpush.bf16.msra.mxu0 0
      %531 = vmatpush.bf16.msra.mxu0 0
      %532 = vmatpush.bf16.msra.mxu0 %v523
      %533 = vmatmul.bf16.gmra.mxu0 %v520
      %v534 = vpop.f32.mrf.mxu0
      %v535 = vadd.f32 0.0, %v534
      %v536 = vpop.f32.mrf.mxu0
      %537 = vdwg.mxu0
      %v538 = vrcp.pop %v515
      %v539 = vmul.f32 %v535, %v538
      %540 = vrot.lane.b32.xlu0 %v421, 112
      %v541 = vpop.permute.xlu0 %540
      %542 = vrot.lane.b32.xlu0 %v421, 80
      %v543 = vpop.permute.xlu0 %542
      %v545 = vsel %vm425, %v541, 0
      %v548 = vsel %vm425, %v543, 0
      %550 = vmatpush.bf16.xpose.msra.mxu0 0
      %551 = vmatpush.bf16.xpose.msra.mxu0 0
      %552 = vmatpush.bf16.xpose.msra.mxu0 0
      %553 = vmatpush.bf16.xpose.msra.mxu0 0
      %554 = vmatpush.bf16.xpose.msra.mxu0 0
      %555 = vmatpush.bf16.xpose.msra.mxu0 0
      %556 = vmatpush.bf16.xpose.msra.mxu0 0
      %557 = vmatpush.bf16.xpose.msra.mxu0 %v548
      %558 = vmatmul.bf16.gmra.mxu0 %v545
      %v559 = vpop.f32.mrf.mxu0
      %v560 = vadd.f32 0.0, %v559
      %v561 = vpop.f32.mrf.mxu0
      %562 = vdwg.mxu0
      %v563 = vmul.f32 %v560, 0.35355338
      %v564 = vsel %vm446, -1e+09, %v563
      %v565 = vsel %vm425, %v564, -inf
      %566 = vmax.xlane.f32.xlu0 %v565
      %v567 = vpop.xlane.xlu0 %566
      %v568 = vsub.f32 %v564, %v567
      %v569 = vmul.f32 %v568, 1.442695
      %v570 = vpow.pop %v569
      %v571 = vsel %vm425, %v570, 0.0
      %572 = vadd.xlane.f32.xlu0 %v571
      %v573 = vpop.xlane.xlu0 %572
      %v574 = vpack.c.bf16 %v570, %v570
      %575 = vrot.lane.b32.xlu0 %v421, 48
      %v576 = vpop.permute.xlu0 %575
      %v578 = vsel %vm425, %v574, 0
      %v581 = vsel %vm463, %v576, 0
      %583 = vmatpush.bf16.msra.mxu0 0
      %584 = vmatpush.bf16.msra.mxu0 0
      %585 = vmatpush.bf16.msra.mxu0 0
      %586 = vmatpush.bf16.msra.mxu0 0
      %587 = vmatpush.bf16.msra.mxu0 0
      %588 = vmatpush.bf16.msra.mxu0 0
      %589 = vmatpush.bf16.msra.mxu0 0
      %590 = vmatpush.bf16.msra.mxu0 %v581
      %591 = vmatmul.bf16.gmra.mxu0 %v578
      %v592 = vpop.f32.mrf.mxu0
      %v593 = vadd.f32 0.0, %v592
      %v594 = vpop.f32.mrf.mxu0
      %595 = vdwg.mxu0
      %v596 = vrcp.pop %v573
      %v597 = vmul.f32 %v593, %v596
      %598 = vrot.lane.b32.xlu0 %v421, 104
      %v599 = vpop.permute.xlu0 %598
      %600 = vrot.lane.b32.xlu0 %v421, 72
      %v601 = vpop.permute.xlu0 %600
      %v603 = vsel %vm425, %v599, 0
      %v606 = vsel %vm425, %v601, 0
      %608 = vmatpush.bf16.xpose.msra.mxu0 0
      %609 = vmatpush.bf16.xpose.msra.mxu0 0
      %610 = vmatpush.bf16.xpose.msra.mxu0 0
      %611 = vmatpush.bf16.xpose.msra.mxu0 0
      %612 = vmatpush.bf16.xpose.msra.mxu0 0
      %613 = vmatpush.bf16.xpose.msra.mxu0 0
      %614 = vmatpush.bf16.xpose.msra.mxu0 0
      %615 = vmatpush.bf16.xpose.msra.mxu0 %v606
      %616 = vmatmul.bf16.gmra.mxu0 %v603
      %v617 = vpop.f32.mrf.mxu0
      %v618 = vadd.f32 0.0, %v617
      %v619 = vpop.f32.mrf.mxu0
      %620 = vdwg.mxu0
      %v621 = vmul.f32 %v618, 0.35355338
      %v622 = vsel %vm446, -1e+09, %v621
      %v623 = vsel %vm425, %v622, -inf
      %624 = vmax.xlane.f32.xlu0 %v623
      %v625 = vpop.xlane.xlu0 %624
      %v626 = vsub.f32 %v622, %v625
      %v627 = vmul.f32 %v626, 1.442695
      %v628 = vpow.pop %v627
      %v629 = vsel %vm425, %v628, 0.0
      %630 = vadd.xlane.f32.xlu0 %v629
      %v631 = vpop.xlane.xlu0 %630
      %v632 = vpack.c.bf16 %v628, %v628
      %633 = vrot.lane.b32.xlu0 %v421, 40
      %v634 = vpop.permute.xlu0 %633
      %v636 = vsel %vm425, %v632, 0
      %v639 = vsel %vm463, %v634, 0
      %641 = vmatpush.bf16.msra.mxu0 0
      %642 = vmatpush.bf16.msra.mxu0 0
      %643 = vmatpush.bf16.msra.mxu0 0
      %644 = vmatpush.bf16.msra.mxu0 0
      %645 = vmatpush.bf16.msra.mxu0 0
      %646 = vmatpush.bf16.msra.mxu0 0
      %647 = vmatpush.bf16.msra.mxu0 0
      %648 = vmatpush.bf16.msra.mxu0 %v639
      %649 = vmatmul.bf16.gmra.mxu0 %v636
      %v650 = vpop.f32.mrf.mxu0
      %v651 = vadd.f32 0.0, %v650
      %v652 = vpop.f32.mrf.mxu0
      %653 = vdwg.mxu0
      %v654 = vrcp.pop %v631
      %v655 = vmul.f32 %v651, %v654
      %657 = vrot.lane.b32.xlu0 %v539, 8
      %v658 = vpop.permute.xlu0 %657
      %661 = vrot.lane.b32.xlu0 %v597, 16
      %v662 = vpop.permute.xlu0 %661
      %665 = vrot.lane.b32.xlu0 %v655, 24
      %v666 = vpop.permute.xlu0 %665
      %v668 = vsel %vm425, %v481, %v658
      %vm669 = vcmask 130048
      %v670 = vsel %vm669, %v668, %v662
      %vm671 = vcmask 195584
      %v672 = vsel %vm671, %v670, %v666
      %v673 = vpack.c.bf16 %v672, %v672
      %v674 = vld [vmem:[%s6] sm:$0xf]
      %v675 = vld [vmem:[%s6 + $0x4] sm:$0xf]
      %v676 = vld [vmem:[%s6 + $0x8] sm:$0xf]
      %v677 = vld [vmem:[%s6 + $0xc] sm:$0xf]
      %v678 = vld [vmem:[%s7] sm:$0x1]
      %v680 = vperm.slane %v678, 0
      %v686 = vunpack.c.l.b16 %v674
      %v687 = vunpack.c.l.b16 %v675
      %v688 = vunpack.c.l.b16 %v676
      %v689 = vunpack.c.l.b16 %v677
      %v690 = vpack.c.b16 %v687, %v686
      %v691 = vpack.c.b16 %v689, %v688
      %v695 = vsel %vm322, %v673, 0
      %697 = vmatpush.bf16.msra.mxu0 0
      %698 = vmatpush.bf16.msra.mxu0 0
      %699 = vmatpush.bf16.msra.mxu0 0
      %700 = vmatpush.bf16.msra.mxu0 0
      %701 = vmatpush.bf16.msra.mxu0 0
      %702 = vmatpush.bf16.msra.mxu0 0
      %703 = vmatpush.bf16.msra.mxu0 %v691
      %704 = vmatpush.bf16.msra.mxu0 %v690
      %705 = vmatmul.bf16.gmra.mxu0 %v695
      %v706 = vpop.f32.mrf.mxu0
      %v707 = vadd.f32 %v680, %v706
      %v708 = vpop.f32.mrf.mxu0
      %709 = vdwg.mxu0
      %v710 = vadd.f32 %v707, %v319
      %711 = vst.msk [vmem:[%s317] sm:$0xff] %vm322, %v710
      %p712 = scmp.lt.s32.totalorder %s19, 1
      %s713 = scalar_select %p712, %s19, 1
      %s714 = smul.addr %s713, 8
      %s715 = scalar_lea.vmem %s8, %s714
      // Predicated region
      $region53: #{decoder_forward.10} parent=51 // pred_check
        %p716 = pneg %p215
      $region54: #{decoder_forward.10} parent=51 // pred_check_branch
        %718 = sbr.rel (%p716) target = $region56
      $region55: #{decoder_forward.10} parent=51 // pred_region
        _
      $region56: #{decoder_forward.10} parent=51 // pred_fallthru
        _
    $region52: #{decoder_forward.10} parent=5 // pred_fallthru
      _
    %p719 = scmp.le.s32.totalorder 2, %s14
    // Predicated region
    $region57: #{decoder_forward.10} parent=5 // pred_check
      %p720 = pneg %p719
    $region58: #{decoder_forward.10} parent=5 // pred_check_branch
      %722 = sbr.rel (%p720) target = $region60
    $region59: #{decoder_forward.10} parent=5 // pred_region
      %s723 = ssub.s32 %s14, 2
      // Predicated region
      $region61: #{decoder_forward.10} parent=59 // pred_check
        %p724 = pneg %p221
      $region62: #{decoder_forward.10} parent=59 // pred_check_branch
        %726 = sbr.rel (%p724) target = $region64
      $region63: #{decoder_forward.10} parent=59 // pred_region
        %p727 = scmp.lt.s32.totalorder %s20, 1
        %s728 = scalar_select %p727, %s20, 1
        %s729 = smul.addr %s728, 8
        %s730 = scalar_lea.vmem %s8, %s729
      $region64: #{decoder_forward.10} parent=59 // pred_fallthru
        _
    $region60: #{decoder_forward.10} parent=5 // pred_fallthru
      _
  $region6: #{decoder_forward.10} parent=0 // loop_footer
    %s18 = sadd.s32 1, %s14
  $region7: #{decoder_forward.10} parent=0 // loop_footer_branch
    %13 = sbr.rel target = $region3
  $region8: #{decoder_forward.10} parent=0 // loop_exit
    _

// kernel: decoder_forward.12
$region0: #{decoder_forward.12}
  #allocation0 [shape = 'u32[]', space=smem, size = 0x4, offset = 0x4, fixed_abs, tag = 'smem constant byte address 0x4 - core index']
  #allocation1 [shape = 'u32[72,128]{1,0:T(1,128)}', space=vmem, size = 0x9000, scoped, tag = 'internal scratch']
  %s0 = inlined_call_operand.vmem [shape: f32[16,32], index: 0, kind: input, shape index: {}, may-alias: {0,7}]
  %s1 = inlined_call_operand.vmem [shape: f32[1,32], index: 1, kind: input, shape index: {}]
  %s2 = inlined_call_operand.hbm [shape: f32[1,32], index: 2, kind: input, shape index: {}]
  %s3 = inlined_call_operand.vmem [shape: bf16[32,64], index: 3, kind: input, shape index: {}]
  %s4 = inlined_call_operand.vmem [shape: f32[1,64], index: 4, kind: input, shape index: {}]
  %s5 = inlined_call_operand.vmem [shape: bf16[64,32], index: 5, kind: input, shape index: {}]
  %s6 = inlined_call_operand.vmem [shape: f32[1,32], index: 6, kind: input, shape index: {}]
  %s7 = inlined_call_operand.vmem [shape: f32[16,32], index: 7, kind: output, shape index: {}, may-alias: {0,7}]
  %s8 = sld [smem:[#allocation0]]
  $region42: #{decoder_forward.12} parent=0
    _
  %s10 = ssub.s32 1, %s8
  %s11 = scalar_select 0, %s10, %s8
  $region1: #{decoder_forward.12} parent=0
    #allocation2 [shape = 'u8[512]{0}', space=vmem, size = 0x400, scoped, tag = 'input window, operand 2, single buffered']
    #allocation3 [shape = 's32[1]{0}', space=sflag, size = 0x4, scoped, tag = 'scoped memory for decoder_forward.12']
    %12 = vsyncpa [#allocation3], 0
    // Predicated region
    $region2: #{decoder_forward.12} parent=1 // pred_check
      _
    $region3: #{decoder_forward.12} parent=1 // pred_check_branch
      %14 = sbr.rel (0) target = $region5
    $region4: #{decoder_forward.12} parent=1 // pred_region
      _
    $region5: #{decoder_forward.12} parent=1 // pred_fallthru
      _
    // Predicated region
    $region6: #{decoder_forward.12} parent=1 // pred_check
      _
    $region7: #{decoder_forward.12} parent=1 // pred_check_branch
      %16 = sbr.rel (0) target = $region9
    $region8: #{decoder_forward.12} parent=1 // pred_region
      _
    $region9: #{decoder_forward.12} parent=1 // pred_fallthru
      _
    // Predicated region
    $region10: #{decoder_forward.12} parent=1 // pred_check
      _
    $region11: #{decoder_forward.12} parent=1 // pred_check_branch
      %18 = sbr.rel (0) target = $region13
    $region12: #{decoder_forward.12} parent=1 // pred_region
      %20 = vsyncadd [#allocation3], 0
      %s22 = sshll.u32 %s2, 4
      %s23 = int_to_ptr.hbm [resolvable:$true] %s22
      %s24 = sshll.u32 [#allocation2], 4
      %s25 = int_to_ptr.vmem [resolvable:$true] %s24
      %27 = dma.hbm_to_vmem [thread:$0]  %s23, 16, %s25, [#allocation3]
    $region13: #{decoder_forward.12} parent=1 // pred_fallthru
      _
    // Predicated region
    $region14: #{decoder_forward.12} parent=1 // pred_check
      _
    $region15: #{decoder_forward.12} parent=1 // pred_check_branch
      %29 = sbr.rel (0) target = $region17
    $region16: #{decoder_forward.12} parent=1 // pred_region
      _
    $region17: #{decoder_forward.12} parent=1 // pred_fallthru
      _
    // Predicated region
    $region18: #{decoder_forward.12} parent=1 // pred_check
      _
    $region19: #{decoder_forward.12} parent=1 // pred_check_branch
      %31 = sbr.rel (0) target = $region21
    $region20: #{decoder_forward.12} parent=1 // pred_region
      _
    $region21: #{decoder_forward.12} parent=1 // pred_fallthru
      _
    // Predicated region
    $region22: #{decoder_forward.12} parent=1 // pred_check
      _
    $region23: #{decoder_forward.12} parent=1 // pred_check_branch
      %33 = sbr.rel (0) target = $region25
    $region24: #{decoder_forward.12} parent=1 // pred_region
      _
    $region25: #{decoder_forward.12} parent=1 // pred_fallthru
      _
    // Predicated region
    $region26: #{decoder_forward.12} parent=1 // pred_check
      _
    $region27: #{decoder_forward.12} parent=1 // pred_check_branch
      %35 = sbr.rel (0) target = $region29
    $region28: #{decoder_forward.12} parent=1 // pred_region
      _
    $region29: #{decoder_forward.12} parent=1 // pred_fallthru
      _
    // Predicated region
    $region30: #{decoder_forward.12} parent=1 // pred_check
      _
    $region31: #{decoder_forward.12} parent=1 // pred_check_branch
      %37 = sbr.rel (0) target = $region33
    $region32: #{decoder_forward.12} parent=1 // pred_region
      %39 = dma.done [#allocation3], 16
    $region33: #{decoder_forward.12} parent=1 // pred_fallthru
      _
    %v41 = vld [vmem:[%s0] sm:$0xff]
    %v42 = vld [vmem:[%s0 + $0x8] sm:$0xff]
    %v43 = vld [vmem:[%s1] sm:$0x1]
    %v44 = vld [vmem:[#allocation2] sm:$0x1]
    %vm45 = vcmask 261120
    %v46 = vsel %vm45, %v41, 0.0
    %47 = vadd.xlane.f32.xlu0 %v46
    %v48 = vpop.xlane.xlu0 %47
    %v49 = vsel %vm45, %v42, 0.0
    %50 = vadd.xlane.f32.xlu0 %v49
    %v51 = vpop.xlane.xlu0 %50
    %v52 = vrcp.pop 32.0
    %v53 = vmul.f32 32.0, %v52
    %v54 = vsub.f32 1.0, %v53
    %v55 = vmul.f32 %v52, %v54
    %v56 = vadd.f32 %v52, %v55
    %vm57 = vweird.f32 %v52
    %v58 = vsel %vm57, %v52, %v56
    %v59 = vmul.f32 %v48, %v58
    %v60 = vmul.f32 %v51, %v58
    %v61 = vsub.f32 %v41, %v59
    %v62 = vsub.f32 %v42, %v60
    %v63 = vmul.f32 %v61, %v61
    %v64 = vmul.f32 %v62, %v62
    %v65 = vsel %vm45, %v63, 0.0
    %66 = vadd.xlane.f32.xlu0 %v65
    %v67 = vpop.xlane.xlu0 %66
    %v68 = vsel %vm45, %v64, 0.0
    %69 = vadd.xlane.f32.xlu0 %v68
    %v70 = vpop.xlane.xlu0 %69
    %v71 = vrcp.pop 31.0
    %v72 = vmul.f32 31.0, %v71
    %v73 = vsub.f32 1.0, %v72
    %v74 = vmul.f32 %v71, %v73
    %v75 = vadd.f32 %v71, %v74
    %vm76 = vweird.f32 %v71
    %v77 = vsel %vm76, %v71, %v75
    %v78 = vmul.f32 %v67, %v77
    %v79 = vmul.f32 %v70, %v77
    %v81 = vperm.slane %v43, 0
    %v83 = vmul.f32 %v81, %v61
    %v84 = vmul.f32 %v81, %v62
    %v85 = vrsqrt.pop %v78
    %v86 = vmul.f32 %v85, %v78
    %v87 = vmul.f32 %v86, %v85
    %v88 = vmul.f32 0.5, %v87
    %v89 = vsub.f32 1.5, %v88
    %v90 = vmul.f32 %v85, %v89
    %v91 = vmul.f32 %v78, %v90
    %vm92 = vcmp.eq.f32.partialorder %v78, inf
    %v93 = vsel %vm92, %v78, %v91
    %vm94 = vcmp.eq.f32.partialorder %v78, 0.0
    %v95 = vand.u32 %v78, 2147483648
    %v96 = vsel %vm94, %v95, %v93
    %v97 = vrsqrt.pop %v79
    %v98 = vmul.f32 %v97, %v79
    %v99 = vmul.f32 %v98, %v97
    %v100 = vmul.f32 0.5, %v99
    %v101 = vsub.f32 1.5, %v100
    %v102 = vmul.f32 %v97, %v101
    %v103 = vmul.f32 %v79, %v102
    %vm104 = vcmp.eq.f32.partialorder %v79, inf
    %v105 = vsel %vm104, %v79, %v103
    %vm106 = vcmp.eq.f32.partialorder %v79, 0.0
    %v107 = vand.u32 %v79, 2147483648
    %v108 = vsel %vm106, %v107, %v105
    %v109 = vadd.f32 %v96, 1e-06
    %v110 = vadd.f32 %v108, 1e-06
    %v111 = vrcp.pop %v109
    %v112 = vmul.f32 %v109, %v111
    %v113 = vsub.f32 1.0, %v112
    %v114 = vmul.f32 %v111, %v113
    %v115 = vadd.f32 %v111, %v114
    %vm116 = vweird.f32 %v109
    %vm117 = vweird.f32 %v111
    %vm118 = vmor %vm116, %vm117
    %v119 = vsel %vm118, %v111, %v115
    %v120 = vand.u32 2147483647, %v109
    %vm121 = vcmp.eq.f32.partialorder %v120, 8.507059e+37
    %v122 = vand.u32 %v109, 2147483648
    %v123 = vor.u32 1.1754944e-38, %v122
    %v124 = vsel %vm121, %v123, %v119
    %v125 = vmul.f32 %v83, %v124
    %v126 = vrcp.pop %v110
    %v127 = vmul.f32 %v110, %v126
    %v128 = vsub.f32 1.0, %v127
    %v129 = vmul.f32 %v126, %v128
    %v130 = vadd.f32 %v126, %v129
    %vm131 = vweird.f32 %v110
    %vm132 = vweird.f32 %v126
    %vm133 = vmor %vm131, %vm132
    %v134 = vsel %vm133, %v126, %v130
    %v135 = vand.u32 2147483647, %v110
    %vm136 = vcmp.eq.f32.partialorder %v135, 8.507059e+37
    %v137 = vand.u32 %v110, 2147483648
    %v138 = vor.u32 1.1754944e-38, %v137
    %v139 = vsel %vm136, %v138, %v134
    %v140 = vmul.f32 %v84, %v139
    %v142 = vperm.slane %v44, 0
    %v144 = vadd.f32 %v125, %v142
    %v145 = vadd.f32 %v140, %v142
    %v146 = vpack.c.bf16 %v145, %v144
    %v147 = vld [vmem:[%s3] sm:$0xf]
    %v148 = vld [vmem:[%s3 + $0x4] sm:$0xf]
    %v149 = vld [vmem:[%s3 + $0x8] sm:$0xf]
    %v150 = vld [vmem:[%s3 + $0xc] sm:$0xf]
    %v151 = vld [vmem:[%s4] sm:$0x1]
    %v153 = vperm.slane %v151, 0
    %v159 = vunpack.c.l.b16 %v147
    %v160 = vunpack.c.l.b16 %v148
    %v161 = vunpack.c.l.b16 %v149
    %v162 = vunpack.c.l.b16 %v150
    %v163 = vpack.c.b16 %v160, %v159
    %v164 = vpack.c.b16 %v162, %v161
    %v168 = vsel %vm45, %v146, 0
    %170 = vmatpush.bf16.msra.mxu0 0
    %171 = vmatpush.bf16.msra.mxu0 0
    %172 = vmatpush.bf16.msra.mxu0 0
    %173 = vmatpush.bf16.msra.mxu0 0
    %174 = vmatpush.bf16.msra.mxu0 0
    %175 = vmatpush.bf16.msra.mxu0 0
    %176 = vmatpush.bf16.msra.mxu0 %v164
    %177 = vmatpush.bf16.msra.mxu0 %v163
    %178 = vmatmul.bf16.gmra.mxu0 %v168
    %v179 = vpop.f32.mrf.mxu0
    %v180 = vadd.f32 %v153, %v179
    %v181 = vpop.f32.mrf.mxu0
    %v182 = vadd.f32 %v153, %v181
    %183 = vdwg.mxu0
    %v184 = vmax.f32 %v180, 0.0
    %v185 = vmax.f32 %v182, 0.0
    %v186 = vpack.c.bf16 %v185, %v184
    %v187 = vld [vmem:[%s5] sm:$0xf]
    %v188 = vld [vmem:[%s5 + $0x4] sm:$0xf]
    %v189 = vld [vmem:[%s5 + $0x8] sm:$0xf]
    %v190 = vld [vmem:[%s5 + $0xc] sm:$0xf]
    %v191 = vld [vmem:[%s5 + $0x10] sm:$0xf]
    %v192 = vld [vmem:[%s5 + $0x14] sm:$0xf]
    %v193 = vld [vmem:[%s5 + $0x18] sm:$0xf]
    %v194 = vld [vmem:[%s5 + $0x1c] sm:$0xf]
    %v195 = vld [vmem:[%s6] sm:$0x1]
    %v197 = vperm.slane %v195, 0
    %v207 = vunpack.c.l.b16 %v187
    %v208 = vunpack.c.l.b16 %v188
    %v209 = vunpack.c.l.b16 %v189
    %v210 = vunpack.c.l.b16 %v190
    %v211 = vunpack.c.l.b16 %v191
    %v212 = vunpack.c.l.b16 %v192
    %v213 = vunpack.c.l.b16 %v193
    %v214 = vunpack.c.l.b16 %v194
    %v215 = vpack.c.b16 %v208, %v207
    %v216 = vpack.c.b16 %v210, %v209
    %v217 = vpack.c.b16 %v212, %v211
    %v218 = vpack.c.b16 %v214, %v213
    %vm223 = vcmask 523264
    %v225 = vsel %vm223, %v186, 0
    %227 = vmatpush.bf16.msra.mxu0 0
    %228 = vmatpush.bf16.msra.mxu0 0
    %229 = vmatpush.bf16.msra.mxu0 0
    %230 = vmatpush.bf16.msra.mxu0 0
    %231 = vmatpush.bf16.msra.mxu0 %v218
    %232 = vmatpush.bf16.msra.mxu0 %v217
    %233 = vmatpush.bf16.msra.mxu0 %v216
    %234 = vmatpush.bf16.msra.mxu0 %v215
    %235 = vmatmul.bf16.gmra.mxu0 %v225
    %v236 = vpop.f32.mrf.mxu0
    %v237 = vadd.f32 %v197, %v236
    %v238 = vpop.f32.mrf.mxu0
    %v239 = vadd.f32 %v197, %v238
    %240 = vdwg.mxu0
    %v241 = vadd.f32 %v237, %v41
    %v242 = vadd.f32 %v239, %v42
    %243 = vst.msk [vmem:[%s7] sm:$0xff] %vm45, %v241
    %244 = vst.msk [vmem:[%s7 + $0x8] sm:$0xff] %vm45, %v242
    // Predicated region
    $region34: #{decoder_forward.12} parent=1 // pred_check
      _
    $region35: #{decoder_forward.12} parent=1 // pred_check_branch
      %246 = sbr.rel (0) target = $region37
    $region36: #{decoder_forward.12} parent=1 // pred_region
      _
    $region37: #{decoder_forward.12} parent=1 // pred_fallthru
      _
    // Predicated region
    $region38: #{decoder_forward.12} parent=1 // pred_check
      _
    $region39: #{decoder_forward.12} parent=1 // pred_check_branch
      %248 = sbr.rel (0) target = $region41
    $region40: #{decoder_forward.12} parent=1 // pred_region
      _
    $region41: #{decoder_forward.12} parent=1 // pred_fallthru
      _
    %249 = vsyncpa [#allocation3], 1

// kernel: decoder_forward.11
$region0: #{decoder_forward.11}
  #allocation0 [shape = 'u32[]', space=smem, size = 0x4, offset = 0x4, fixed_abs, tag = 'smem constant byte address 0x4 - core index']
  #allocation1 [shape = 'u32[72,128]{1,0:T(1,128)}', space=vmem, size = 0x9000, scoped, tag = 'internal scratch']
  %s0 = inlined_call_operand.vmem [shape: f32[2,8,32], index: 0, kind: input, shape index: {}, may-alias: {0,11}]
  %s1 = inlined_call_operand.hbm [shape: f32[2,8,32], index: 1, kind: input, shape index: {}]
  %s2 = inlined_call_operand.hbm [shape: f32[2,8,8], index: 2, kind: input, shape index: {}]
  %s3 = inlined_call_operand.vmem [shape: f32[1,32], index: 3, kind: input, shape index: {}]
  %s4 = inlined_call_operand.vmem [shape: f32[1,32], index: 4, kind: input, shape index: {}]
  %s5 = inlined_call_operand.hbm [shape: bf16[32,32], index: 5, kind: input, shape index: {}]
  %s6 = inlined_call_operand.vmem [shape: f32[1,32], index: 6, kind: input, shape index: {}]
  %s7 = inlined_call_operand.hbm [shape: bf16[32,64], index: 7, kind: input, shape index: {}]
  %s8 = inlined_call_operand.hbm [shape: f32[1,64], index: 8, kind: input, shape index: {}]
  %s9 = inlined_call_operand.hbm [shape: bf16[32,32], index: 9, kind: input, shape index: {}]
  %s10 = inlined_call_operand.hbm [shape: f32[1,32], index: 10, kind: input, shape index: {}]
  %s11 = inlined_call_operand.vmem [shape: f32[2,8,32], index: 11, kind: output, shape index: {}, may-alias: {0,11}]
  %s12 = sld [smem:[#allocation0]]
  $region105: #{decoder_forward.11} parent=0
    _
  %s14 = ssub.s32 1, %s12
  %s15 = scalar_select 0, %s14, %s12
  $region1: #{decoder_forward.11} parent=0
    #allocation2 [shape = 'u8[8192]{0}', space=vmem, size = 0x2000, scoped, tag = 'input window, operand 1']
    #allocation3 [shape = 's32[2]{0}', space=sflag, size = 0x8, scoped, tag = 'scoped memory for decoder_forward.11']
    #allocation4 [shape = 'u8[8192]{0}', space=vmem, size = 0x2000, scoped, tag = 'input window, operand 2']
    #allocation5 [shape = 's32[2]{0}', space=sflag, size = 0x8, scoped, tag = 'scoped memory for decoder_forward.11']
    #allocation6 [shape = 'u8[8192]{0}', space=vmem, size = 0x2000, scoped, tag = 'input window, operand 5, single buffered']
    #allocation7 [shape = 'u8[8192]{0}', space=vmem, size = 0x2000, scoped, tag = 'input window, operand 7, single buffered']
    #allocation8 [shape = 's32[1]{0}', space=sflag, size = 0x4, scoped, tag = 'scoped memory for decoder_forward.11']
    #allocation9 [shape = 'u8[512]{0}', space=vmem, size = 0x400, scoped, tag = 'input window, operand 8, single buffered']
    #allocation10 [shape = 'u8[8192]{0}', space=vmem, size = 0x2000, scoped, tag = 'input window, operand 9, single buffered']
    #allocation11 [shape = 's32[1]{0}', space=sflag, size = 0x4, scoped, tag = 'scoped memory for decoder_forward.11']
    #allocation12 [shape = 'u8[512]{0}', space=vmem, size = 0x400, scoped, tag = 'input window, operand 10, single buffered']
    %16 = vsyncpa [#allocation3], 0
    %s17 = scalar_lea.sflag [#allocation3], 1
    %18 = vsyncpa %s17, 0
    %19 = vsyncpa [#allocation5], 0
    %s20 = scalar_lea.sflag [#allocation5], 1
    %21 = vsyncpa %s20, 0
    %22 = vsyncpa [#allocation8], 0
    %23 = vsyncpa [#allocation11], 0
    loop: start=0, step=1, limit=4
    $region2: #{decoder_forward.11} parent=1 // loop_pre_header
      _
    $region3: #{decoder_forward.11} parent=1 // loop_header
      %s25 = sphi 0, %s29
      %p26 = scmp.ge.s32.totalorder %s25, 4
      %s35 = sphi 0, %s37
      %s38 = sphi 0, %s35
      %s39 = sphi 0, %s38
      %s55 = sphi 0, %s39
      %s61 = sphi 0, %s63
      %s64 = sphi 0, %s61
      %s65 = sphi 0, %s64
      %s81 = sphi 0, %s65
      %s87 = sphi 0, %s89
      %s90 = sphi 0, %s87
      %s91 = sphi 0, %s90
      %s107 = sphi 0, %s91
      %s111 = sphi 0, %s111
      %s113 = sphi 0, %s111
      %s114 = sphi 0, %s113
      %s128 = sphi 0, %s114
      %s132 = sphi 0, %s132
      %s134 = sphi 0, %s132
      %s135 = sphi 0, %s134
      %s149 = sphi 0, %s135
      %s153 = sphi 0, %s153
      %s155 = sphi 0, %s153
      %s156 = sphi 0, %s155
      %s170 = sphi 0, %s156
      %s174 = sphi 0, %s174
      %s176 = sphi 0, %s174
      %s177 = sphi 0, %s176
      %s191 = sphi 0, %s177
      %s195 = sphi 0, %s195
      %s197 = sphi 0, %s195
      %s198 = sphi 0, %s197
      %s212 = sphi 0, %s198
      %s216 = sphi 0, %s216
      %s218 = sphi 0, %s216
      %s219 = sphi 0, %s218
      %s233 = sphi 0, %s219
      %s237 = sphi 0, %s237
      %s239 = sphi 0, %s237
      %s240 = sphi 0, %s239
      %s254 = sphi 0, %s240
      %s258 = sphi 0, %s258
      %s260 = sphi 0, %s258
      %s261 = sphi 0, %s260
      %s275 = sphi 0, %s261
      %s281 = sphi 0, %s283
      %s284 = sphi 0, %s281
      %s285 = sphi 0, %s284
      %s301 = sphi 0, %s285
    $region4: #{decoder_forward.11} parent=1 // loop_header_branch
      %28 = sbr.rel (%p26) target = $region8
    $region5: #{decoder_forward.11} parent=1 // loop_body
      %s30 = ssub.s32 %s25, 1
      %s31 = ssub.s32 %s25, 2
      %s32 = sadd.s32 %s25, 1
      %s33 = ssub.s32 %s25, %s32
      %p34 = scmp.eq.s32.totalorder %s33, 0
      %s36 = sadd.s32 %s35, 1
      %s37 = scalar_select %p34, %s35, %s36
      %p40 = pneg %p34
      %p41 = scmp.eq.s32.totalorder %s25, 1
      %p42 = por %p40, %p41
      %p43 = scmp.ne.s32.totalorder %s35, %s38
      %p44 = scmp.eq.s32.totalorder %s25, 0
      %p45 = por %p43, %p44
      %p46 = scmp.ne.s32.totalorder %s35, %s38
      %p47 = scmp.eq.s32.totalorder %s30, 1
      %p48 = por %p46, %p47
      %p49 = scmp.ne.s32.totalorder %s38, %s39
      %p50 = scmp.eq.s32.totalorder %s30, 0
      %p51 = por %p49, %p50
      %p52 = scmp.ne.s32.totalorder %s38, %s39
      %p53 = scmp.eq.s32.totalorder %s31, 1
      %p54 = por %p52, %p53
      %p56 = scmp.ne.s32.totalorder %s39, %s55
      %p57 = scmp.eq.s32.totalorder %s31, 0
      %p58 = por %p56, %p57
      %s59 = ssub.s32 %s25, %s32
      %p60 = scmp.eq.s32.totalorder %s59, 0
      %s62 = sadd.s32 %s61, 1
      %s63 = scalar_select %p60, %s61, %s62
      %p66 = pneg %p60
      %p67 = scmp.eq.s32.totalorder %s25, 1
      %p68 = por %p66, %p67
      %p69 = scmp.ne.s32.totalorder %s61, %s64
      %p70 = scmp.eq.s32.totalorder %s25, 0
      %p71 = por %p69, %p70
      %p72 = scmp.ne.s32.totalorder %s61, %s64
      %p73 = scmp.eq.s32.totalorder %s30, 1
      %p74 = por %p72, %p73
      %p75 = scmp.ne.s32.totalorder %s64, %s65
      %p76 = scmp.eq.s32.totalorder %s30, 0
      %p77 = por %p75, %p76
      %p78 = scmp.ne.s32.totalorder %s64, %s65
      %p79 = scmp.eq.s32.totalorder %s31, 1
      %p80 = por %p78, %p79
      %p82 = scmp.ne.s32.totalorder %s65, %s81
      %p83 = scmp.eq.s32.totalorder %s31, 0
      %p84 = por %p82, %p83
      %s85 = ssub.s32 %s25, %s32
      %p86 = scmp.eq.s32.totalorder %s85, 0
      %s88 = sadd.s32 %s87, 1
      %s89 = scalar_select %p86, %s87, %s88
      %p92 = pneg %p86
      %p93 = scmp.eq.s32.totalorder %s25, 1
      %p94 = por %p92, %p93
      %p95 = scmp.ne.s32.totalorder %s87, %s90
      %p96 = scmp.eq.s32.totalorder %s25, 0
      %p97 = por %p95, %p96
      %p98 = scmp.ne.s32.totalorder %s87, %s90
      %p99 = scmp.eq.s32.totalorder %s30, 1
      %p100 = por %p98, %p99
      %p101 = scmp.ne.s32.totalorder %s90, %s91
      %p102 = scmp.eq.s32.totalorder %s30, 0
      %p103 = por %p101, %p102
      %p104 = scmp.ne.s32.totalorder %s90, %s91
      %p105 = scmp.eq.s32.totalorder %s31, 1
      %p106 = por %p104, %p105
      %p108 = scmp.ne.s32.totalorder %s91, %s107
      %p109 = scmp.eq.s32.totalorder %s31, 0
      %p110 = por %p108, %p109
      %s112 = sadd.s32 %s111, 1
      %p115 = scmp.eq.s32.totalorder %s25, 1
      %p116 = scmp.ne.s32.totalorder %s111, %s113
      %p117 = scmp.eq.s32.totalorder %s25, 0
      %p118 = por %p116, %p117
      %p119 = scmp.ne.s32.totalorder %s111, %s113
      %p120 = scmp.eq.s32.totalorder %s30, 1
      %p121 = por %p119, %p120
      %p122 = scmp.ne.s32.totalorder %s113, %s114
      %p123 = scmp.eq.s32.totalorder %s30, 0
      %p124 = por %p122, %p123
      %p125 = scmp.ne.s32.totalorder %s113, %s114
      %p126 = scmp.eq.s32.totalorder %s31, 1
      %p127 = por %p125, %p126
      %p129 = scmp.ne.s32.totalorder %s114, %s128
      %p130 = scmp.eq.s32.totalorder %s31, 0
      %p131 = por %p129, %p130
      %s133 = sadd.s32 %s132, 1
      %p136 = scmp.eq.s32.totalorder %s25, 1
      %p137 = scmp.ne.s32.totalorder %s132, %s134
      %p138 = scmp.eq.s32.totalorder %s25, 0
      %p139 = por %p137, %p138
      %p140 = scmp.ne.s32.totalorder %s132, %s134
      %p141 = scmp.eq.s32.totalorder %s30, 1
      %p142 = por %p140, %p141
      %p143 = scmp.ne.s32.totalorder %s134, %s135
      %p144 = scmp.eq.s32.totalorder %s30, 0
      %p145 = por %p143, %p144
      %p146 = scmp.ne.s32.totalorder %s134, %s135
      %p147 = scmp.eq.s32.totalorder %s31, 1
      %p148 = por %p146, %p147
      %p150 = scmp.ne.s32.totalorder %s135, %s149
      %p151 = scmp.eq.s32.totalorder %s31, 0
      %p152 = por %p150, %p151
      %s154 = sadd.s32 %s153, 1
      %p157 = scmp.eq.s32.totalorder %s25, 1
      %p158 = scmp.ne.s32.totalorder %s153, %s155
      %p159 = scmp.eq.s32.totalorder %s25, 0
      %p160 = por %p158, %p159
      %p161 = scmp.ne.s32.totalorder %s153, %s155
      %p162 = scmp.eq.s32.totalorder %s30, 1
      %p163 = por %p161, %p162
      %p164 = scmp.ne.s32.totalorder %s155, %s156
      %p165 = scmp.eq.s32.totalorder %s30, 0
      %p166 = por %p164, %p165
      %p167 = scmp.ne.s32.totalorder %s155, %s156
      %p168 = scmp.eq.s32.totalorder %s31, 1
      %p169 = por %p167, %p168
      %p171 = scmp.ne.s32.totalorder %s156, %s170
      %p172 = scmp.eq.s32.totalorder %s31, 0
      %p173 = por %p171, %p172
      %s175 = sadd.s32 %s174, 1
      %p178 = scmp.eq.s32.totalorder %s25, 1
      %p179 = scmp.ne.s32.totalorder %s174, %s176
      %p180 = scmp.eq.s32.totalorder %s25, 0
      %p181 = por %p179, %p180
      %p182 = scmp.ne.s32.totalorder %s174, %s176
      %p183 = scmp.eq.s32.totalorder %s30, 1
      %p184 = por %p182, %p183
      %p185 = scmp.ne.s32.totalorder %s176, %s177
      %p186 = scmp.eq.s32.totalorder %s30, 0
      %p187 = por %p185, %p186
      %p188 = scmp.ne.s32.totalorder %s176, %s177
      %p189 = scmp.eq.s32.totalorder %s31, 1
      %p190 = por %p188, %p189
      %p192 = scmp.ne.s32.totalorder %s177, %s191
      %p193 = scmp.eq.s32.totalorder %s31, 0
      %p194 = por %p192, %p193
      %s196 = sadd.s32 %s195, 1
      %p199 = scmp.eq.s32.totalorder %s25, 1
      %p200 = scmp.ne.s32.totalorder %s195, %s197
      %p201 = scmp.eq.s32.totalorder %s25, 0
      %p202 = por %p200, %p201
      %p203 = scmp.ne.s32.totalorder %s195, %s197
      %p204 = scmp.eq.s32.totalorder %s30, 1
      %p205 = por %p203, %p204
      %p206 = scmp.ne.s32.totalorder %s197, %s198
      %p207 = scmp.eq.s32.totalorder %s30, 0
      %p208 = por %p206, %p207
      %p209 = scmp.ne.s32.totalorder %s197, %s198
      %p210 = scmp.eq.s32.totalorder %s31, 1
      %p211 = por %p209, %p210
      %p213 = scmp.ne.s32.totalorder %s198, %s212
      %p214 = scmp.eq.s32.totalorder %s31, 0
      %p215 = por %p213, %p214
      %s217 = sadd.s32 %s216, 1
      %p220 = scmp.eq.s32.totalorder %s25, 1
      %p221 = scmp.ne.s32.totalorder %s216, %s218
      %p222 = scmp.eq.s32.totalorder %s25, 0
      %p223 = por %p221, %p222
      %p224 = scmp.ne.s32.totalorder %s216, %s218
      %p225 = scmp.eq.s32.totalorder %s30, 1
      %p226 = por %p224, %p225
      %p227 = scmp.ne.s32.totalorder %s218, %s219
      %p228 = scmp.eq.s32.totalorder %s30, 0
      %p229 = por %p227, %p228
      %p230 = scmp.ne.s32.totalorder %s218, %s219
      %p231 = scmp.eq.s32.totalorder %s31, 1
      %p232 = por %p230, %p231
      %p234 = scmp.ne.s32.totalorder %s219, %s233
      %p235 = scmp.eq.s32.totalorder %s31, 0
      %p236 = por %p234, %p235
      %s238 = sadd.s32 %s237, 1
      %p241 = scmp.eq.s32.totalorder %s25, 1
      %p242 = scmp.ne.s32.totalorder %s237, %s239
      %p243 = scmp.eq.s32.totalorder %s25, 0
      %p244 = por %p242, %p243
      %p245 = scmp.ne.s32.totalorder %s237, %s239
      %p246 = scmp.eq.s32.totalorder %s30, 1
      %p247 = por %p245, %p246
      %p248 = scmp.ne.s32.totalorder %s239, %s240
      %p249 = scmp.eq.s32.totalorder %s30, 0
      %p250 = por %p248, %p249
      %p251 = scmp.ne.s32.totalorder %s239, %s240
      %p252 = scmp.eq.s32.totalorder %s31, 1
      %p253 = por %p251, %p252
      %p255 = scmp.ne.s32.totalorder %s240, %s254
      %p256 = scmp.eq.s32.totalorder %s31, 0
      %p257 = por %p255, %p256
      %s259 = sadd.s32 %s258, 1
      %p262 = scmp.eq.s32.totalorder %s25, 1
      %p263 = scmp.ne.s32.totalorder %s258, %s260
      %p264 = scmp.eq.s32.totalorder %s25, 0
      %p265 = por %p263, %p264
      %p266 = scmp.ne.s32.totalorder %s258, %s260
      %p267 = scmp.eq.s32.totalorder %s30, 1
      %p268 = por %p266, %p267
      %p269 = scmp.ne.s32.totalorder %s260, %s261
      %p270 = scmp.eq.s32.totalorder %s30, 0
      %p271 = por %p269, %p270
      %p272 = scmp.ne.s32.totalorder %s260, %s261
      %p273 = scmp.eq.s32.totalorder %s31, 1
      %p274 = por %p272, %p273
      %p276 = scmp.ne.s32.totalorder %s261, %s275
      %p277 = scmp.eq.s32.totalorder %s31, 0
      %p278 = por %p276, %p277
      %s279 = ssub.s32 %s25, %s32
      %p280 = scmp.eq.s32.totalorder %s279, 0
      %s282 = sadd.s32 %s281, 1
      %s283 = scalar_select %p280, %s281, %s282
      %p286 = pneg %p280
      %p287 = scmp.eq.s32.totalorder %s25, 1
      %p288 = por %p286, %p287
      %p289 = scmp.ne.s32.totalorder %s281, %s284
      %p290 = scmp.eq.s32.totalorder %s25, 0
      %p291 = por %p289, %p290
      %p292 = scmp.ne.s32.totalorder %s281, %s284
      %p293 = scmp.eq.s32.totalorder %s30, 1
      %p294 = por %p292, %p293
      %p295 = scmp.ne.s32.totalorder %s284, %s285
      %p296 = scmp.eq.s32.totalorder %s30, 0
      %p297 = por %p295, %p296
      %p298 = scmp.ne.s32.totalorder %s284, %s285
      %p299 = scmp.eq.s32.totalorder %s31, 1
      %p300 = por %p298, %p299
      %p302 = scmp.ne.s32.totalorder %s285, %s301
      %p303 = scmp.eq.s32.totalorder %s31, 0
      %p304 = por %p302, %p303
      %p305 = scmp.le.s32.totalorder 1, %s25
      %p306 = scmp.lt.s32.totalorder %s25, 3
      %p307 = pnand %p305, %p306
      %p308 = pneg %p307
      // Predicated region
      $region9: #{decoder_forward.11} parent=5 // pred_check
        _
      $region10: #{decoder_forward.11} parent=5 // pred_check_branch
        %310 = sbr.rel (%p307) target = $region12
      $region11: #{decoder_forward.11} parent=5 // pred_region
        %s311 = ssub.s32 %s25, 1
        // Predicated region
        $region13: #{decoder_forward.11} parent=11 // pred_check
          %p312 = pneg %p124
        $region14: #{decoder_forward.11} parent=11 // pred_check_branch
          %314 = sbr.rel (%p312) target = $region16
        $region15: #{decoder_forward.11} parent=11 // pred_region
          _
        $region16: #{decoder_forward.11} parent=11 // pred_fallthru
          _
        // Predicated region
        $region17: #{decoder_forward.11} parent=11 // pred_check
          %p315 = pneg %p145
        $region18: #{decoder_forward.11} parent=11 // pred_check_branch
          %317 = sbr.rel (%p315) target = $region20
        $region19: #{decoder_forward.11} parent=11 // pred_region
          _
        $region20: #{decoder_forward.11} parent=11 // pred_fallthru
          _
        // Predicated region
        $region21: #{decoder_forward.11} parent=11 // pred_check
          %p318 = pneg %p166
        $region22: #{decoder_forward.11} parent=11 // pred_check_branch
          %320 = sbr.rel (%p318) target = $region24
        $region23: #{decoder_forward.11} parent=11 // pred_region
          %322 = vsyncadd [#allocation5], 0
          %s323 = sshll.u32 %s5, 4
          %s324 = int_to_ptr.hbm [resolvable:$true] %s323
          %s325 = sshll.u32 [#allocation6], 4
          %s326 = int_to_ptr.vmem [resolvable:$true] %s325
          %331 = dma.hbm_to_vmem [thread:$0]  %s324, 256, %s326, [#allocation5], 64, 64, 4
        $region24: #{decoder_forward.11} parent=11 // pred_fallthru
          _
        // Predicated region
        $region25: #{decoder_forward.11} parent=11 // pred_check
          %p332 = pneg %p187
        $region26: #{decoder_forward.11} parent=11 // pred_check_branch
          %334 = sbr.rel (%p332) target = $region28
        $region27: #{decoder_forward.11} parent=11 // pred_region
          _
        $region28: #{decoder_forward.11} parent=11 // pred_fallthru
          _
        // Predicated region
        $region29: #{decoder_forward.11} parent=11 // pred_check
          %p335 = pneg %p208
        $region30: #{decoder_forward.11} parent=11 // pred_check_branch
          %337 = sbr.rel (%p335) target = $region32
        $region31: #{decoder_forward.11} parent=11 // pred_region
          %339 = vsyncadd [#allocation8], 0
          %s340 = sshll.u32 %s7, 4
          %s341 = int_to_ptr.hbm [resolvable:$true] %s340
          %s342 = sshll.u32 [#allocation7], 4
          %s343 = int_to_ptr.vmem [resolvable:$true] %s342
          %348 = dma.hbm_to_vmem [thread:$0]  %s341, 256, %s343, [#allocation8], 64, 64, 4
        $region32: #{decoder_forward.11} parent=11 // pred_fallthru
          _
        // Predicated region
        $region33: #{decoder_forward.11} parent=11 // pred_check
          %p349 = pneg %p229
        $region34: #{decoder_forward.11} parent=11 // pred_check_branch
          %351 = sbr.rel (%p349) target = $region36
        $region35: #{decoder_forward.11} parent=11 // pred_region
          %353 = vsyncadd [#allocation8], 0
          %s355 = sshll.u32 %s8, 4
          %s356 = int_to_ptr.hbm [resolvable:$true] %s355
          %s357 = sshll.u32 [#allocation9], 4
          %s358 = int_to_ptr.vmem [resolvable:$true] %s357
          %360 = dma.hbm_to_vmem [thread:$0]  %s356, 16, %s358, [#allocation8]
        $region36: #{decoder_forward.11} parent=11 // pred_fallthru
          _
        // Predicated region
        $region37: #{decoder_forward.11} parent=11 // pred_check
          %p361 = pneg %p250
        $region38: #{decoder_forward.11} parent=11 // pred_check_branch
          %363 = sbr.rel (%p361) target = $region40
        $region39: #{decoder_forward.11} parent=11 // pred_region
          %365 = vsyncadd [#allocation11], 0
          %s366 = sshll.u32 %s9, 4
          %s367 = int_to_ptr.hbm [resolvable:$true] %s366
          %s368 = sshll.u32 [#allocation10], 4
          %s369 = int_to_ptr.vmem [resolvable:$true] %s368
          %374 = dma.hbm_to_vmem [thread:$0]  %s367, 256, %s369, [#allocation11], 64, 64, 4
        $region40: #{decoder_forward.11} parent=11 // pred_fallthru
          _
        // Predicated region
        $region41: #{decoder_forward.11} parent=11 // pred_check
          %p375 = pneg %p271
        $region42: #{decoder_forward.11} parent=11 // pred_check_branch
          %377 = sbr.rel (%p375) target = $region44
        $region43: #{decoder_forward.11} parent=11 // pred_region
          %379 = vsyncadd [#allocation11], 0
          %s381 = sshll.u32 %s10, 4
          %s382 = int_to_ptr.hbm [resolvable:$true] %s381
          %s383 = sshll.u32 [#allocation12], 4
          %s384 = int_to_ptr.vmem [resolvable:$true] %s383
          %386 = dma.hbm_to_vmem [thread:$0]  %s382, 16, %s384, [#allocation11]
        $region44: #{decoder_forward.11} parent=11 // pred_fallthru
          _
      $region12: #{decoder_forward.11} parent=5 // pred_fallthru
        _
      %p387 = scmp.lt.s32.totalorder %s25, 2
      // Predicated region
      $region45: #{decoder_forward.11} parent=5 // pred_check
        %p388 = pneg %p387
      $region46: #{decoder_forward.11} parent=5 // pred_check_branch
        %390 = sbr.rel (%p388) target = $region48
      $region47: #{decoder_forward.11} parent=5 // pred_region
        // Predicated region
        $region49: #{decoder_forward.11} parent=47 // pred_check
          %p391 = pneg %p45
        $region50: #{decoder_forward.11} parent=47 // pred_check_branch
          %393 = sbr.rel (%p391) target = $region52
        $region51: #{decoder_forward.11} parent=47 // pred_region
          %p394 = scmp.lt.s32.totalorder %s25, 1
          %s395 = scalar_select %p394, %s25, 1
          %s396 = smul.addr %s395, 8
          %s397 = scalar_lea.vmem %s0, %s396
        $region52: #{decoder_forward.11} parent=47 // pred_fallthru
          _
        // Predicated region
        $region53: #{decoder_forward.11} parent=47 // pred_check
          %p398 = pneg %p71
        $region54: #{decoder_forward.11} parent=47 // pred_check_branch
          %400 = sbr.rel (%p398) target = $region56
        $region55: #{decoder_forward.11} parent=47 // pred_region
          %s401 = sand.u32 %s61, 1
          %s402 = scalar_lea.sflag [#allocation3], %s401
          %s403 = sand.u32 %s61, 1
          %s404 = smul.addr %s403, 8
          %s405 = scalar_lea.vmem [#allocation2], %s404
          %407 = vsyncadd %s402, 0
          %s408 = smul.addr %s25, 8
          %s409 = scalar_lea.hbm %s1, %s408
          %s411 = sshll.u32 %s409, 4
          %s412 = int_to_ptr.hbm [resolvable:$true] %s411
          %s413 = sshll.u32 %s405, 4
          %s414 = int_to_ptr.vmem [resolvable:$true] %s413
          %416 = dma.hbm_to_vmem [thread:$0]  %s412, 128, %s414, %s402
        $region56: #{decoder_forward.11} parent=47 // pred_fallthru
          _
        // Predicated region
        $region57: #{decoder_forward.11} parent=47 // pred_check
          %p417 = pneg %p97
        $region58: #{decoder_forward.11} parent=47 // pred_check_branch
          %419 = sbr.rel (%p417) target = $region60
        $region59: #{decoder_forward.11} parent=47 // pred_region
          %s420 = sand.u32 %s25, 1
          %s421 = scalar_lea.sflag [#allocation5], %s420
          %s422 = sand.u32 %s87, 1
          %s423 = smul.addr %s422, 8
          %s424 = scalar_lea.vmem [#allocation4], %s423
          %426 = vsyncadd %s421, 0
          %s427 = smul.addr %s25, 8
          %s428 = scalar_lea.hbm %s2, %s427
          %s430 = sshll.u32 %s428, 4
          %s431 = int_to_ptr.hbm [resolvable:$true] %s430
          %s432 = sshll.u32 %s424, 4
          %s433 = int_to_ptr.vmem [resolvable:$true] %s432
          %435 = dma.hbm_to_vmem [thread:$0]  %s431, 128, %s433, %s421
        $region60: #{decoder_forward.11} parent=47 // pred_fallthru
          _
      $region48: #{decoder_forward.11} parent=5 // pred_fallthru
        _
      %p436 = scmp.le.s32.totalorder 1, %s25
      %p437 = scmp.lt.s32.totalorder %s25, 3
      %p438 = pnand %p436, %p437
      %p439 = pneg %p438
      // Predicated region
      $region61: #{decoder_forward.11} parent=5 // pred_check
        _
      $region62: #{decoder_forward.11} parent=5 // pred_check_branch
        %441 = sbr.rel (%p438) target = $region64
      $region63: #{decoder_forward.11} parent=5 // pred_region
        %s442 = ssub.s32 %s25, 1
        %s443 = sand.u32 %s64, 1
        %s444 = scalar_lea.sflag [#allocation3], %s443
        %s445 = sand.u32 %s64, 1
        %s446 = smul.addr %s445, 8
        %s447 = scalar_lea.vmem [#allocation2], %s446
        // Predicated region
        $region65: #{decoder_forward.11} parent=63 // pred_check
          %p448 = pneg %p77
        $region66: #{decoder_forward.11} parent=63 // pred_check_branch
          %450 = sbr.rel (%p448) target = $region68
        $region67: #{decoder_forward.11} parent=63 // pred_region
          %452 = dma.done %s444, 128
        $region68: #{decoder_forward.11} parent=63 // pred_fallthru
          _
        %s453 = sand.u32 %s30, 1
        %s454 = scalar_lea.sflag [#allocation5], %s453
        %s455 = sand.u32 %s90, 1
        %s456 = smul.addr %s455, 8
        %s457 = scalar_lea.vmem [#allocation4], %s456
        // Predicated region
        $region69: #{decoder_forward.11} parent=63 // pred_check
          %p458 = pneg %p103
        $region70: #{decoder_forward.11} parent=63 // pred_check_branch
          %460 = sbr.rel (%p458) target = $region72
        $region71: #{decoder_forward.11} parent=63 // pred_region
          %462 = dma.done %s454, 128
        $region72: #{decoder_forward.11} parent=63 // pred_fallthru
          _
        // Predicated region
        $region73: #{decoder_forward.11} parent=63 // pred_check
          %p463 = pneg %p166
        $region74: #{decoder_forward.11} parent=63 // pred_check_branch
          %465 = sbr.rel (%p463) target = $region76
        $region75: #{decoder_forward.11} parent=63 // pred_region
          %467 = dma.done [#allocation5], 256
        $region76: #{decoder_forward.11} parent=63 // pred_fallthru
          _
        // Predicated region
        $region77: #{decoder_forward.11} parent=63 // pred_check
          %p468 = pneg %p208
        $region78: #{decoder_forward.11} parent=63 // pred_check_branch
          %470 = sbr.rel (%p468) target = $region80
        $region79: #{decoder_forward.11} parent=63 // pred_region
          %472 = dma.done [#allocation8], 256
        $region80: #{decoder_forward.11} parent=63 // pred_fallthru
          _
        // Predicated region
        $region81: #{decoder_forward.11} parent=63 // pred_check
          %p473 = pneg %p229
        $region82: #{decoder_forward.11} parent=63 // pred_check_branch
          %475 = sbr.rel (%p473) target = $region84
        $region83: #{decoder_forward.11} parent=63 // pred_region
          %477 = dma.done [#allocation8], 16
        $region84: #{decoder_forward.11} parent=63 // pred_fallthru
          _
        // Predicated region
        $region85: #{decoder_forward.11} parent=63 // pred_check
          %p478 = pneg %p250
        $region86: #{decoder_forward.11} parent=63 // pred_check_branch
          %480 = sbr.rel (%p478) target = $region88
        $region87: #{decoder_forward.11} parent=63 // pred_region
          %482 = dma.done [#allocation11], 256
        $region88: #{decoder_forward.11} parent=63 // pred_fallthru
          _
        // Predicated region
        $region89: #{decoder_forward.11} parent=63 // pred_check
          %p483 = pneg %p271
        $region90: #{decoder_forward.11} parent=63 // pred_check_branch
          %485 = sbr.rel (%p483) target = $region92
        $region91: #{decoder_forward.11} parent=63 // pred_region
          %487 = dma.done [#allocation11], 16
        $region92: #{decoder_forward.11} parent=63 // pred_fallthru
          _
        %p488 = scmp.lt.s32.totalorder %s30, 1
        %s489 = scalar_select %p488, %s30, 1
        %s490 = smul.addr %s489, 8
        %s491 = scalar_lea.vmem %s0, %s490
        %p492 = pneg %p51
        %p493 = pneg %p48
        %s494 = sand.u32 %s64, 1
        %s495 = scalar_lea.sflag [#allocation3], %s494
        %s496 = sand.u32 %s64, 1
        %s497 = smul.addr %s496, 8
        %s498 = scalar_lea.vmem [#allocation2], %s497
        %p499 = pneg %p77
        %p500 = pneg %p74
        %s501 = sand.u32 %s30, 1
        %s502 = scalar_lea.sflag [#allocation5], %s501
        %s503 = sand.u32 %s90, 1
        %s504 = smul.addr %s503, 8
        %s505 = scalar_lea.vmem [#allocation4], %s504
        %p506 = pneg %p103
        %p507 = pneg %p100
        %p508 = pneg %p124
        %p509 = pneg %p121
        %p510 = pneg %p145
        %p511 = pneg %p142
        %p512 = pneg %p166
        %p513 = pneg %p163
        %p514 = pneg %p187
        %p515 = pneg %p184
        %p516 = pneg %p208
        %p517 = pneg %p205
        %p518 = pneg %p229
        %p519 = pneg %p226
        %p520 = pneg %p250
        %p521 = pneg %p247
        %p522 = pneg %p271
        %p523 = pneg %p268
        %p524 = pneg %p297
        %p525 = pneg %p294
        %p526 = scmp.lt.s32.totalorder %s30, 1
        %s527 = scalar_select %p526, %s30, 1
        %s528 = smul.addr %s527, 8
        %s529 = scalar_lea.vmem %s11, %s528
        %p530 = scmp.lt.s32.totalorder %s30, 1
        %s531 = scalar_select %p530, %s30, 1
        %s532 = smul.addr %s531, 8
        %s533 = scalar_lea.vmem %s0, %s532
        %p534 = scmp.lt.s32.totalorder %s30, 1
        %s535 = scalar_select %p534, %s30, 1
        %s536 = smul.addr %s535, 8
        %s537 = scalar_lea.vmem %s11, %s536
        %v539 = vld [vmem:[%s533] sm:$0xff]
        %v540 = vld [vmem:[%s3] sm:$0x1]
        %v541 = vld [vmem:[%s4] sm:$0x1]
        %vm542 = vcmask 261120
        %v543 = vsel %vm542, %v539, 0.0
        %544 = vadd.xlane.f32.xlu0 %v543
        %v545 = vpop.xlane.xlu0 %544
        %v546 = vrcp.pop 32.0
        %v547 = vmul.f32 32.0, %v546
        %v548 = vsub.f32 1.0, %v547
        %v549 = vmul.f32 %v546, %v548
        %v550 = vadd.f32 %v546, %v549
        %vm551 = vweird.f32 %v546
        %v552 = vsel %vm551, %v546, %v550
        %v553 = vmul.f32 %v545, %v552
        %v554 = vsub.f32 %v539, %v553
        %v555 = vmul.f32 %v554, %v554
        %v556 = vsel %vm542, %v555, 0.0
        %557 = vadd.xlane.f32.xlu0 %v556
        %v558 = vpop.xlane.xlu0 %557
        %v559 = vrcp.pop 31.0
        %v560 = vmul.f32 31.0, %v559
        %v561 = vsub.f32 1.0, %v560
        %v562 = vmul.f32 %v559, %v561
        %v563 = vadd.f32 %v559, %v562
        %vm564 = vweird.f32 %v559
        %v565 = vsel %vm564, %v559, %v563
        %v566 = vmul.f32 %v558, %v565
        %v568 = vperm.slane %v540, 0
        %v570 = vmul.f32 %v568, %v554
        %v571 = vrsqrt.pop %v566
        %v572 = vmul.f32 %v571, %v566
        %v573 = vmul.f32 %v572, %v571
        %v574 = vmul.f32 0.5, %v573
        %v575 = vsub.f32 1.5, %v574
        %v576 = vmul.f32 %v571, %v575
        %v577 = vmul.f32 %v566, %v576
        %vm578 = vcmp.eq.f32.partialorder %v566, inf
        %v579 = vsel %vm578, %v566, %v577
        %vm580 = vcmp.eq.f32.partialorder %v566, 0.0
        %v581 = vand.u32 %v566, 2147483648
        %v582 = vsel %vm580, %v581, %v579
        %v583 = vadd.f32 %v582, 1e-06
        %v584 = vrcp.pop %v583
        %v585 = vmul.f32 %v583, %v584
        %v586 = vsub.f32 1.0, %v585
        %v587 = vmul.f32 %v584, %v586
        %v588 = vadd.f32 %v584, %v587
        %vm589 = vweird.f32 %v583
        %vm590 = vweird.f32 %v584
        %vm591 = vmor %vm589, %vm590
        %v592 = vsel %vm591, %v584, %v588
        %v593 = vand.u32 2147483647, %v583
        %vm594 = vcmp.eq.f32.partialorder %v593, 8.507059e+37
        %v595 = vand.u32 %v583, 2147483648
        %v596 = vor.u32 1.1754944e-38, %v595
        %v597 = vsel %vm594, %v596, %v592
        %v598 = vmul.f32 %v570, %v597
        %v600 = vperm.slane %v541, 0
        %v602 = vadd.f32 %v598, %v600
        %v603 = vpack.c.bf16 %v602, %v602
        %v604 = vld [vmem:[#allocation6] sm:$0xf]
        %v605 = vld [vmem:[#allocation6 + $0x4] sm:$0xf]
        %v606 = vld [vmem:[#allocation6 + $0x8] sm:$0xf]
        %v607 = vld [vmem:[#allocation6 + $0xc] sm:$0xf]
        %v608 = vld [vmem:[%s6] sm:$0x1]
        %v610 = vperm.slane %v608, 0
        %v616 = vunpack.c.l.b16 %v604
        %v617 = vunpack.c.l.b16 %v605
        %v618 = vunpack.c.l.b16 %v606
        %v619 = vunpack.c.l.b16 %v607
        %v620 = vpack.c.b16 %v617, %v616
        %v621 = vpack.c.b16 %v619, %v618
        %v625 = vsel %vm542, %v603, 0
        %627 = vmatpush.bf16.msra.mxu0 0
        %628 = vmatpush.bf16.msra.mxu0 0
        %629 = vmatpush.bf16.msra.mxu0 0
        %630 = vmatpush.bf16.msra.mxu0 0
        %631 = vmatpush.bf16.msra.mxu0 0
        %632 = vmatpush.bf16.msra.mxu0 0
        %633 = vmatpush.bf16.msra.mxu0 %v621
        %634 = vmatpush.bf16.msra.mxu0 %v620
        %635 = vmatmul.bf16.gmra.mxu0 %v625
        %v636 = vpop.f32.mrf.mxu0
        %v637 = vadd.f32 %v610, %v636
        %v638 = vpop.f32.mrf.mxu0
        %639 = vdwg.mxu0
        %v640 = vld [vmem:[%s447] sm:$0xff]
        %v641 = vpack.c.bf16 %v640, %v640
        %v642 = vld [vmem:[#allocation7] sm:$0xf]
        %v643 = vld [vmem:[#allocation7 + $0x4] sm:$0xf]
        %v644 = vld [vmem:[#allocation7 + $0x8] sm:$0xf]
        %v645 = vld [vmem:[#allocation7 + $0xc] sm:$0xf]
        %v646 = vld [vmem:[#allocation9] sm:$0x1]
        %v648 = vperm.slane %v646, 0
        %v654 = vunpack.c.l.b16 %v642
        %v655 = vunpack.c.l.b16 %v643
        %v656 = vunpack.c.l.b16 %v644
        %v657 = vunpack.c.l.b16 %v645
        %v658 = vpack.c.b16 %v655, %v654
        %v659 = vpack.c.b16 %v657, %v656
        %v663 = vsel %vm542, %v641, 0
        %665 = vmatpush.bf16.msra.mxu0 0
        %666 = vmatpush.bf16.msra.mxu0 0
        %667 = vmatpush.bf16.msra.mxu0 0
        %668 = vmatpush.bf16.msra.mxu0 0
        %669 = vmatpush.bf16.msra.mxu0 0
        %670 = vmatpush.bf16.msra.mxu0 0
        %671 = vmatpush.bf16.msra.mxu0 %v659
        %672 = vmatpush.bf16.msra.mxu0 %v658
        %673 = vmatmul.bf16.gmra.mxu0 %v663
        %v674 = vpop.f32.mrf.mxu0
        %v675 = vadd.f32 %v648, %v674
        %v676 = vpop.f32.mrf.mxu0
        %677 = vdwg.mxu0
        %v678 = vld [vmem:[%s457] sm:$0xff]
        %v679 = vpack.c.bf16 %v637, %v637
        %v680 = vpack.c.bf16 %v675, %v675
        %vm681 = vcmask 64512
        %v683 = vsel %vm681, %v679, 0
        %v686 = vsel %vm681, %v680, 0
        %688 = vmatpush.bf16.xpose.msra.mxu0 0
        %689 = vmatpush.bf16.xpose.msra.mxu0 0
        %690 = vmatpush.bf16.xpose.msra.mxu0 0
        %691 = vmatpush.bf16.xpose.msra.mxu0 0
        %692 = vmatpush.bf16.xpose.msra.mxu0 0
        %693 = vmatpush.bf16.xpose.msra.mxu0 0
        %694 = vmatpush.bf16.xpose.msra.mxu0 0
        %695 = vmatpush.bf16.xpose.msra.mxu0 %v686
        %696 = vmatmul.bf16.gmra.mxu0 %v683
        %v697 = vpop.f32.mrf.mxu0
        %v698 = vadd.f32 0.0, %v697
        %v699 = vpop.f32.mrf.mxu0
        %700 = vdwg.mxu0
        %v701 = vmul.f32 %v698, 0.35355338
        %vm702 = vcmp.eq.f32.partialorder %v678, 0.0
        %v703 = vsel %vm702, -1e+09, %v701
        %v704 = vsel %vm681, %v703, -inf
        %705 = vmax.xlane.f32.xlu0 %v704
        %v706 = vpop.xlane.xlu0 %705
        %v707 = vsub.f32 %v703, %v706
        %v708 = vmul.f32 %v707, 1.442695
        %v709 = vpow.pop %v708
        %v710 = vsel %vm681, %v709, 0.0
        %711 = vadd.xlane.f32.xlu0 %v710
        %v712 = vpop.xlane.xlu0 %711
        %v713 = vpack.c.bf16 %v709, %v709
        %715 = vrot.lane.b32.xlu0 %v680, 96
        %v716 = vpop.permute.xlu0 %715
        %v718 = vsel %vm681, %v713, 0
        %vm720 = vcmask 1043456
        %v722 = vsel %vm720, %v716, 0
        %724 = vmatpush.bf16.msra.mxu0 0
        %725 = vmatpush.bf16.msra.mxu0 0
        %726 = vmatpush.bf16.msra.mxu0 0
        %727 = vmatpush.bf16.msra.mxu0 0
        %728 = vmatpush.bf16.msra.mxu0 0
        %729 = vmatpush.bf16.msra.mxu0 0
        %730 = vmatpush.bf16.msra.mxu0 0
        %731 = vmatpush.bf16.msra.mxu0 %v722
        %732 = vmatmul.bf16.gmra.mxu0 %v718
        %v733 = vpop.f32.mrf.mxu0
        %v734 = vadd.f32 0.0, %v733
        %v735 = vpop.f32.mrf.mxu0
        %736 = vdwg.mxu0
        %v737 = vrcp.pop %v712
        %v738 = vmul.f32 %v734, %v737
        %740 = vrot.lane.b32.xlu0 %v679, 120
        %v741 = vpop.permute.xlu0 %740
        %742 = vrot.lane.b32.xlu0 %v680, 120
        %v743 = vpop.permute.xlu0 %742
        %v745 = vsel %vm681, %v741, 0
        %v748 = vsel %vm681, %v743, 0
        %750 = vmatpush.bf16.xpose.msra.mxu0 0
        %751 = vmatpush.bf16.xpose.msra.mxu0 0
        %752 = vmatpush.bf16.xpose.msra.mxu0 0
        %753 = vmatpush.bf16.xpose.msra.mxu0 0
        %754 = vmatpush.bf16.xpose.msra.mxu0 0
        %755 = vmatpush.bf16.xpose.msra.mxu0 0
        %756 = vmatpush.bf16.xpose.msra.mxu0 0
        %757 = vmatpush.bf16.xpose.msra.mxu0 %v748
        %758 = vmatmul.bf16.gmra.mxu0 %v745
        %v759 = vpop.f32.mrf.mxu0
        %v760 = vadd.f32 0.0, %v759
        %v761 = vpop.f32.mrf.mxu0
        %762 = vdwg.mxu0
        %v763 = vmul.f32 %v760, 0.35355338
        %v764 = vsel %vm702, -1e+09, %v763
        %v765 = vsel %vm681, %v764, -inf
        %766 = vmax.xlane.f32.xlu0 %v765
        %v767 = vpop.xlane.xlu0 %766
        %v768 = vsub.f32 %v764, %v767
        %v769 = vmul.f32 %v768, 1.442695
        %v770 = vpow.pop %v769
        %v771 = vsel %vm681, %v770, 0.0
        %772 = vadd.xlane.f32.xlu0 %v771
        %v773 = vpop.xlane.xlu0 %772
        %v774 = vpack.c.bf16 %v770, %v770
        %775 = vrot.lane.b32.xlu0 %v680, 88
        %v776 = vpop.permute.xlu0 %775
        %v778 = vsel %vm681, %v774, 0
        %v781 = vsel %vm720, %v776, 0
        %783 = vmatpush.bf16.msra.mxu0 0
        %784 = vmatpush.bf16.msra.mxu0 0
        %785 = vmatpush.bf16.msra.mxu0 0
        %786 = vmatpush.bf16.msra.mxu0 0
        %787 = vmatpush.bf16.msra.mxu0 0
        %788 = vmatpush.bf16.msra.mxu0 0
        %789 = vmatpush.bf16.msra.mxu0 0
        %790 = vmatpush.bf16.msra.mxu0 %v781
        %791 = vmatmul.bf16.gmra.mxu0 %v778
        %v792 = vpop.f32.mrf.mxu0
        %v793 = vadd.f32 0.0, %v792
        %v794 = vpop.f32.mrf.mxu0
        %795 = vdwg.mxu0
        %v796 = vrcp.pop %v773
        %v797 = vmul.f32 %v793, %v796
        %798 = vrot.lane.b32.xlu0 %v679, 112
        %v799 = vpop.permute.xlu0 %798
        %800 = vrot.lane.b32.xlu0 %v680, 112
        %v801 = vpop.permute.xlu0 %800
        %v803 = vsel %vm681, %v799, 0
        %v806 = vsel %vm681, %v801, 0
        %808 = vmatpush.bf16.xpose.msra.mxu0 0
        %809 = vmatpush.bf16.xpose.msra.mxu0 0
        %810 = vmatpush.bf16.xpose.msra.mxu0 0
        %811 = vmatpush.bf16.xpose.msra.mxu0 0
        %812 = vmatpush.bf16.xpose.msra.mxu0 0
        %813 = vmatpush.bf16.xpose.msra.mxu0 0
        %814 = vmatpush.bf16.xpose.msra.mxu0 0
        %815 = vmatpush.bf16.xpose.msra.mxu0 %v806
        %816 = vmatmul.bf16.gmra.mxu0 %v803
        %v817 = vpop.f32.mrf.mxu0
        %v818 = vadd.f32 0.0, %v817
        %v819 = vpop.f32.mrf.mxu0
        %820 = vdwg.mxu0
        %v821 = vmul.f32 %v818, 0.35355338
        %v822 = vsel %vm702, -1e+09, %v821
        %v823 = vsel %vm681, %v822, -inf
        %824 = vmax.xlane.f32.xlu0 %v823
        %v825 = vpop.xlane.xlu0 %824
        %v826 = vsub.f32 %v822, %v825
        %v827 = vmul.f32 %v826, 1.442695
        %v828 = vpow.pop %v827
        %v829 = vsel %vm681, %v828, 0.0
        %830 = vadd.xlane.f32.xlu0 %v829
        %v831 = vpop.xlane.xlu0 %830
        %v832 = vpack.c.bf16 %v828, %v828
        %833 = vrot.lane.b32.xlu0 %v680, 80
        %v834 = vpop.permute.xlu0 %833
        %v836 = vsel %vm681, %v832, 0
        %v839 = vsel %vm720, %v834, 0
        %841 = vmatpush.bf16.msra.mxu0 0
        %842 = vmatpush.bf16.msra.mxu0 0
        %843 = vmatpush.bf16.msra.mxu0 0
        %844 = vmatpush.bf16.msra.mxu0 0
        %845 = vmatpush.bf16.msra.mxu0 0
        %846 = vmatpush.bf16.msra.mxu0 0
        %847 = vmatpush.bf16.msra.mxu0 0
        %848 = vmatpush.bf16.msra.mxu0 %v839
        %849 = vmatmul.bf16.gmra.mxu0 %v836
        %v850 = vpop.f32.mrf.mxu0
        %v851 = vadd.f32 0.0, %v850
        %v852 = vpop.f32.mrf.mxu0
        %853 = vdwg.mxu0
        %v854 = vrcp.pop %v831
        %v855 = vmul.f32 %v851, %v854
        %856 = vrot.lane.b32.xlu0 %v679, 104
        %v857 = vpop.permute.xlu0 %856
        %858 = vrot.lane.b32.xlu0 %v680, 104
        %v859 = vpop.permute.xlu0 %858
        %v861 = vsel %vm681, %v857, 0
        %v864 = vsel %vm681, %v859, 0
        %866 = vmatpush.bf16.xpose.msra.mxu0 0
        %867 = vmatpush.bf16.xpose.msra.mxu0 0
        %868 = vmatpush.bf16.xpose.msra.mxu0 0
        %869 = vmatpush.bf16.xpose.msra.mxu0 0
        %870 = vmatpush.bf16.xpose.msra.mxu0 0
        %871 = vmatpush.bf16.xpose.msra.mxu0 0
        %872 = vmatpush.bf16.xpose.msra.mxu0 0
        %873 = vmatpush.bf16.xpose.msra.mxu0 %v864
        %874 = vmatmul.bf16.gmra.mxu0 %v861
        %v875 = vpop.f32.mrf.mxu0
        %v876 = vadd.f32 0.0, %v875
        %v877 = vpop.f32.mrf.mxu0
        %878 = vdwg.mxu0
        %v879 = vmul.f32 %v876, 0.35355338
        %v880 = vsel %vm702, -1e+09, %v879
        %v881 = vsel %vm681, %v880, -inf
        %882 = vmax.xlane.f32.xlu0 %v881
        %v883 = vpop.xlane.xlu0 %882
        %v884 = vsub.f32 %v880, %v883
        %v885 = vmul.f32 %v884, 1.442695
        %v886 = vpow.pop %v885
        %v887 = vsel %vm681, %v886, 0.0
        %888 = vadd.xlane.f32.xlu0 %v887
        %v889 = vpop.xlane.xlu0 %888
        %v890 = vpack.c.bf16 %v886, %v886
        %891 = vrot.lane.b32.xlu0 %v680, 72
        %v892 = vpop.permute.xlu0 %891
        %v894 = vsel %vm681, %v890, 0
        %v897 = vsel %vm720, %v892, 0
        %899 = vmatpush.bf16.msra.mxu0 0
        %900 = vmatpush.bf16.msra.mxu0 0
        %901 = vmatpush.bf16.msra.mxu0 0
        %902 = vmatpush.bf16.msra.mxu0 0
        %903 = vmatpush.bf16.msra.mxu0 0
        %904 = vmatpush.bf16.msra.mxu0 0
        %905 = vmatpush.bf16.msra.mxu0 0
        %906 = vmatpush.bf16.msra.mxu0 %v897
        %907 = vmatmul.bf16.gmra.mxu0 %v894
        %v908 = vpop.f32.mrf.mxu0
        %v909 = vadd.f32 0.0, %v908
        %v910 = vpop.f32.mrf.mxu0
        %911 = vdwg.mxu0
        %v912 = vrcp.pop %v889
        %v913 = vmul.f32 %v909, %v912
        %915 = vrot.lane.b32.xlu0 %v797, 8
        %v916 = vpop.permute.xlu0 %915
        %919 = vrot.lane.b32.xlu0 %v855, 16
        %v920 = vpop.permute.xlu0 %919
        %923 = vrot.lane.b32.xlu0 %v913, 24
        %v924 = vpop.permute.xlu0 %923
        %v926 = vsel %vm681, %v738, %v916
        %vm927 = vcmask 130048
        %v928 = vsel %vm927, %v926, %v920
        %vm929 = vcmask 195584
        %v930 = vsel %vm929, %v928, %v924
        %v931 = vpack.c.bf16 %v930, %v930
        %v932 = vld [vmem:[#allocation10] sm:$0xf]
        %v933 = vld [vmem:[#allocation10 + $0x4] sm:$0xf]
        %v934 = vld [vmem:[#allocation10 + $0x8] sm:$0xf]
        %v935 = vld [vmem:[#allocation10 + $0xc] sm:$0xf]
        %v936 = vld [vmem:[#allocation12] sm:$0x1]
        %v938 = vperm.slane %v936, 0
        %v944 = vunpack.c.l.b16 %v932
        %v945 = vunpack.c.l.b16 %v933
        %v946 = vunpack.c.l.b16 %v934
        %v947 = vunpack.c.l.b16 %v935
        %v948 = vpack.c.b16 %v945, %v944
        %v949 = vpack.c.b16 %v947, %v946
        %v953 = vsel %vm542, %v931, 0
        %955 = vmatpush.bf16.msra.mxu0 0
        %956 = vmatpush.bf16.msra.mxu0 0
        %957 = vmatpush.bf16.msra.mxu0 0
        %958 = vmatpush.bf16.msra.mxu0 0
        %959 = vmatpush.bf16.msra.mxu0 0
        %960 = vmatpush.bf16.msra.mxu0 0
        %961 = vmatpush.bf16.msra.mxu0 %v949
        %962 = vmatpush.bf16.msra.mxu0 %v948
        %963 = vmatmul.bf16.gmra.mxu0 %v953
        %v964 = vpop.f32.mrf.mxu0
        %v965 = vadd.f32 %v938, %v964
        %v966 = vpop.f32.mrf.mxu0
        %967 = vdwg.mxu0
        %v968 = vadd.f32 %v965, %v539
        %969 = vst.msk [vmem:[%s537] sm:$0xff] %vm542, %v968
        %p970 = scmp.lt.s32.totalorder %s30, 1
        %s971 = scalar_select %p970, %s30, 1
        %s972 = smul.addr %s971, 8
        %s973 = scalar_lea.vmem %s11, %s972
        // Predicated region
        $region93: #{decoder_forward.11} parent=63 // pred_check
          %p974 = pneg %p294
        $region94: #{decoder_forward.11} parent=63 // pred_check_branch
          %976 = sbr.rel (%p974) target = $region96
        $region95: #{decoder_forward.11} parent=63 // pred_region
          _
        $region96: #{decoder_forward.11} parent=63 // pred_fallthru
          _
      $region64: #{decoder_forward.11} parent=5 // pred_fallthru
        _
      %p977 = scmp.le.s32.totalorder 2, %s25
      // Predicated region
      $region97: #{decoder_forward.11} parent=5 // pred_check
        %p978 = pneg %p977
      $region98: #{decoder_forward.11} parent=5 // pred_check_branch
        %980 = sbr.rel (%p978) target = $region100
      $region99: #{decoder_forward.11} parent=5 // pred_region
        %s981 = ssub.s32 %s25, 2
        // Predicated region
        $region101: #{decoder_forward.11} parent=99 // pred_check
          %p982 = pneg %p300
        $region102: #{decoder_forward.11} parent=99 // pred_check_branch
          %984 = sbr.rel (%p982) target = $region104
        $region103: #{decoder_forward.11} parent=99 // pred_region
          %p985 = scmp.lt.s32.totalorder %s31, 1
          %s986 = scalar_select %p985, %s31, 1
          %s987 = smul.addr %s986, 8
          %s988 = scalar_lea.vmem %s11, %s987
        $region104: #{decoder_forward.11} parent=99 // pred_fallthru
          _
      $region100: #{decoder_forward.11} parent=5 // pred_fallthru
        _
    $region6: #{decoder_forward.11} parent=1 // loop_footer
      %s29 = sadd.s32 1, %s25
    $region7: #{decoder_forward.11} parent=1 // loop_footer_branch
      %24 = sbr.rel target = $region3
    $region8: #{decoder_forward.11} parent=1 // loop_exit
      _
    %989 = vsyncpa [#allocation3], 1
    %s990 = scalar_lea.sflag [#allocation3], 1
    %991 = vsyncpa %s990, 1
    %992 = vsyncpa [#allocation5], 1
    %s993 = scalar_lea.sflag [#allocation5], 1
    %994 = vsyncpa %s993, 1
    %995 = vsyncpa [#allocation8], 1
    %996 = vsyncpa [#allocation11], 1

// kernel: decoder_forward.13
$region0: #{decoder_forward.13}
  #allocation0 [shape = 'u32[]', space=smem, size = 0x4, offset = 0x4, fixed_abs, tag = 'smem constant byte address 0x4 - core index']
  #allocation1 [shape = 'u32[72,128]{1,0:T(1,128)}', space=vmem, size = 0x9000, scoped, tag = 'internal scratch']
  %s0 = inlined_call_operand.vmem [shape: f32[16,32], index: 0, kind: input, shape index: {}]
  %s1 = inlined_call_operand.vmem [shape: f32[1,32], index: 1, kind: input, shape index: {}]
  %s2 = inlined_call_operand.hbm [shape: f32[1,32], index: 2, kind: input, shape index: {}]
  %s3 = inlined_call_operand.hbm [shape: f32[16,32], index: 3, kind: output, shape index: {}]
  %s4 = sld [smem:[#allocation0]]
  $region26: #{decoder_forward.13} parent=0
    _
  %s6 = ssub.s32 1, %s4
  %s7 = scalar_select 0, %s6, %s4
  $region1: #{decoder_forward.13} parent=0
    #allocation2 [shape = 'u8[512]{0}', space=vmem, size = 0x400, scoped, tag = 'input window, operand 2, single buffered']
    #allocation3 [shape = 's32[1]{0}', space=sflag, size = 0x4, scoped, tag = 'scoped memory for decoder_forward.13']
    #allocation4 [shape = 's32[1]{0}', space=sflag, size = 0x4, scoped, tag = 'scoped memory for decoder_forward.13']
    #allocation5 [shape = 'u8[8192]{0}', space=vmem, size = 0x2000, scoped, tag = 'output window, operand 0, single buffered']
    %8 = vsyncpa [#allocation3], 0
    %9 = vsyncpa [#allocation4], 0
    // Predicated region
    $region2: #{decoder_forward.13} parent=1 // pred_check
      _
    $region3: #{decoder_forward.13} parent=1 // pred_check_branch
      %11 = sbr.rel (0) target = $region5
    $region4: #{decoder_forward.13} parent=1 // pred_region
      _
    $region5: #{decoder_forward.13} parent=1 // pred_fallthru
      _
    // Predicated region
    $region6: #{decoder_forward.13} parent=1 // pred_check
      _
    $region7: #{decoder_forward.13} parent=1 // pred_check_branch
      %13 = sbr.rel (0) target = $region9
    $region8: #{decoder_forward.13} parent=1 // pred_region
      _
    $region9: #{decoder_forward.13} parent=1 // pred_fallthru
      _
    // Predicated region
    $region10: #{decoder_forward.13} parent=1 // pred_check
      _
    $region11: #{decoder_forward.13} parent=1 // pred_check_branch
      %15 = sbr.rel (0) target = $region13
    $region12: #{decoder_forward.13} parent=1 // pred_region
      %17 = vsyncadd [#allocation3], 0
      %s19 = sshll.u32 %s2, 4
      %s20 = int_to_ptr.hbm [resolvable:$true] %s19
      %s21 = sshll.u32 [#allocation2], 4
      %s22 = int_to_ptr.vmem [resolvable:$true] %s21
      %24 = dma.hbm_to_vmem [thread:$0]  %s20, 16, %s22, [#allocation3]
    $region13: #{decoder_forward.13} parent=1 // pred_fallthru
      _
    // Predicated region
    $region14: #{decoder_forward.13} parent=1 // pred_check
      _
    $region15: #{decoder_forward.13} parent=1 // pred_check_branch
      %26 = sbr.rel (0) target = $region17
    $region16: #{decoder_forward.13} parent=1 // pred_region
      %28 = dma.done [#allocation3], 16
    $region17: #{decoder_forward.13} parent=1 // pred_fallthru
      _
    %v29 = vld [vmem:[%s0] sm:$0xff]
    %v30 = vld [vmem:[%s0 + $0x8] sm:$0xff]
    %v31 = vld [vmem:[%s1] sm:$0x1]
    %v32 = vld [vmem:[#allocation2] sm:$0x1]
    %vm33 = vcmask 261120
    %v34 = vsel %vm33, %v29, 0.0
    %35 = vadd.xlane.f32.xlu0 %v34
    %v36 = vpop.xlane.xlu0 %35
    %v37 = vsel %vm33, %v30, 0.0
    %38 = vadd.xlane.f32.xlu0 %v37
    %v39 = vpop.xlane.xlu0 %38
    %v40 = vrcp.pop 32.0
    %v41 = vmul.f32 32.0, %v40
    %v42 = vsub.f32 1.0, %v41
    %v43 = vmul.f32 %v40, %v42
    %v44 = vadd.f32 %v40, %v43
    %vm45 = vweird.f32 %v40
    %v46 = vsel %vm45, %v40, %v44
    %v47 = vmul.f32 %v36, %v46
    %v48 = vmul.f32 %v39, %v46
    %v49 = vsub.f32 %v29, %v47
    %v50 = vsub.f32 %v30, %v48
    %v51 = vmul.f32 %v49, %v49
    %v52 = vmul.f32 %v50, %v50
    %v53 = vsel %vm33, %v51, 0.0
    %54 = vadd.xlane.f32.xlu0 %v53
    %v55 = vpop.xlane.xlu0 %54
    %v56 = vsel %vm33, %v52, 0.0
    %57 = vadd.xlane.f32.xlu0 %v56
    %v58 = vpop.xlane.xlu0 %57
    %v59 = vrcp.pop 31.0
    %v60 = vmul.f32 31.0, %v59
    %v61 = vsub.f32 1.0, %v60
    %v62 = vmul.f32 %v59, %v61
    %v63 = vadd.f32 %v59, %v62
    %vm64 = vweird.f32 %v59
    %v65 = vsel %vm64, %v59, %v63
    %v66 = vmul.f32 %v55, %v65
    %v67 = vmul.f32 %v58, %v65
    %v69 = vperm.slane %v31, 0
    %v71 = vmul.f32 %v69, %v49
    %v72 = vmul.f32 %v69, %v50
    %v73 = vrsqrt.pop %v66
    %v74 = vmul.f32 %v73, %v66
    %v75 = vmul.f32 %v74, %v73
    %v76 = vmul.f32 0.5, %v75
    %v77 = vsub.f32 1.5, %v76
    %v78 = vmul.f32 %v73, %v77
    %v79 = vmul.f32 %v66, %v78
    %vm80 = vcmp.eq.f32.partialorder %v66, inf
    %v81 = vsel %vm80, %v66, %v79
    %vm82 = vcmp.eq.f32.partialorder %v66, 0.0
    %v83 = vand.u32 %v66, 2147483648
    %v84 = vsel %vm82, %v83, %v81
    %v85 = vrsqrt.pop %v67
    %v86 = vmul.f32 %v85, %v67
    %v87 = vmul.f32 %v86, %v85
    %v88 = vmul.f32 0.5, %v87
    %v89 = vsub.f32 1.5, %v88
    %v90 = vmul.f32 %v85, %v89
    %v91 = vmul.f32 %v67, %v90
    %vm92 = vcmp.eq.f32.partialorder %v67, inf
    %v93 = vsel %vm92, %v67, %v91
    %vm94 = vcmp.eq.f32.partialorder %v67, 0.0
    %v95 = vand.u32 %v67, 2147483648
    %v96 = vsel %vm94, %v95, %v93
    %v97 = vadd.f32 %v84, 1e-06
    %v98 = vadd.f32 %v96, 1e-06
    %v99 = vrcp.pop %v97
    %v100 = vmul.f32 %v97, %v99
    %v101 = vsub.f32 1.0, %v100
    %v102 = vmul.f32 %v99, %v101
    %v103 = vadd.f32 %v99, %v102
    %vm104 = vweird.f32 %v97
    %vm105 = vweird.f32 %v99
    %vm106 = vmor %vm104, %vm105
    %v107 = vsel %vm106, %v99, %v103
    %v108 = vand.u32 2147483647, %v97
    %vm109 = vcmp.eq.f32.partialorder %v108, 8.507059e+37
    %v110 = vand.u32 %v97, 2147483648
    %v111 = vor.u32 1.1754944e-38, %v110
    %v112 = vsel %vm109, %v111, %v107
    %v113 = vmul.f32 %v71, %v112
    %v114 = vrcp.pop %v98
    %v115 = vmul.f32 %v98, %v114
    %v116 = vsub.f32 1.0, %v115
    %v117 = vmul.f32 %v114, %v116
    %v118 = vadd.f32 %v114, %v117
    %vm119 = vweird.f32 %v98
    %vm120 = vweird.f32 %v114
    %vm121 = vmor %vm119, %vm120
    %v122 = vsel %vm121, %v114, %v118
    %v123 = vand.u32 2147483647, %v98
    %vm124 = vcmp.eq.f32.partialorder %v123, 8.507059e+37
    %v125 = vand.u32 %v98, 2147483648
    %v126 = vor.u32 1.1754944e-38, %v125
    %v127 = vsel %vm124, %v126, %v122
    %v128 = vmul.f32 %v72, %v127
    %v130 = vperm.slane %v32, 0
    %v132 = vadd.f32 %v113, %v130
    %v133 = vadd.f32 %v128, %v130
    %134 = vst.msk [vmem:[#allocation5] sm:$0xff] %vm33, %v132
    %135 = vst.msk [vmem:[#allocation5 + $0x8] sm:$0xff] %vm33, %v133
    // Predicated region
    $region18: #{decoder_forward.13} parent=1 // pred_check
      _
    $region19: #{decoder_forward.13} parent=1 // pred_check_branch
      %137 = sbr.rel (0) target = $region21
    $region20: #{decoder_forward.13} parent=1 // pred_region
      %139 = vsyncadd [#allocation4], 0
      %s140 = sshll.u32 [#allocation5], 4
      %s141 = int_to_ptr.vmem [resolvable:$true] %s140
      %s142 = sshll.u32 %s3, 4
      %s143 = int_to_ptr.hbm [resolvable:$true] %s142
      %148 = dma.vmem_to_hbm [thread:$0]  %s141, 256, %s143, [#allocation4], 128, 128, 8
    $region21: #{decoder_forward.13} parent=1 // pred_fallthru
      _
    // Predicated region
    $region22: #{decoder_forward.13} parent=1 // pred_check
      _
    $region23: #{decoder_forward.13} parent=1 // pred_check_branch
      %150 = sbr.rel (0) target = $region25
    $region24: #{decoder_forward.13} parent=1 // pred_region
      %152 = dma.done [#allocation4], 256
    $region25: #{decoder_forward.13} parent=1 // pred_fallthru
      _
    %153 = vsyncpa [#allocation3], 1
    %154 = vsyncpa [#allocation4], 1

</llo_original>
